<compile_context>
chip_gen: v7x
topology: tpu7x:2x2x1
jax: 0.10.0
libtpu: 0.0.40
codegen_flags: <defaults>
</compile_context>

<pallas_src>
import numpy as np
import jax
import jax.numpy as jnp
from jax.experimental import pallas as pl
from jax.experimental.pallas import tpu as pltpu

IMAGENET_DEFAULT_MEAN = (0.485, 0.456, 0.406)
IMAGENET_DEFAULT_STD = (0.229, 0.224, 0.225)


# ----------------------------------------------------------------------------
# Host-side (numpy) weight construction: resampling / crop geometry.
# ----------------------------------------------------------------------------
def _cubic(t, a=-0.5):
    t = abs(t)
    if t <= 1.0:
        return (a + 2.0) * t ** 3 - (a + 3.0) * t ** 2 + 1.0
    if t < 2.0:
        return a * t ** 3 - 5.0 * a * t ** 2 + 8.0 * a * t - 4.0 * a
    return 0.0


def bicubic_resize_matrix(in_size, out_size):
    """PIL-style antialiased bicubic resampling weights: (out_size, in_size)."""
    scale = in_size / out_size
    filterscale = max(scale, 1.0)
    support = 2.0 * filterscale
    w = np.zeros((out_size, in_size), dtype=np.float64)
    for i in range(out_size):
        center = (i + 0.5) * scale
        xmin = max(int(center - support + 0.5), 0)
        xmax = min(int(center + support + 0.5), in_size)
        for xx in range(xmin, xmax):
            w[i, xx] = _cubic((xx + 0.5 - center) / filterscale)
        s = w[i].sum()
        if s != 0.0:
            w[i] /= s
    return w.astype(np.float32)


def time_interp_matrix(t_in, f_out):
    """FixSequenceInterpolation: linear resampling along time -> (f_out, t_in)."""
    w = np.zeros((f_out, t_in), dtype=np.float64)
    if t_in == 1:
        w[:, 0] = 1.0
    else:
        for f in range(f_out):
            pos = f * (t_in - 1) / (f_out - 1) if f_out > 1 else 0.0
            i0 = int(np.floor(pos))
            i1 = min(i0 + 1, t_in - 1)
            frac = pos - i0
            w[f, i0] += 1.0 - frac
            w[f, i1] += frac
    return w.astype(np.float32)


def _resize_crop_geometry(H, W, S):
    """torchvision Resize(int, BICUBIC) + CenterCrop(S) geometry."""
    if H <= W:
        H_r, W_r = S, int(S * W / H)
    else:
        H_r, W_r = int(S * H / W), S
    h0 = int(round((H_r - S) / 2.0))
    w0 = int(round((W_r - S) / 2.0))
    return H_r, W_r, h0, w0


# ----------------------------------------------------------------------------
# Pallas kernels (one grid step = one clip; separable resize, f32 epilogue).
# ----------------------------------------------------------------------------
def _spatial_first_kernel(x_ref, wh_ref, wwT_ref, wtn_ref, scale_ref, bias_ref,
                          o_ref, y_ref):
    # x_ref    : (T*C, H, W)  bf16  one clip, row r = t*C + c
    # wh_ref   : (S, H)       bf16  bicubic row resize (center crop folded in)
    # wwT_ref  : (W, S)       bf16  bicubic col resize, transposed
    # wtn_ref  : (F*C, T*C)   bf16  kron(time-interp, I_C)
    # scale_ref: (F*C, 1)     f32   1/std per output row
    # bias_ref : (F*C, 1)     f32   mean/std per output row
    # o_ref    : (F*C, S*S)   f32   lane-dense output, lane = s1*S + s2
    # y_ref    : (T*C, S*S)   bf16  VMEM scratch: spatially resized rows
    x = x_ref[...]
    tc = x.shape[0]
    s = wh_ref.shape[0]
    # Contract H (batched over rows): (S, H) @ (H, W) per frame/channel row.
    wh_b = jnp.broadcast_to(wh_ref[...][None], (tc,) + wh_ref.shape)
    a = jnp.einsum('rsh,rhw->rsw', wh_b, x,
                   preferred_element_type=jnp.float32)              # (T*C,S,W)
    # Contract W (batched over rows): (S, W) @ (W, S).
    wwT_b = jnp.broadcast_to(wwT_ref[...][None], (tc,) + wwT_ref.shape)
    y3 = jnp.einsum('rsw,rwt->rst', a.astype(jnp.bfloat16), wwT_b,
                    preferred_element_type=jnp.float32)             # (T*C,S,S)
    y3 = y3.astype(jnp.bfloat16)
    # Lane-merge (T*C, S, S) -> (T*C, S*S) via static lane-slice stores so the
    # final matmul stays 2-D and the output block is lane-dense.
    for s1 in range(s):
        y_ref[:, s1 * s:(s1 + 1) * s] = y3[:, s1, :]
    # Temporal interpolation + normalization (f32 epilogue).
    out = jnp.dot(wtn_ref[...], y_ref[...],
                  preferred_element_type=jnp.float32)               # (F*C,S*S)
    o_ref[...] = out * scale_ref[...] - bias_ref[...]


def _temporal_first_kernel(x_ref, wh_ref, wwT_ref, wtn_ref, scale_ref, bias_ref,
                           o_ref, z_ref):
    # x_ref    : (H, T*C, W)  bf16  one clip, H is the in-kernel batch dim
    # o_ref    : (S, F*C*S)   f32   lane-dense, lane = (f*C + c)*S + s2
    # z_ref    : (H, F*C*S)   bf16  VMEM scratch
    x = x_ref[...]
    h = x.shape[0]
    fc = wtn_ref.shape[0]
    s = wh_ref.shape[0]
    # Temporal interpolation first (fewer rows enter the spatial resize when
    # T*C > F*C), batched over image rows h: (F*C, T*C) @ (T*C, W).
    wtn_b = jnp.broadcast_to(wtn_ref[...][None], (h,) + wtn_ref.shape)
    y = jnp.einsum('hpr,hrw->hpw', wtn_b, x,
                   preferred_element_type=jnp.float32)              # (H,F*C,W)
    # Contract W (batched over h): (F*C, W) @ (W, S).
    wwT_b = jnp.broadcast_to(wwT_ref[...][None], (h,) + wwT_ref.shape)
    z3 = jnp.einsum('hpw,hws->hps', y.astype(jnp.bfloat16), wwT_b,
                    preferred_element_type=jnp.float32)             # (H,F*C,S)
    z3 = z3.astype(jnp.bfloat16)
    for p in range(fc):
        z_ref[:, p * s:(p + 1) * s] = z3[:, p, :]
    # Contract H last: one 2-D matmul with a lane-dense (S, F*C*S) result.
    out = jnp.dot(wh_ref[...], z_ref[...],
                  preferred_element_type=jnp.float32)               # (S,F*C*S)
    o_ref[...] = out * scale_ref[...] - bias_ref[...]


# ----------------------------------------------------------------------------
# Host wrapper.
# ----------------------------------------------------------------------------
def casme2_aug_transform(x, *, input_size=16, num_frames=8):
    """Eval-path CASME2AugTransform.

    x: (T, C, H, W) or (B, T, C, H, W) float32 in [0, 1].
    Returns (C, F, S, S) resp. (B, C, F, S, S) with F=num_frames, S=input_size.
    """
    squeeze = x.ndim == 4
    if squeeze:
        x = x[None]
    B, T_in, C, H, W = x.shape
    S, F = input_size, num_frames
    assert C == len(IMAGENET_DEFAULT_MEAN), "RGB input expected"
    TC, FC = T_in * C, F * C

    # Tiny host-side weights (separable: O((H+W)*S + F*T) elements).
    H_r, W_r, h0, w0 = _resize_crop_geometry(H, W, S)
    wh = bicubic_resize_matrix(H, H_r)[h0:h0 + S, :]                 # (S, H)
    ww = bicubic_resize_matrix(W, W_r)[w0:w0 + S, :]                 # (S, W)
    wt = time_interp_matrix(T_in, F)                                 # (F, T)
    wtn = np.kron(wt, np.eye(C, dtype=np.float32))                   # (F*C, T*C)
    mean = np.asarray(IMAGENET_DEFAULT_MEAN, np.float32)
    inv = (1.0 / np.asarray(IMAGENET_DEFAULT_STD, np.float32))

    # Association picked at trace time by per-clip FLOPs of the two orderings.
    fl_spatial = 2 * TC * S * W * H + 2 * TC * S * S * W + 2 * FC * TC * S * S
    fl_temporal = 2 * H * FC * TC * W + 2 * H * FC * S * W + 2 * S * H * FC * S
    temporal_first = fl_temporal < fl_spatial

    wh_d = jnp.asarray(wh, jnp.bfloat16)
    wwT_d = jnp.asarray(ww.T, jnp.bfloat16)
    wtn_d = jnp.asarray(wtn, jnp.bfloat16)

    if temporal_first:
        # (B,T,C,H,W) -> (B,H,T*C,W): H becomes the in-kernel batch dim.
        x_k = x.transpose(0, 3, 1, 2, 4).reshape(B, H, TC, W).astype(jnp.bfloat16)
        scale = jnp.asarray(np.repeat(np.tile(inv, F), S)[None, :])        # (1,FC*S)
        bias = jnp.asarray(np.repeat(np.tile(mean * inv, F), S)[None, :])  # (1,FC*S)
        kernel = _temporal_first_kernel
        x_spec = pl.BlockSpec((None, H, TC, W), lambda b: (b, 0, 0, 0))
        vec_spec = pl.BlockSpec((1, FC * S), lambda b: (0, 0))
        out_spec = pl.BlockSpec((None, S, FC * S), lambda b: (b, 0, 0))
        out_shape = jax.ShapeDtypeStruct((B, S, FC * S), jnp.float32)
        scratch = pltpu.VMEM((H, FC * S), jnp.bfloat16)
        flops = B * fl_temporal
    else:
        x_k = x.reshape(B, TC, H, W).astype(jnp.bfloat16)
        scale = jnp.asarray(np.tile(inv, F)[:, None])                      # (FC,1)
        bias = jnp.asarray(np.tile(mean * inv, F)[:, None])                # (FC,1)
        kernel = _spatial_first_kernel
        x_spec = pl.BlockSpec((None, TC, H, W), lambda b: (b, 0, 0, 0))
        vec_spec = pl.BlockSpec((FC, 1), lambda b: (0, 0))
        out_spec = pl.BlockSpec((None, FC, S * S), lambda b: (b, 0, 0))
        out_shape = jax.ShapeDtypeStruct((B, FC, S * S), jnp.float32)
        scratch = pltpu.VMEM((TC, S * S), jnp.bfloat16)
        flops = B * fl_spatial

    def full2d(arr):
        return pl.BlockSpec(tuple(arr.shape), lambda b: (0, 0))

    bytes_accessed = int(x_k.size * 2 + wh_d.size * 2 + wwT_d.size * 2
                         + wtn_d.size * 2 + scale.size * 4 + bias.size * 4
                         + np.prod(out_shape.shape) * 4)

    out = pl.pallas_call(
        kernel,
        grid=(B,),                                   # one clip per grid step
        in_specs=[x_spec,
                  full2d(wh_d), full2d(wwT_d), full2d(wtn_d),
                  vec_spec, vec_spec],
        out_specs=out_spec,
        out_shape=out_shape,
        scratch_shapes=[scratch],
        compiler_params=pltpu.CompilerParams(
            dimension_semantics=("parallel",)),      # clips shard across TCs
        cost_estimate=pl.CostEstimate(flops=int(flops), transcendentals=0,
                                      bytes_accessed=bytes_accessed),
    )(x_k, wh_d, wwT_d, wtn_d, scale, bias)

    if temporal_first:
        out = out.reshape(B, S, F, C, S).transpose(0, 3, 2, 1, 4)   # (B,C,F,S,S)
    else:
        out = out.reshape(B, F, C, S, S).transpose(0, 2, 1, 3, 4)   # (B,C,F,S,S)
    return out[0] if squeeze else out


# ----------------------------------------------------------------------------
# Independent float64 numpy reference for correctness.
# ----------------------------------------------------------------------------
def casme2_reference_np(x_np, *, input_size=16, num_frames=8):
    T_in, C, H, W = x_np.shape
    S, F = input_size, num_frames
    H_r, W_r, h0, w0 = _resize_crop_geometry(H, W, S)
    wh = bicubic_resize_matrix(H, H_r).astype(np.float64)
    ww = bicubic_resize_matrix(W, W_r).astype(np.float64)
    wt = time_interp_matrix(T_in, F).astype(np.float64)
    mean = np.asarray(IMAGENET_DEFAULT_MEAN, np.float64)
    std = np.asarray(IMAGENET_DEFAULT_STD, np.float64)

    xd = x_np.astype(np.float64)
    r = np.einsum('ah,tchw->tcaw', wh, xd)
    r = np.einsum('tcaw,bw->tcab', r, ww)
    cr = r[:, :, h0:h0 + S, w0:w0 + S]
    ti = np.einsum('ft,tchw->fchw', wt, cr)
    nm = (ti - mean[None, :, None, None]) / std[None, :, None, None]
    return np.transpose(nm, (1, 0, 2, 3))                           # (C,F,S,S)


if __name__ == "__main__":
    root = jax.random.PRNGKey(0)
    k1, k2 = jax.random.split(root)
    S, F = 16, 8
    B, C, H, W = 2, 3, 20, 24

    # Tolerance: bf16 operands with f32 accumulation give a handful of 2^-9
    # relative roundings which the 1/std (~4.4x) normalization amplifies to an
    # absolute error of a few 1e-2; structural errors (wrong crop / filter /
    # frame mixing) would be O(0.5 - 3), so the check still discriminates.
    RTOL, ATOL = 2e-2, 5e-2

    # Case 1: short clip (T*C < F*C) -> spatial-first association.
    T1 = 6
    x1 = jax.random.uniform(k1, (B, T1, C, H, W), dtype=jnp.float32)
    out1 = jax.block_until_ready(casme2_aug_transform(x1, input_size=S,
                                                      num_frames=F))
    assert out1.shape == (B, C, F, S, S) and out1.dtype == jnp.float32
    ref1 = np.stack([casme2_reference_np(np.asarray(x1[b]), input_size=S,
                                         num_frames=F) for b in range(B)])
    np.testing.assert_allclose(np.asarray(out1), ref1, rtol=RTOL, atol=ATOL)

    # Case 2: long clip (T*C > F*C) -> temporal-first association.
    T2 = 20
    x2 = jax.random.uniform(k2, (B, T2, C, H, W), dtype=jnp.float32)
    out2 = jax.block_until_ready(casme2_aug_transform(x2, input_size=S,
                                                      num_frames=F))
    assert out2.shape == (B, C, F, S, S)
    ref2 = np.stack([casme2_reference_np(np.asarray(x2[b]), input_size=S,
                                         num_frames=F) for b in range(B)])
    np.testing.assert_allclose(np.asarray(out2), ref2, rtol=RTOL, atol=ATOL)

    # Unbatched (single clip) interface, matching the original module.
    out_single = jax.block_until_ready(
        casme2_aug_transform(x1[0], input_size=S, num_frames=F))
    assert out_single.shape == (C, F, S, S)
    np.testing.assert_allclose(np.asarray(out_single), np.asarray(out1[0]),
                               rtol=1e-5, atol=1e-5)

    print("KERNEL_OK")
</pallas_src>

<mosaic_0001>
module attributes {stable_mosaic.version = 11 : i64} {
  func.func @_spatial_first_kernel(%arg0: i32, %arg1: memref<1x18x20x24xbf16, #tpu.memory_space<vmem>>, %arg2: memref<16x20xbf16, #tpu.memory_space<vmem>>, %arg3: memref<24x16xbf16, #tpu.memory_space<vmem>>, %arg4: memref<24x18xbf16, #tpu.memory_space<vmem>>, %arg5: memref<24x1xf32, #tpu.memory_space<vmem>>, %arg6: memref<24x1xf32, #tpu.memory_space<vmem>>, %arg7: memref<1x24x256xf32, #tpu.memory_space<vmem>>, %arg8: memref<18x256xbf16, #tpu.memory_space<vmem>>) attributes {dimension_semantics = [#tpu.dimension_semantics<parallel>], iteration_bounds = array<i64: 2>, scalar_prefetch = 0 : i64, scratch_operands = 1 : i64, tpu.core_type = #tpu.core_type<tc>, window_params = [{transform_indices = @transform_0, window_bounds = array<i64: 1, 18, 20, 24>}, {pipeline_mode = #tpu.pipeline_mode<synchronous>, transform_indices = @transform_1, window_bounds = array<i64: 16, 20>}, {pipeline_mode = #tpu.pipeline_mode<synchronous>, transform_indices = @transform_2, window_bounds = array<i64: 24, 16>}, {pipeline_mode = #tpu.pipeline_mode<synchronous>, transform_indices = @transform_3, window_bounds = array<i64: 24, 18>}, {pipeline_mode = #tpu.pipeline_mode<synchronous>, transform_indices = @transform_4, window_bounds = array<i64: 24, 1>}, {pipeline_mode = #tpu.pipeline_mode<synchronous>, transform_indices = @transform_5, window_bounds = array<i64: 24, 1>}, {transform_indices = @transform_6, window_bounds = array<i64: 1, 24, 256>}]} {
    %c0 = arith.constant 0 : index
    %c0_0 = arith.constant 0 : index
    %c0_1 = arith.constant 0 : index
    %c0_2 = arith.constant 0 : index
    %0 = vector.load %arg1[%c0, %c0_0, %c0_1, %c0_2] : memref<1x18x20x24xbf16, #tpu.memory_space<vmem>>, vector<1x18x20x24xbf16>
    %1 = vector.shape_cast %0 : vector<1x18x20x24xbf16> to vector<18x20x24xbf16>
    %c0_3 = arith.constant 0 : index
    %c0_4 = arith.constant 0 : index
    %2 = vector.load %arg2[%c0_3, %c0_4] : memref<16x20xbf16, #tpu.memory_space<vmem>>, vector<16x20xbf16>
    %3 = vector.shape_cast %2 : vector<16x20xbf16> to vector<1x16x20xbf16>
    %4 = vector.shape_cast %3 : vector<1x16x20xbf16> to vector<1x16x20xbf16>
    %5 = vector.broadcast %4 : vector<1x16x20xbf16> to vector<18x16x20xbf16>
    "tpu.trace_start"() <{level = 10 : i32, message = "rsh,rhw->rsw"}> : () -> ()
    %cst = arith.constant dense<0.000000e+00> : vector<18x16x24xf32>
    %6 = tpu.matmul %5, %1, %cst {dimension_numbers = #tpu.dot_dimension_numbers<[2], [1], [1], [2], [0, 0, 0, 1, 1, 2], [0], [0]>} : vector<18x16x20xbf16>, vector<18x20x24xbf16>, vector<18x16x24xf32> -> vector<18x16x24xf32>
    "tpu.trace_stop"() : () -> ()
    %c0_5 = arith.constant 0 : index
    %c0_6 = arith.constant 0 : index
    %7 = vector.load %arg3[%c0_5, %c0_6] : memref<24x16xbf16, #tpu.memory_space<vmem>>, vector<24x16xbf16>
    %8 = vector.shape_cast %7 : vector<24x16xbf16> to vector<1x24x16xbf16>
    %9 = vector.shape_cast %8 : vector<1x24x16xbf16> to vector<1x24x16xbf16>
    %10 = vector.broadcast %9 : vector<1x24x16xbf16> to vector<18x24x16xbf16>
    %11 = arith.truncf %6 : vector<18x16x24xf32> to vector<18x16x24xbf16>
    "tpu.trace_start"() <{level = 10 : i32, message = "rsw,rwt->rst"}> : () -> ()
    %cst_7 = arith.constant dense<0.000000e+00> : vector<18x16x16xf32>
    %12 = tpu.matmul %11, %10, %cst_7 {dimension_numbers = #tpu.dot_dimension_numbers<[2], [1], [1], [2], [0, 0, 0, 1, 1, 2], [0], [0]>} : vector<18x16x24xbf16>, vector<18x24x16xbf16>, vector<18x16x16xf32> -> vector<18x16x16xf32>
    "tpu.trace_stop"() : () -> ()
    %13 = arith.truncf %12 : vector<18x16x16xf32> to vector<18x16x16xbf16>
    %14 = vector.extract_strided_slice %13 {offsets = [0, 0, 0], sizes = [18, 1, 16], strides = [1, 1, 1]} : vector<18x16x16xbf16> to vector<18x1x16xbf16>
    %15 = vector.shape_cast %14 : vector<18x1x16xbf16> to vector<18x16xbf16>
    %c0_8 = arith.constant 0 : index
    %c0_9 = arith.constant 0 : index
    %16 = vector.load %arg8[%c0_8, %c0_9] : memref<18x256xbf16, #tpu.memory_space<vmem>>, vector<18x16xbf16>
    tpu.vector_store %arg8[%c0_8, %c0_9], %15 {strides = array<i32>} : memref<18x256xbf16, #tpu.memory_space<vmem>>, vector<18x16xbf16>,
    %17 = vector.extract_strided_slice %13 {offsets = [0, 1, 0], sizes = [18, 1, 16], strides = [1, 1, 1]} : vector<18x16x16xbf16> to vector<18x1x16xbf16>
    %18 = vector.shape_cast %17 : vector<18x1x16xbf16> to vector<18x16xbf16>
    %c0_10 = arith.constant 0 : index
    %c16 = arith.constant 16 : index
    %19 = vector.load %arg8[%c0_10, %c16] : memref<18x256xbf16, #tpu.memory_space<vmem>>, vector<18x16xbf16>
    tpu.vector_store %arg8[%c0_10, %c16], %18 {strides = array<i32>} : memref<18x256xbf16, #tpu.memory_space<vmem>>, vector<18x16xbf16>,
    %20 = vector.extract_strided_slice %13 {offsets = [0, 2, 0], sizes = [18, 1, 16], strides = [1, 1, 1]} : vector<18x16x16xbf16> to vector<18x1x16xbf16>
    %21 = vector.shape_cast %20 : vector<18x1x16xbf16> to vector<18x16xbf16>
    %c0_11 = arith.constant 0 : index
    %c32 = arith.constant 32 : index
    %22 = vector.load %arg8[%c0_11, %c32] : memref<18x256xbf16, #tpu.memory_space<vmem>>, vector<18x16xbf16>
    tpu.vector_store %arg8[%c0_11, %c32], %21 {strides = array<i32>} : memref<18x256xbf16, #tpu.memory_space<vmem>>, vector<18x16xbf16>,
    %23 = vector.extract_strided_slice %13 {offsets = [0, 3, 0], sizes = [18, 1, 16], strides = [1, 1, 1]} : vector<18x16x16xbf16> to vector<18x1x16xbf16>
    %24 = vector.shape_cast %23 : vector<18x1x16xbf16> to vector<18x16xbf16>
    %c0_12 = arith.constant 0 : index
    %c48 = arith.constant 48 : index
    %25 = vector.load %arg8[%c0_12, %c48] : memref<18x256xbf16, #tpu.memory_space<vmem>>, vector<18x16xbf16>
    tpu.vector_store %arg8[%c0_12, %c48], %24 {strides = array<i32>} : memref<18x256xbf16, #tpu.memory_space<vmem>>, vector<18x16xbf16>,
    %26 = vector.extract_strided_slice %13 {offsets = [0, 4, 0], sizes = [18, 1, 16], strides = [1, 1, 1]} : vector<18x16x16xbf16> to vector<18x1x16xbf16>
    %27 = vector.shape_cast %26 : vector<18x1x16xbf16> to vector<18x16xbf16>
    %c0_13 = arith.constant 0 : index
    %c64 = arith.constant 64 : index
    %28 = vector.load %arg8[%c0_13, %c64] : memref<18x256xbf16, #tpu.memory_space<vmem>>, vector<18x16xbf16>
    tpu.vector_store %arg8[%c0_13, %c64], %27 {strides = array<i32>} : memref<18x256xbf16, #tpu.memory_space<vmem>>, vector<18x16xbf16>,
    %29 = vector.extract_strided_slice %13 {offsets = [0, 5, 0], sizes = [18, 1, 16], strides = [1, 1, 1]} : vector<18x16x16xbf16> to vector<18x1x16xbf16>
    %30 = vector.shape_cast %29 : vector<18x1x16xbf16> to vector<18x16xbf16>
    %c0_14 = arith.constant 0 : index
    %c80 = arith.constant 80 : index
    %31 = vector.load %arg8[%c0_14, %c80] : memref<18x256xbf16, #tpu.memory_space<vmem>>, vector<18x16xbf16>
    tpu.vector_store %arg8[%c0_14, %c80], %30 {strides = array<i32>} : memref<18x256xbf16, #tpu.memory_space<vmem>>, vector<18x16xbf16>,
    %32 = vector.extract_strided_slice %13 {offsets = [0, 6, 0], sizes = [18, 1, 16], strides = [1, 1, 1]} : vector<18x16x16xbf16> to vector<18x1x16xbf16>
    %33 = vector.shape_cast %32 : vector<18x1x16xbf16> to vector<18x16xbf16>
    %c0_15 = arith.constant 0 : index
    %c96 = arith.constant 96 : index
    %34 = vector.load %arg8[%c0_15, %c96] : memref<18x256xbf16, #tpu.memory_space<vmem>>, vector<18x16xbf16>
    tpu.vector_store %arg8[%c0_15, %c96], %33 {strides = array<i32>} : memref<18x256xbf16, #tpu.memory_space<vmem>>, vector<18x16xbf16>,
    %35 = vector.extract_strided_slice %13 {offsets = [0, 7, 0], sizes = [18, 1, 16], strides = [1, 1, 1]} : vector<18x16x16xbf16> to vector<18x1x16xbf16>
    %36 = vector.shape_cast %35 : vector<18x1x16xbf16> to vector<18x16xbf16>
    %c0_16 = arith.constant 0 : index
    %c112 = arith.constant 112 : index
    %37 = vector.load %arg8[%c0_16, %c112] : memref<18x256xbf16, #tpu.memory_space<vmem>>, vector<18x16xbf16>
    tpu.vector_store %arg8[%c0_16, %c112], %36 {strides = array<i32>} : memref<18x256xbf16, #tpu.memory_space<vmem>>, vector<18x16xbf16>,
    %38 = vector.extract_strided_slice %13 {offsets = [0, 8, 0], sizes = [18, 1, 16], strides = [1, 1, 1]} : vector<18x16x16xbf16> to vector<18x1x16xbf16>
    %39 = vector.shape_cast %38 : vector<18x1x16xbf16> to vector<18x16xbf16>
    %c0_17 = arith.constant 0 : index
    %c128 = arith.constant 128 : index
    %40 = vector.load %arg8[%c0_17, %c128] : memref<18x256xbf16, #tpu.memory_space<vmem>>, vector<18x16xbf16>
    tpu.vector_store %arg8[%c0_17, %c128], %39 {strides = array<i32>} : memref<18x256xbf16, #tpu.memory_space<vmem>>, vector<18x16xbf16>,
    %41 = vector.extract_strided_slice %13 {offsets = [0, 9, 0], sizes = [18, 1, 16], strides = [1, 1, 1]} : vector<18x16x16xbf16> to vector<18x1x16xbf16>
    %42 = vector.shape_cast %41 : vector<18x1x16xbf16> to vector<18x16xbf16>
    %c0_18 = arith.constant 0 : index
    %c144 = arith.constant 144 : index
    %43 = vector.load %arg8[%c0_18, %c144] : memref<18x256xbf16, #tpu.memory_space<vmem>>, vector<18x16xbf16>
    tpu.vector_store %arg8[%c0_18, %c144], %42 {strides = array<i32>} : memref<18x256xbf16, #tpu.memory_space<vmem>>, vector<18x16xbf16>,
    %44 = vector.extract_strided_slice %13 {offsets = [0, 10, 0], sizes = [18, 1, 16], strides = [1, 1, 1]} : vector<18x16x16xbf16> to vector<18x1x16xbf16>
    %45 = vector.shape_cast %44 : vector<18x1x16xbf16> to vector<18x16xbf16>
    %c0_19 = arith.constant 0 : index
    %c160 = arith.constant 160 : index
    %46 = vector.load %arg8[%c0_19, %c160] : memref<18x256xbf16, #tpu.memory_space<vmem>>, vector<18x16xbf16>
    tpu.vector_store %arg8[%c0_19, %c160], %45 {strides = array<i32>} : memref<18x256xbf16, #tpu.memory_space<vmem>>, vector<18x16xbf16>,
    %47 = vector.extract_strided_slice %13 {offsets = [0, 11, 0], sizes = [18, 1, 16], strides = [1, 1, 1]} : vector<18x16x16xbf16> to vector<18x1x16xbf16>
    %48 = vector.shape_cast %47 : vector<18x1x16xbf16> to vector<18x16xbf16>
    %c0_20 = arith.constant 0 : index
    %c176 = arith.constant 176 : index
    %49 = vector.load %arg8[%c0_20, %c176] : memref<18x256xbf16, #tpu.memory_space<vmem>>, vector<18x16xbf16>
    tpu.vector_store %arg8[%c0_20, %c176], %48 {strides = array<i32>} : memref<18x256xbf16, #tpu.memory_space<vmem>>, vector<18x16xbf16>,
    %50 = vector.extract_strided_slice %13 {offsets = [0, 12, 0], sizes = [18, 1, 16], strides = [1, 1, 1]} : vector<18x16x16xbf16> to vector<18x1x16xbf16>
    %51 = vector.shape_cast %50 : vector<18x1x16xbf16> to vector<18x16xbf16>
    %c0_21 = arith.constant 0 : index
    %c192 = arith.constant 192 : index
    %52 = vector.load %arg8[%c0_21, %c192] : memref<18x256xbf16, #tpu.memory_space<vmem>>, vector<18x16xbf16>
    tpu.vector_store %arg8[%c0_21, %c192], %51 {strides = array<i32>} : memref<18x256xbf16, #tpu.memory_space<vmem>>, vector<18x16xbf16>,
    %53 = vector.extract_strided_slice %13 {offsets = [0, 13, 0], sizes = [18, 1, 16], strides = [1, 1, 1]} : vector<18x16x16xbf16> to vector<18x1x16xbf16>
    %54 = vector.shape_cast %53 : vector<18x1x16xbf16> to vector<18x16xbf16>
    %c0_22 = arith.constant 0 : index
    %c208 = arith.constant 208 : index
    %55 = vector.load %arg8[%c0_22, %c208] : memref<18x256xbf16, #tpu.memory_space<vmem>>, vector<18x16xbf16>
    tpu.vector_store %arg8[%c0_22, %c208], %54 {strides = array<i32>} : memref<18x256xbf16, #tpu.memory_space<vmem>>, vector<18x16xbf16>,
    %56 = vector.extract_strided_slice %13 {offsets = [0, 14, 0], sizes = [18, 1, 16], strides = [1, 1, 1]} : vector<18x16x16xbf16> to vector<18x1x16xbf16>
    %57 = vector.shape_cast %56 : vector<18x1x16xbf16> to vector<18x16xbf16>
    %c0_23 = arith.constant 0 : index
    %c224 = arith.constant 224 : index
    %58 = vector.load %arg8[%c0_23, %c224] : memref<18x256xbf16, #tpu.memory_space<vmem>>, vector<18x16xbf16>
    tpu.vector_store %arg8[%c0_23, %c224], %57 {strides = array<i32>} : memref<18x256xbf16, #tpu.memory_space<vmem>>, vector<18x16xbf16>,
    %59 = vector.extract_strided_slice %13 {offsets = [0, 15, 0], sizes = [18, 1, 16], strides = [1, 1, 1]} : vector<18x16x16xbf16> to vector<18x1x16xbf16>
    %60 = vector.shape_cast %59 : vector<18x1x16xbf16> to vector<18x16xbf16>
    %c0_24 = arith.constant 0 : index
    %c240 = arith.constant 240 : index
    %61 = vector.load %arg8[%c0_24, %c240] : memref<18x256xbf16, #tpu.memory_space<vmem>>, vector<18x16xbf16>
    tpu.vector_store %arg8[%c0_24, %c240], %60 {strides = array<i32>} : memref<18x256xbf16, #tpu.memory_space<vmem>>, vector<18x16xbf16>,
    %c0_25 = arith.constant 0 : index
    %c0_26 = arith.constant 0 : index
    %62 = vector.load %arg4[%c0_25, %c0_26] : memref<24x18xbf16, #tpu.memory_space<vmem>>, vector<24x18xbf16>
    %c0_27 = arith.constant 0 : index
    %c0_28 = arith.constant 0 : index
    %63 = vector.load %arg8[%c0_27, %c0_28] : memref<18x256xbf16, #tpu.memory_space<vmem>>, vector<18x256xbf16>
    %cst_29 = arith.constant dense<0.000000e+00> : vector<24x256xf32>
    %64 = tpu.matmul %62, %63, %cst_29 {dimension_numbers = #tpu.dot_dimension_numbers<[1], [0], [0], [1], [0, 0, 1, 1], [], []>} : vector<24x18xbf16>, vector<18x256xbf16>, vector<24x256xf32> -> vector<24x256xf32>
    %c0_30 = arith.constant 0 : index
    %c0_31 = arith.constant 0 : index
    %65 = vector.load %arg5[%c0_30, %c0_31] : memref<24x1xf32, #tpu.memory_space<vmem>>, vector<24x1xf32>
    %66 = vector.broadcast %65 : vector<24x1xf32> to vector<24x256xf32>
    %67 = arith.mulf %64, %66 : vector<24x256xf32>
    %c0_32 = arith.constant 0 : index
    %c0_33 = arith.constant 0 : index
    %68 = vector.load %arg6[%c0_32, %c0_33] : memref<24x1xf32, #tpu.memory_space<vmem>>, vector<24x1xf32>
    %69 = vector.broadcast %68 : vector<24x1xf32> to vector<24x256xf32>
    %70 = arith.subf %67, %69 : vector<24x256xf32>
    %c0_34 = arith.constant 0 : index
    %c0_35 = arith.constant 0 : index
    %c0_36 = arith.constant 0 : index
    %71 = vector.load %arg7[%c0_34, %c0_35, %c0_36] : memref<1x24x256xf32, #tpu.memory_space<vmem>>, vector<1x24x256xf32>
    %72 = vector.shape_cast %71 : vector<1x24x256xf32> to vector<24x256xf32>
    %73 = vector.shape_cast %70 : vector<24x256xf32> to vector<1x24x256xf32>
    tpu.vector_store %arg7[%c0_34, %c0_35, %c0_36], %73 {strides = array<i32>} : memref<1x24x256xf32, #tpu.memory_space<vmem>>, vector<1x24x256xf32>,
    return
  }
  func.func @transform_0(%arg0: i32) -> (i32, i32, i32, i32) {
    %c0_i32 = arith.constant 0 : i32
    %c0_i32_0 = arith.constant 0 : i32
    %c0_i32_1 = arith.constant 0 : i32
    %c0_i32_2 = arith.constant 0 : i32
    return %arg0, %c0_i32, %c0_i32_0, %c0_i32_1 : i32, i32, i32, i32
  }
  func.func @transform_1(%arg0: i32) -> (i32, i32) {
    %c0_i32 = arith.constant 0 : i32
    %c0_i32_0 = arith.constant 0 : i32
    %c0_i32_1 = arith.constant 0 : i32
    return %c0_i32, %c0_i32_0 : i32, i32
  }
  func.func @transform_2(%arg0: i32) -> (i32, i32) {
    %c0_i32 = arith.constant 0 : i32
    %c0_i32_0 = arith.constant 0 : i32
    %c0_i32_1 = arith.constant 0 : i32
    return %c0_i32, %c0_i32_0 : i32, i32
  }
  func.func @transform_3(%arg0: i32) -> (i32, i32) {
    %c0_i32 = arith.constant 0 : i32
    %c0_i32_0 = arith.constant 0 : i32
    %c0_i32_1 = arith.constant 0 : i32
    return %c0_i32, %c0_i32_0 : i32, i32
  }
  func.func @transform_4(%arg0: i32) -> (i32, i32) {
    %c0_i32 = arith.constant 0 : i32
    %c0_i32_0 = arith.constant 0 : i32
    %c0_i32_1 = arith.constant 0 : i32
    return %c0_i32, %c0_i32_0 : i32, i32
  }
  func.func @transform_5(%arg0: i32) -> (i32, i32) {
    %c0_i32 = arith.constant 0 : i32
    %c0_i32_0 = arith.constant 0 : i32
    %c0_i32_1 = arith.constant 0 : i32
    return %c0_i32, %c0_i32_0 : i32, i32
  }
  func.func @transform_6(%arg0: i32) -> (i32, i32, i32) {
    %c0_i32 = arith.constant 0 : i32
    %c0_i32_0 = arith.constant 0 : i32
    %c0_i32_1 = arith.constant 0 : i32
    return %arg0, %c0_i32, %c0_i32_0 : i32, i32, i32
  }
}

</mosaic_0001>

<llo_original>
// kernel: tpu_custom_call.1
$region0: #{tpu_custom_call.1}
  #allocation0 [shape = 'u32[]', space=smem, size = 0x4, offset = 0x4, fixed_abs, tag = 'smem constant byte address 0x4 - core index']
  #allocation1 [shape = 'u32[144,128]{1,0:T(1,128)}', space=vmem, size = 0x12000, scoped, tag = 'internal scratch']
  #allocation2 [shape = 'bf16[18,256]{1,0:T(8,128)(2,1)}', space=vmem, size = 0x3000, scoped, tag = 'scratch operand']
  %s0 = inlined_call_operand.vmem [shape: bf16[2,18,20,24], index: 0, kind: input, shape index: {}]
  %s1 = inlined_call_operand.vmem [shape: bf16[16,20], index: 1, kind: input, shape index: {}]
  %s2 = inlined_call_operand.vmem [shape: bf16[24,16], index: 2, kind: input, shape index: {}]
  %s3 = inlined_call_operand.vmem [shape: bf16[24,18], index: 3, kind: input, shape index: {}]
  %s4 = inlined_call_operand.vmem [shape: f32[24,1], index: 4, kind: input, shape index: {}]
  %s5 = inlined_call_operand.vmem [shape: f32[24,1], index: 5, kind: input, shape index: {}]
  %s6 = inlined_call_operand.hbm [shape: f32[2,24,256], index: 6, kind: output, shape index: {}]
  %s7 = sld [smem:[#allocation0]]
  $region57: #{tpu_custom_call.1} parent=0
    _
  %s9 = ssub.s32 1, %s7
  %s10 = scalar_select 0, %s9, %s7
  $region1: #{tpu_custom_call.1} parent=0
    #allocation3 [shape = 'u8[49152]{0}', space=vmem, size = 0xc000, scoped, tag = 'output window, operand 0']
    #allocation4 [shape = 's32[2]{0}', space=sflag, size = 0x8, scoped, tag = 'scoped memory for tpu_custom_call.1']
    %11 = vsyncpa [#allocation4], 0
    %s12 = scalar_lea.sflag [#allocation4], 1
    %13 = vsyncpa %s12, 0
    loop: start=0, step=1, limit=4
    $region2: #{tpu_custom_call.1} parent=1 // loop_pre_header
      _
    $region3: #{tpu_custom_call.1} parent=1 // loop_header
      %s15 = sphi 0, %s19
      %p16 = scmp.ge.s32.totalorder %s15, 4
      %s25 = sphi 0, %s27
      %s28 = sphi 0, %s25
      %s29 = sphi 0, %s28
      %s45 = sphi 0, %s29
      %s49 = sphi 0, %s49
      %s51 = sphi 0, %s49
      %s52 = sphi 0, %s51
      %s66 = sphi 0, %s52
      %s70 = sphi 0, %s70
      %s72 = sphi 0, %s70
      %s73 = sphi 0, %s72
      %s87 = sphi 0, %s73
      %s91 = sphi 0, %s91
      %s93 = sphi 0, %s91
      %s94 = sphi 0, %s93
      %s108 = sphi 0, %s94
      %s112 = sphi 0, %s112
      %s114 = sphi 0, %s112
      %s115 = sphi 0, %s114
      %s129 = sphi 0, %s115
      %s133 = sphi 0, %s133
      %s135 = sphi 0, %s133
      %s136 = sphi 0, %s135
      %s150 = sphi 0, %s136
      %s156 = sphi 0, %s158
      %s159 = sphi 0, %s156
      %s160 = sphi 0, %s159
      %s176 = sphi 0, %s160
    $region4: #{tpu_custom_call.1} parent=1 // loop_header_branch
      %18 = sbr.rel (%p16) target = $region8
    $region5: #{tpu_custom_call.1} parent=1 // loop_body
      %s20 = ssub.s32 %s15, 1
      %s21 = ssub.s32 %s15, 2
      %s22 = sadd.s32 %s15, 1
      %s23 = ssub.s32 %s15, %s22
      %p24 = scmp.eq.s32.totalorder %s23, 0
      %s26 = sadd.s32 %s25, 1
      %s27 = scalar_select %p24, %s25, %s26
      %p30 = pneg %p24
      %p31 = scmp.eq.s32.totalorder %s15, 1
      %p32 = por %p30, %p31
      %p33 = scmp.ne.s32.totalorder %s25, %s28
      %p34 = scmp.eq.s32.totalorder %s15, 0
      %p35 = por %p33, %p34
      %p36 = scmp.ne.s32.totalorder %s25, %s28
      %p37 = scmp.eq.s32.totalorder %s20, 1
      %p38 = por %p36, %p37
      %p39 = scmp.ne.s32.totalorder %s28, %s29
      %p40 = scmp.eq.s32.totalorder %s20, 0
      %p41 = por %p39, %p40
      %p42 = scmp.ne.s32.totalorder %s28, %s29
      %p43 = scmp.eq.s32.totalorder %s21, 1
      %p44 = por %p42, %p43
      %p46 = scmp.ne.s32.totalorder %s29, %s45
      %p47 = scmp.eq.s32.totalorder %s21, 0
      %p48 = por %p46, %p47
      %s50 = sadd.s32 %s49, 1
      %p53 = scmp.eq.s32.totalorder %s15, 1
      %p54 = scmp.ne.s32.totalorder %s49, %s51
      %p55 = scmp.eq.s32.totalorder %s15, 0
      %p56 = por %p54, %p55
      %p57 = scmp.ne.s32.totalorder %s49, %s51
      %p58 = scmp.eq.s32.totalorder %s20, 1
      %p59 = por %p57, %p58
      %p60 = scmp.ne.s32.totalorder %s51, %s52
      %p61 = scmp.eq.s32.totalorder %s20, 0
      %p62 = por %p60, %p61
      %p63 = scmp.ne.s32.totalorder %s51, %s52
      %p64 = scmp.eq.s32.totalorder %s21, 1
      %p65 = por %p63, %p64
      %p67 = scmp.ne.s32.totalorder %s52, %s66
      %p68 = scmp.eq.s32.totalorder %s21, 0
      %p69 = por %p67, %p68
      %s71 = sadd.s32 %s70, 1
      %p74 = scmp.eq.s32.totalorder %s15, 1
      %p75 = scmp.ne.s32.totalorder %s70, %s72
      %p76 = scmp.eq.s32.totalorder %s15, 0
      %p77 = por %p75, %p76
      %p78 = scmp.ne.s32.totalorder %s70, %s72
      %p79 = scmp.eq.s32.totalorder %s20, 1
      %p80 = por %p78, %p79
      %p81 = scmp.ne.s32.totalorder %s72, %s73
      %p82 = scmp.eq.s32.totalorder %s20, 0
      %p83 = por %p81, %p82
      %p84 = scmp.ne.s32.totalorder %s72, %s73
      %p85 = scmp.eq.s32.totalorder %s21, 1
      %p86 = por %p84, %p85
      %p88 = scmp.ne.s32.totalorder %s73, %s87
      %p89 = scmp.eq.s32.totalorder %s21, 0
      %p90 = por %p88, %p89
      %s92 = sadd.s32 %s91, 1
      %p95 = scmp.eq.s32.totalorder %s15, 1
      %p96 = scmp.ne.s32.totalorder %s91, %s93
      %p97 = scmp.eq.s32.totalorder %s15, 0
      %p98 = por %p96, %p97
      %p99 = scmp.ne.s32.totalorder %s91, %s93
      %p100 = scmp.eq.s32.totalorder %s20, 1
      %p101 = por %p99, %p100
      %p102 = scmp.ne.s32.totalorder %s93, %s94
      %p103 = scmp.eq.s32.totalorder %s20, 0
      %p104 = por %p102, %p103
      %p105 = scmp.ne.s32.totalorder %s93, %s94
      %p106 = scmp.eq.s32.totalorder %s21, 1
      %p107 = por %p105, %p106
      %p109 = scmp.ne.s32.totalorder %s94, %s108
      %p110 = scmp.eq.s32.totalorder %s21, 0
      %p111 = por %p109, %p110
      %s113 = sadd.s32 %s112, 1
      %p116 = scmp.eq.s32.totalorder %s15, 1
      %p117 = scmp.ne.s32.totalorder %s112, %s114
      %p118 = scmp.eq.s32.totalorder %s15, 0
      %p119 = por %p117, %p118
      %p120 = scmp.ne.s32.totalorder %s112, %s114
      %p121 = scmp.eq.s32.totalorder %s20, 1
      %p122 = por %p120, %p121
      %p123 = scmp.ne.s32.totalorder %s114, %s115
      %p124 = scmp.eq.s32.totalorder %s20, 0
      %p125 = por %p123, %p124
      %p126 = scmp.ne.s32.totalorder %s114, %s115
      %p127 = scmp.eq.s32.totalorder %s21, 1
      %p128 = por %p126, %p127
      %p130 = scmp.ne.s32.totalorder %s115, %s129
      %p131 = scmp.eq.s32.totalorder %s21, 0
      %p132 = por %p130, %p131
      %s134 = sadd.s32 %s133, 1
      %p137 = scmp.eq.s32.totalorder %s15, 1
      %p138 = scmp.ne.s32.totalorder %s133, %s135
      %p139 = scmp.eq.s32.totalorder %s15, 0
      %p140 = por %p138, %p139
      %p141 = scmp.ne.s32.totalorder %s133, %s135
      %p142 = scmp.eq.s32.totalorder %s20, 1
      %p143 = por %p141, %p142
      %p144 = scmp.ne.s32.totalorder %s135, %s136
      %p145 = scmp.eq.s32.totalorder %s20, 0
      %p146 = por %p144, %p145
      %p147 = scmp.ne.s32.totalorder %s135, %s136
      %p148 = scmp.eq.s32.totalorder %s21, 1
      %p149 = por %p147, %p148
      %p151 = scmp.ne.s32.totalorder %s136, %s150
      %p152 = scmp.eq.s32.totalorder %s21, 0
      %p153 = por %p151, %p152
      %s154 = ssub.s32 %s15, %s22
      %p155 = scmp.eq.s32.totalorder %s154, 0
      %s157 = sadd.s32 %s156, 1
      %s158 = scalar_select %p155, %s156, %s157
      %p161 = pneg %p155
      %p162 = scmp.eq.s32.totalorder %s15, 1
      %p163 = por %p161, %p162
      %p164 = scmp.ne.s32.totalorder %s156, %s159
      %p165 = scmp.eq.s32.totalorder %s15, 0
      %p166 = por %p164, %p165
      %p167 = scmp.ne.s32.totalorder %s156, %s159
      %p168 = scmp.eq.s32.totalorder %s20, 1
      %p169 = por %p167, %p168
      %p170 = scmp.ne.s32.totalorder %s159, %s160
      %p171 = scmp.eq.s32.totalorder %s20, 0
      %p172 = por %p170, %p171
      %p173 = scmp.ne.s32.totalorder %s159, %s160
      %p174 = scmp.eq.s32.totalorder %s21, 1
      %p175 = por %p173, %p174
      %p177 = scmp.ne.s32.totalorder %s160, %s176
      %p178 = scmp.eq.s32.totalorder %s21, 0
      %p179 = por %p177, %p178
      %p180 = scmp.le.s32.totalorder 1, %s15
      %p181 = scmp.lt.s32.totalorder %s15, 3
      %p182 = pnand %p180, %p181
      %p183 = pneg %p182
      // Predicated region
      $region9: #{tpu_custom_call.1} parent=5 // pred_check
        _
      $region10: #{tpu_custom_call.1} parent=5 // pred_check_branch
        %185 = sbr.rel (%p182) target = $region12
      $region11: #{tpu_custom_call.1} parent=5 // pred_region
        %s186 = ssub.s32 %s15, 1
        // Predicated region
        $region13: #{tpu_custom_call.1} parent=11 // pred_check
          %p187 = pneg %p62
        $region14: #{tpu_custom_call.1} parent=11 // pred_check_branch
          %189 = sbr.rel (%p187) target = $region16
        $region15: #{tpu_custom_call.1} parent=11 // pred_region
          _
        $region16: #{tpu_custom_call.1} parent=11 // pred_fallthru
          _
        // Predicated region
        $region17: #{tpu_custom_call.1} parent=11 // pred_check
          %p190 = pneg %p83
        $region18: #{tpu_custom_call.1} parent=11 // pred_check_branch
          %192 = sbr.rel (%p190) target = $region20
        $region19: #{tpu_custom_call.1} parent=11 // pred_region
          _
        $region20: #{tpu_custom_call.1} parent=11 // pred_fallthru
          _
        // Predicated region
        $region21: #{tpu_custom_call.1} parent=11 // pred_check
          %p193 = pneg %p104
        $region22: #{tpu_custom_call.1} parent=11 // pred_check_branch
          %195 = sbr.rel (%p193) target = $region24
        $region23: #{tpu_custom_call.1} parent=11 // pred_region
          _
        $region24: #{tpu_custom_call.1} parent=11 // pred_fallthru
          _
        // Predicated region
        $region25: #{tpu_custom_call.1} parent=11 // pred_check
          %p196 = pneg %p125
        $region26: #{tpu_custom_call.1} parent=11 // pred_check_branch
          %198 = sbr.rel (%p196) target = $region28
        $region27: #{tpu_custom_call.1} parent=11 // pred_region
          _
        $region28: #{tpu_custom_call.1} parent=11 // pred_fallthru
          _
        // Predicated region
        $region29: #{tpu_custom_call.1} parent=11 // pred_check
          %p199 = pneg %p146
        $region30: #{tpu_custom_call.1} parent=11 // pred_check_branch
          %201 = sbr.rel (%p199) target = $region32
        $region31: #{tpu_custom_call.1} parent=11 // pred_region
          _
        $region32: #{tpu_custom_call.1} parent=11 // pred_fallthru
          _
      $region12: #{tpu_custom_call.1} parent=5 // pred_fallthru
        _
      %p202 = scmp.lt.s32.totalorder %s15, 2
      // Predicated region
      $region33: #{tpu_custom_call.1} parent=5 // pred_check
        %p203 = pneg %p202
      $region34: #{tpu_custom_call.1} parent=5 // pred_check_branch
        %205 = sbr.rel (%p203) target = $region36
      $region35: #{tpu_custom_call.1} parent=5 // pred_region
        // Predicated region
        $region37: #{tpu_custom_call.1} parent=35 // pred_check
          %p206 = pneg %p35
        $region38: #{tpu_custom_call.1} parent=35 // pred_check_branch
          %208 = sbr.rel (%p206) target = $region40
        $region39: #{tpu_custom_call.1} parent=35 // pred_region
          %p209 = scmp.lt.s32.totalorder %s15, 1
          %s210 = scalar_select %p209, %s15, 1
          %s211 = smul.addr %s210, 54
          %s212 = smul.addr %s211, 4
          %s213 = scalar_lea.vmem %s0, %s212
        $region40: #{tpu_custom_call.1} parent=35 // pred_fallthru
          _
      $region36: #{tpu_custom_call.1} parent=5 // pred_fallthru
        _
      %p214 = scmp.le.s32.totalorder 1, %s15
      %p215 = scmp.lt.s32.totalorder %s15, 3
      %p216 = pnand %p214, %p215
      %p217 = pneg %p216
      // Predicated region
      $region41: #{tpu_custom_call.1} parent=5 // pred_check
        _
      $region42: #{tpu_custom_call.1} parent=5 // pred_check_branch
        %219 = sbr.rel (%p216) target = $region44
      $region43: #{tpu_custom_call.1} parent=5 // pred_region
        %s220 = ssub.s32 %s15, 1
        %p221 = scmp.lt.s32.totalorder %s20, 1
        %s222 = scalar_select %p221, %s20, 1
        %s223 = smul.addr %s222, 54
        %s224 = smul.addr %s223, 4
        %s225 = scalar_lea.vmem %s0, %s224
        %p226 = pneg %p41
        %p227 = pneg %p38
        %p228 = pneg %p62
        %p229 = pneg %p59
        %p230 = pneg %p83
        %p231 = pneg %p80
        %p232 = pneg %p104
        %p233 = pneg %p101
        %p234 = pneg %p125
        %p235 = pneg %p122
        %p236 = pneg %p146
        %p237 = pneg %p143
        %p238 = pneg %p172
        %p239 = pneg %p169
        %s240 = sand.u32 %s159, 1
        %s241 = scalar_lea.sflag [#allocation4], %s240
        %s242 = sand.u32 %s159, 1
        %s243 = smul.addr %s242, 48
        %s244 = scalar_lea.vmem [#allocation3], %s243
        %p245 = scmp.lt.s32.totalorder %s20, 1
        %s246 = scalar_select %p245, %s20, 1
        %s247 = smul.addr %s246, 54
        %s248 = smul.addr %s247, 4
        %s249 = scalar_lea.vmem %s0, %s248
        %v251 = vld [vmem:[%s249] sm:$0xf]
        %v252 = vld [vmem:[%s249 + $0x4] sm:$0xf]
        %v253 = vld [vmem:[%s249 + $0x8] sm:$0x3]
        %v254 = vld [vmem:[%s249 + $0xc] sm:$0xf]
        %v255 = vld [vmem:[%s249 + $0x10] sm:$0xf]
        %v256 = vld [vmem:[%s249 + $0x14] sm:$0x3]
        %v257 = vld [vmem:[%s249 + $0x18] sm:$0xf]
        %v258 = vld [vmem:[%s249 + $0x1c] sm:$0xf]
        %v259 = vld [vmem:[%s249 + $0x20] sm:$0x3]
        %v260 = vld [vmem:[%s249 + $0x24] sm:$0xf]
        %v261 = vld [vmem:[%s249 + $0x28] sm:$0xf]
        %v262 = vld [vmem:[%s249 + $0x2c] sm:$0x3]
        %v263 = vld [vmem:[%s249 + $0x30] sm:$0xf]
        %v264 = vld [vmem:[%s249 + $0x34] sm:$0xf]
        %v265 = vld [vmem:[%s249 + $0x38] sm:$0x3]
        %v266 = vld [vmem:[%s249 + $0x3c] sm:$0xf]
        %v267 = vld [vmem:[%s249 + $0x40] sm:$0xf]
        %v268 = vld [vmem:[%s249 + $0x44] sm:$0x3]
        %v269 = vld [vmem:[%s249 + $0x48] sm:$0xf]
        %v270 = vld [vmem:[%s249 + $0x4c] sm:$0xf]
        %v271 = vld [vmem:[%s249 + $0x50] sm:$0x3]
        %v272 = vld [vmem:[%s249 + $0x54] sm:$0xf]
        %v273 = vld [vmem:[%s249 + $0x58] sm:$0xf]
        %v274 = vld [vmem:[%s249 + $0x5c] sm:$0x3]
        %v275 = vld [vmem:[%s249 + $0x60] sm:$0xf]
        %v276 = vld [vmem:[%s249 + $0x64] sm:$0xf]
        %v277 = vld [vmem:[%s249 + $0x68] sm:$0x3]
        %v278 = vld [vmem:[%s249 + $0x6c] sm:$0xf]
        %v279 = vld [vmem:[%s249 + $0x70] sm:$0xf]
        %v280 = vld [vmem:[%s249 + $0x74] sm:$0x3]
        %v281 = vld [vmem:[%s249 + $0x78] sm:$0xf]
        %v282 = vld [vmem:[%s249 + $0x7c] sm:$0xf]
        %v283 = vld [vmem:[%s249 + $0x80] sm:$0x3]
        %v284 = vld [vmem:[%s249 + $0x84] sm:$0xf]
        %v285 = vld [vmem:[%s249 + $0x88] sm:$0xf]
        %v286 = vld [vmem:[%s249 + $0x8c] sm:$0x3]
        %v287 = vld [vmem:[%s249 + $0x90] sm:$0xf]
        %v288 = vld [vmem:[%s249 + $0x94] sm:$0xf]
        %v289 = vld [vmem:[%s249 + $0x98] sm:$0x3]
        %v290 = vld [vmem:[%s249 + $0x9c] sm:$0xf]
        %v291 = vld [vmem:[%s249 + $0xa0] sm:$0xf]
        %v292 = vld [vmem:[%s249 + $0xa4] sm:$0x3]
        %v293 = vld [vmem:[%s249 + $0xa8] sm:$0xf]
        %v294 = vld [vmem:[%s249 + $0xac] sm:$0xf]
        %v295 = vld [vmem:[%s249 + $0xb0] sm:$0x3]
        %v296 = vld [vmem:[%s249 + $0xb4] sm:$0xf]
        %v297 = vld [vmem:[%s249 + $0xb8] sm:$0xf]
        %v298 = vld [vmem:[%s249 + $0xbc] sm:$0x3]
        %v299 = vld [vmem:[%s249 + $0xc0] sm:$0xf]
        %v300 = vld [vmem:[%s249 + $0xc4] sm:$0xf]
        %v301 = vld [vmem:[%s249 + $0xc8] sm:$0x3]
        %v302 = vld [vmem:[%s249 + $0xcc] sm:$0xf]
        %v303 = vld [vmem:[%s249 + $0xd0] sm:$0xf]
        %v304 = vld [vmem:[%s249 + $0xd4] sm:$0x3]
        %v305 = vld [vmem:[%s1] sm:$0xf]
        %v306 = vld [vmem:[%s1 + $0x4] sm:$0xf]
        %v309 = vunpack.c.l.b16 %v305
        %v310 = vunpack.c.l.b16 %v306
        %v311 = vpack.c.b16 %v310, %v309
        %v315 = vunpack.c.l.b16 %v251
        %v316 = vunpack.c.l.b16 %v252
        %v317 = vunpack.c.l.b16 %v253
        %v318 = vpack.c.b16 %v316, %v315
        %v319 = vpack.c.b16 %v317, %v317
        %vm321 = vcmask 162816
        %v323 = vsel %vm321, %v311, 0
        %vm325 = vcmask 1041408
        %v327 = vsel %vm325, %v319, 0
        %329 = vmatprep.subr.bf16.mxu0 0
        %330 = vmatpush1.bf16.msra.mxu0 %v318
        %331 = vmatprep.subr.bf16.mxu0 0
        %332 = vmatpush1.bf16.msra.mxu0 %v327
        %333 = vmatprep.subr.bf16.mxu0 0
        %334 = vmatpush1.bf16.msra.mxu0 0
        %335 = vmatprep.subr.bf16.mxu0 0
        %336 = vmatpush1.bf16.msra.mxu0 0
        %337 = vmatprep.subr.bf16.mxu0 0
        %338 = vmatpush1.bf16.msra.mxu0 0
        %339 = vmatprep.subr.bf16.mxu0 0
        %340 = vmatpush1.bf16.msra.mxu0 0
        %341 = vmatprep.subr.bf16.mxu0 0
        %342 = vmatpush1.bf16.msra.mxu0 0
        %343 = vmatprep.subr.bf16.mxu0 0
        %344 = vmatpush1.bf16.msra.mxu0 0
        %345 = vmatprep.subr.bf16.mxu0 0
        %346 = vmatpush1.bf16.msra.mxu0 0
        %347 = vmatprep.subr.bf16.mxu0 0
        %348 = vmatpush1.bf16.msra.mxu0 0
        %349 = vmatprep.subr.bf16.mxu0 0
        %350 = vmatpush1.bf16.msra.mxu0 0
        %351 = vmatprep.subr.bf16.mxu0 0
        %352 = vmatpush1.bf16.msra.mxu0 0
        %353 = vmatprep.subr.bf16.mxu0 0
        %354 = vmatpush1.bf16.msra.mxu0 0
        %355 = vmatprep.subr.bf16.mxu0 0
        %356 = vmatpush1.bf16.msra.mxu0 0
        %357 = vmatprep.subr.bf16.mxu0 0
        %358 = vmatpush1.bf16.msra.mxu0 0
        %359 = vmatprep.subr.bf16.mxu0 0
        %360 = vmatpush1.bf16.msra.mxu0 0
        %361 = vmatprep.mubr.bf16.mxu0 0
        %362 = vmatmul.mubr.bf16.gmra.mrb[0].mxu0 %v323
        %v363 = vpop.f32.mrb[0].mxu0
        %v364 = vadd.f32 0.0, %v363
        %v365 = vpop.f32.mrb[0].mxu0
        %v366 = vpop.f32.mrb[0].mxu0
        %v367 = vadd.f32 0.0, %v366
        %v368 = vpop.f32.mrb[0].mxu0
        %369 = vdwg.mxu0
        %v373 = vunpack.c.l.b16 %v254
        %v374 = vunpack.c.l.b16 %v255
        %v375 = vunpack.c.l.b16 %v256
        %v376 = vpack.c.b16 %v374, %v373
        %v377 = vpack.c.b16 %v375, %v375
        %v380 = vsel %vm325, %v377, 0
        %382 = vmatprep.subr.bf16.mxu0 0
        %383 = vmatpush1.bf16.msra.mxu0 %v376
        %384 = vmatprep.subr.bf16.mxu0 0
        %385 = vmatpush1.bf16.msra.mxu0 %v380
        %386 = vmatprep.subr.bf16.mxu0 0
        %387 = vmatpush1.bf16.msra.mxu0 0
        %388 = vmatprep.subr.bf16.mxu0 0
        %389 = vmatpush1.bf16.msra.mxu0 0
        %390 = vmatprep.subr.bf16.mxu0 0
        %391 = vmatpush1.bf16.msra.mxu0 0
        %392 = vmatprep.subr.bf16.mxu0 0
        %393 = vmatpush1.bf16.msra.mxu0 0
        %394 = vmatprep.subr.bf16.mxu0 0
        %395 = vmatpush1.bf16.msra.mxu0 0
        %396 = vmatprep.subr.bf16.mxu0 0
        %397 = vmatpush1.bf16.msra.mxu0 0
        %398 = vmatprep.subr.bf16.mxu0 0
        %399 = vmatpush1.bf16.msra.mxu0 0
        %400 = vmatprep.subr.bf16.mxu0 0
        %401 = vmatpush1.bf16.msra.mxu0 0
        %402 = vmatprep.subr.bf16.mxu0 0
        %403 = vmatpush1.bf16.msra.mxu0 0
        %404 = vmatprep.subr.bf16.mxu0 0
        %405 = vmatpush1.bf16.msra.mxu0 0
        %406 = vmatprep.subr.bf16.mxu0 0
        %407 = vmatpush1.bf16.msra.mxu0 0
        %408 = vmatprep.subr.bf16.mxu0 0
        %409 = vmatpush1.bf16.msra.mxu0 0
        %410 = vmatprep.subr.bf16.mxu0 0
        %411 = vmatpush1.bf16.msra.mxu0 0
        %412 = vmatprep.subr.bf16.mxu0 0
        %413 = vmatpush1.bf16.msra.mxu0 0
        %414 = vmatprep.mubr.bf16.mxu0 0
        %415 = vmatmul.mubr.bf16.gmra.mrb[0].mxu0 %v323
        %v416 = vpop.f32.mrb[0].mxu0
        %v417 = vadd.f32 0.0, %v416
        %v418 = vpop.f32.mrb[0].mxu0
        %v419 = vpop.f32.mrb[0].mxu0
        %v420 = vadd.f32 0.0, %v419
        %v421 = vpop.f32.mrb[0].mxu0
        %422 = vdwg.mxu0
        %v426 = vunpack.c.l.b16 %v257
        %v427 = vunpack.c.l.b16 %v258
        %v428 = vunpack.c.l.b16 %v259
        %v429 = vpack.c.b16 %v427, %v426
        %v430 = vpack.c.b16 %v428, %v428
        %v433 = vsel %vm325, %v430, 0
        %435 = vmatprep.subr.bf16.mxu0 0
        %436 = vmatpush1.bf16.msra.mxu0 %v429
        %437 = vmatprep.subr.bf16.mxu0 0
        %438 = vmatpush1.bf16.msra.mxu0 %v433
        %439 = vmatprep.subr.bf16.mxu0 0
        %440 = vmatpush1.bf16.msra.mxu0 0
        %441 = vmatprep.subr.bf16.mxu0 0
        %442 = vmatpush1.bf16.msra.mxu0 0
        %443 = vmatprep.subr.bf16.mxu0 0
        %444 = vmatpush1.bf16.msra.mxu0 0
        %445 = vmatprep.subr.bf16.mxu0 0
        %446 = vmatpush1.bf16.msra.mxu0 0
        %447 = vmatprep.subr.bf16.mxu0 0
        %448 = vmatpush1.bf16.msra.mxu0 0
        %449 = vmatprep.subr.bf16.mxu0 0
        %450 = vmatpush1.bf16.msra.mxu0 0
        %451 = vmatprep.subr.bf16.mxu0 0
        %452 = vmatpush1.bf16.msra.mxu0 0
        %453 = vmatprep.subr.bf16.mxu0 0
        %454 = vmatpush1.bf16.msra.mxu0 0
        %455 = vmatprep.subr.bf16.mxu0 0
        %456 = vmatpush1.bf16.msra.mxu0 0
        %457 = vmatprep.subr.bf16.mxu0 0
        %458 = vmatpush1.bf16.msra.mxu0 0
        %459 = vmatprep.subr.bf16.mxu0 0
        %460 = vmatpush1.bf16.msra.mxu0 0
        %461 = vmatprep.subr.bf16.mxu0 0
        %462 = vmatpush1.bf16.msra.mxu0 0
        %463 = vmatprep.subr.bf16.mxu0 0
        %464 = vmatpush1.bf16.msra.mxu0 0
        %465 = vmatprep.subr.bf16.mxu0 0
        %466 = vmatpush1.bf16.msra.mxu0 0
        %467 = vmatprep.mubr.bf16.mxu0 0
        %468 = vmatmul.mubr.bf16.gmra.mrb[0].mxu0 %v323
        %v469 = vpop.f32.mrb[0].mxu0
        %v470 = vadd.f32 0.0, %v469
        %v471 = vpop.f32.mrb[0].mxu0
        %v472 = vpop.f32.mrb[0].mxu0
        %v473 = vadd.f32 0.0, %v472
        %v474 = vpop.f32.mrb[0].mxu0
        %475 = vdwg.mxu0
        %v479 = vunpack.c.l.b16 %v260
        %v480 = vunpack.c.l.b16 %v261
        %v481 = vunpack.c.l.b16 %v262
        %v482 = vpack.c.b16 %v480, %v479
        %v483 = vpack.c.b16 %v481, %v481
        %v486 = vsel %vm325, %v483, 0
        %488 = vmatprep.subr.bf16.mxu0 0
        %489 = vmatpush1.bf16.msra.mxu0 %v482
        %490 = vmatprep.subr.bf16.mxu0 0
        %491 = vmatpush1.bf16.msra.mxu0 %v486
        %492 = vmatprep.subr.bf16.mxu0 0
        %493 = vmatpush1.bf16.msra.mxu0 0
        %494 = vmatprep.subr.bf16.mxu0 0
        %495 = vmatpush1.bf16.msra.mxu0 0
        %496 = vmatprep.subr.bf16.mxu0 0
        %497 = vmatpush1.bf16.msra.mxu0 0
        %498 = vmatprep.subr.bf16.mxu0 0
        %499 = vmatpush1.bf16.msra.mxu0 0
        %500 = vmatprep.subr.bf16.mxu0 0
        %501 = vmatpush1.bf16.msra.mxu0 0
        %502 = vmatprep.subr.bf16.mxu0 0
        %503 = vmatpush1.bf16.msra.mxu0 0
        %504 = vmatprep.subr.bf16.mxu0 0
        %505 = vmatpush1.bf16.msra.mxu0 0
        %506 = vmatprep.subr.bf16.mxu0 0
        %507 = vmatpush1.bf16.msra.mxu0 0
        %508 = vmatprep.subr.bf16.mxu0 0
        %509 = vmatpush1.bf16.msra.mxu0 0
        %510 = vmatprep.subr.bf16.mxu0 0
        %511 = vmatpush1.bf16.msra.mxu0 0
        %512 = vmatprep.subr.bf16.mxu0 0
        %513 = vmatpush1.bf16.msra.mxu0 0
        %514 = vmatprep.subr.bf16.mxu0 0
        %515 = vmatpush1.bf16.msra.mxu0 0
        %516 = vmatprep.subr.bf16.mxu0 0
        %517 = vmatpush1.bf16.msra.mxu0 0
        %518 = vmatprep.subr.bf16.mxu0 0
        %519 = vmatpush1.bf16.msra.mxu0 0
        %520 = vmatprep.mubr.bf16.mxu0 0
        %521 = vmatmul.mubr.bf16.gmra.mrb[0].mxu0 %v323
        %v522 = vpop.f32.mrb[0].mxu0
        %v523 = vadd.f32 0.0, %v522
        %v524 = vpop.f32.mrb[0].mxu0
        %v525 = vpop.f32.mrb[0].mxu0
        %v526 = vadd.f32 0.0, %v525
        %v527 = vpop.f32.mrb[0].mxu0
        %528 = vdwg.mxu0
        %v532 = vunpack.c.l.b16 %v263
        %v533 = vunpack.c.l.b16 %v264
        %v534 = vunpack.c.l.b16 %v265
        %v535 = vpack.c.b16 %v533, %v532
        %v536 = vpack.c.b16 %v534, %v534
        %v539 = vsel %vm325, %v536, 0
        %541 = vmatprep.subr.bf16.mxu0 0
        %542 = vmatpush1.bf16.msra.mxu0 %v535
        %543 = vmatprep.subr.bf16.mxu0 0
        %544 = vmatpush1.bf16.msra.mxu0 %v539
        %545 = vmatprep.subr.bf16.mxu0 0
        %546 = vmatpush1.bf16.msra.mxu0 0
        %547 = vmatprep.subr.bf16.mxu0 0
        %548 = vmatpush1.bf16.msra.mxu0 0
        %549 = vmatprep.subr.bf16.mxu0 0
        %550 = vmatpush1.bf16.msra.mxu0 0
        %551 = vmatprep.subr.bf16.mxu0 0
        %552 = vmatpush1.bf16.msra.mxu0 0
        %553 = vmatprep.subr.bf16.mxu0 0
        %554 = vmatpush1.bf16.msra.mxu0 0
        %555 = vmatprep.subr.bf16.mxu0 0
        %556 = vmatpush1.bf16.msra.mxu0 0
        %557 = vmatprep.subr.bf16.mxu0 0
        %558 = vmatpush1.bf16.msra.mxu0 0
        %559 = vmatprep.subr.bf16.mxu0 0
        %560 = vmatpush1.bf16.msra.mxu0 0
        %561 = vmatprep.subr.bf16.mxu0 0
        %562 = vmatpush1.bf16.msra.mxu0 0
        %563 = vmatprep.subr.bf16.mxu0 0
        %564 = vmatpush1.bf16.msra.mxu0 0
        %565 = vmatprep.subr.bf16.mxu0 0
        %566 = vmatpush1.bf16.msra.mxu0 0
        %567 = vmatprep.subr.bf16.mxu0 0
        %568 = vmatpush1.bf16.msra.mxu0 0
        %569 = vmatprep.subr.bf16.mxu0 0
        %570 = vmatpush1.bf16.msra.mxu0 0
        %571 = vmatprep.subr.bf16.mxu0 0
        %572 = vmatpush1.bf16.msra.mxu0 0
        %573 = vmatprep.mubr.bf16.mxu0 0
        %574 = vmatmul.mubr.bf16.gmra.mrb[0].mxu0 %v323
        %v575 = vpop.f32.mrb[0].mxu0
        %v576 = vadd.f32 0.0, %v575
        %v577 = vpop.f32.mrb[0].mxu0
        %v578 = vpop.f32.mrb[0].mxu0
        %v579 = vadd.f32 0.0, %v578
        %v580 = vpop.f32.mrb[0].mxu0
        %581 = vdwg.mxu0
        %v585 = vunpack.c.l.b16 %v266
        %v586 = vunpack.c.l.b16 %v267
        %v587 = vunpack.c.l.b16 %v268
        %v588 = vpack.c.b16 %v586, %v585
        %v589 = vpack.c.b16 %v587, %v587
        %v592 = vsel %vm325, %v589, 0
        %594 = vmatprep.subr.bf16.mxu0 0
        %595 = vmatpush1.bf16.msra.mxu0 %v588
        %596 = vmatprep.subr.bf16.mxu0 0
        %597 = vmatpush1.bf16.msra.mxu0 %v592
        %598 = vmatprep.subr.bf16.mxu0 0
        %599 = vmatpush1.bf16.msra.mxu0 0
        %600 = vmatprep.subr.bf16.mxu0 0
        %601 = vmatpush1.bf16.msra.mxu0 0
        %602 = vmatprep.subr.bf16.mxu0 0
        %603 = vmatpush1.bf16.msra.mxu0 0
        %604 = vmatprep.subr.bf16.mxu0 0
        %605 = vmatpush1.bf16.msra.mxu0 0
        %606 = vmatprep.subr.bf16.mxu0 0
        %607 = vmatpush1.bf16.msra.mxu0 0
        %608 = vmatprep.subr.bf16.mxu0 0
        %609 = vmatpush1.bf16.msra.mxu0 0
        %610 = vmatprep.subr.bf16.mxu0 0
        %611 = vmatpush1.bf16.msra.mxu0 0
        %612 = vmatprep.subr.bf16.mxu0 0
        %613 = vmatpush1.bf16.msra.mxu0 0
        %614 = vmatprep.subr.bf16.mxu0 0
        %615 = vmatpush1.bf16.msra.mxu0 0
        %616 = vmatprep.subr.bf16.mxu0 0
        %617 = vmatpush1.bf16.msra.mxu0 0
        %618 = vmatprep.subr.bf16.mxu0 0
        %619 = vmatpush1.bf16.msra.mxu0 0
        %620 = vmatprep.subr.bf16.mxu0 0
        %621 = vmatpush1.bf16.msra.mxu0 0
        %622 = vmatprep.subr.bf16.mxu0 0
        %623 = vmatpush1.bf16.msra.mxu0 0
        %624 = vmatprep.subr.bf16.mxu0 0
        %625 = vmatpush1.bf16.msra.mxu0 0
        %626 = vmatprep.mubr.bf16.mxu0 0
        %627 = vmatmul.mubr.bf16.gmra.mrb[0].mxu0 %v323
        %v628 = vpop.f32.mrb[0].mxu0
        %v629 = vadd.f32 0.0, %v628
        %v630 = vpop.f32.mrb[0].mxu0
        %v631 = vpop.f32.mrb[0].mxu0
        %v632 = vadd.f32 0.0, %v631
        %v633 = vpop.f32.mrb[0].mxu0
        %634 = vdwg.mxu0
        %v638 = vunpack.c.l.b16 %v269
        %v639 = vunpack.c.l.b16 %v270
        %v640 = vunpack.c.l.b16 %v271
        %v641 = vpack.c.b16 %v639, %v638
        %v642 = vpack.c.b16 %v640, %v640
        %v645 = vsel %vm325, %v642, 0
        %647 = vmatprep.subr.bf16.mxu0 0
        %648 = vmatpush1.bf16.msra.mxu0 %v641
        %649 = vmatprep.subr.bf16.mxu0 0
        %650 = vmatpush1.bf16.msra.mxu0 %v645
        %651 = vmatprep.subr.bf16.mxu0 0
        %652 = vmatpush1.bf16.msra.mxu0 0
        %653 = vmatprep.subr.bf16.mxu0 0
        %654 = vmatpush1.bf16.msra.mxu0 0
        %655 = vmatprep.subr.bf16.mxu0 0
        %656 = vmatpush1.bf16.msra.mxu0 0
        %657 = vmatprep.subr.bf16.mxu0 0
        %658 = vmatpush1.bf16.msra.mxu0 0
        %659 = vmatprep.subr.bf16.mxu0 0
        %660 = vmatpush1.bf16.msra.mxu0 0
        %661 = vmatprep.subr.bf16.mxu0 0
        %662 = vmatpush1.bf16.msra.mxu0 0
        %663 = vmatprep.subr.bf16.mxu0 0
        %664 = vmatpush1.bf16.msra.mxu0 0
        %665 = vmatprep.subr.bf16.mxu0 0
        %666 = vmatpush1.bf16.msra.mxu0 0
        %667 = vmatprep.subr.bf16.mxu0 0
        %668 = vmatpush1.bf16.msra.mxu0 0
        %669 = vmatprep.subr.bf16.mxu0 0
        %670 = vmatpush1.bf16.msra.mxu0 0
        %671 = vmatprep.subr.bf16.mxu0 0
        %672 = vmatpush1.bf16.msra.mxu0 0
        %673 = vmatprep.subr.bf16.mxu0 0
        %674 = vmatpush1.bf16.msra.mxu0 0
        %675 = vmatprep.subr.bf16.mxu0 0
        %676 = vmatpush1.bf16.msra.mxu0 0
        %677 = vmatprep.subr.bf16.mxu0 0
        %678 = vmatpush1.bf16.msra.mxu0 0
        %679 = vmatprep.mubr.bf16.mxu0 0
        %680 = vmatmul.mubr.bf16.gmra.mrb[0].mxu0 %v323
        %v681 = vpop.f32.mrb[0].mxu0
        %v682 = vadd.f32 0.0, %v681
        %v683 = vpop.f32.mrb[0].mxu0
        %v684 = vpop.f32.mrb[0].mxu0
        %v685 = vadd.f32 0.0, %v684
        %v686 = vpop.f32.mrb[0].mxu0
        %687 = vdwg.mxu0
        %v691 = vunpack.c.l.b16 %v272
        %v692 = vunpack.c.l.b16 %v273
        %v693 = vunpack.c.l.b16 %v274
        %v694 = vpack.c.b16 %v692, %v691
        %v695 = vpack.c.b16 %v693, %v693
        %v698 = vsel %vm325, %v695, 0
        %700 = vmatprep.subr.bf16.mxu0 0
        %701 = vmatpush1.bf16.msra.mxu0 %v694
        %702 = vmatprep.subr.bf16.mxu0 0
        %703 = vmatpush1.bf16.msra.mxu0 %v698
        %704 = vmatprep.subr.bf16.mxu0 0
        %705 = vmatpush1.bf16.msra.mxu0 0
        %706 = vmatprep.subr.bf16.mxu0 0
        %707 = vmatpush1.bf16.msra.mxu0 0
        %708 = vmatprep.subr.bf16.mxu0 0
        %709 = vmatpush1.bf16.msra.mxu0 0
        %710 = vmatprep.subr.bf16.mxu0 0
        %711 = vmatpush1.bf16.msra.mxu0 0
        %712 = vmatprep.subr.bf16.mxu0 0
        %713 = vmatpush1.bf16.msra.mxu0 0
        %714 = vmatprep.subr.bf16.mxu0 0
        %715 = vmatpush1.bf16.msra.mxu0 0
        %716 = vmatprep.subr.bf16.mxu0 0
        %717 = vmatpush1.bf16.msra.mxu0 0
        %718 = vmatprep.subr.bf16.mxu0 0
        %719 = vmatpush1.bf16.msra.mxu0 0
        %720 = vmatprep.subr.bf16.mxu0 0
        %721 = vmatpush1.bf16.msra.mxu0 0
        %722 = vmatprep.subr.bf16.mxu0 0
        %723 = vmatpush1.bf16.msra.mxu0 0
        %724 = vmatprep.subr.bf16.mxu0 0
        %725 = vmatpush1.bf16.msra.mxu0 0
        %726 = vmatprep.subr.bf16.mxu0 0
        %727 = vmatpush1.bf16.msra.mxu0 0
        %728 = vmatprep.subr.bf16.mxu0 0
        %729 = vmatpush1.bf16.msra.mxu0 0
        %730 = vmatprep.subr.bf16.mxu0 0
        %731 = vmatpush1.bf16.msra.mxu0 0
        %732 = vmatprep.mubr.bf16.mxu0 0
        %733 = vmatmul.mubr.bf16.gmra.mrb[0].mxu0 %v323
        %v734 = vpop.f32.mrb[0].mxu0
        %v735 = vadd.f32 0.0, %v734
        %v736 = vpop.f32.mrb[0].mxu0
        %v737 = vpop.f32.mrb[0].mxu0
        %v738 = vadd.f32 0.0, %v737
        %v739 = vpop.f32.mrb[0].mxu0
        %740 = vdwg.mxu0
        %v744 = vunpack.c.l.b16 %v275
        %v745 = vunpack.c.l.b16 %v276
        %v746 = vunpack.c.l.b16 %v277
        %v747 = vpack.c.b16 %v745, %v744
        %v748 = vpack.c.b16 %v746, %v746
        %v751 = vsel %vm325, %v748, 0
        %753 = vmatprep.subr.bf16.mxu0 0
        %754 = vmatpush1.bf16.msra.mxu0 %v747
        %755 = vmatprep.subr.bf16.mxu0 0
        %756 = vmatpush1.bf16.msra.mxu0 %v751
        %757 = vmatprep.subr.bf16.mxu0 0
        %758 = vmatpush1.bf16.msra.mxu0 0
        %759 = vmatprep.subr.bf16.mxu0 0
        %760 = vmatpush1.bf16.msra.mxu0 0
        %761 = vmatprep.subr.bf16.mxu0 0
        %762 = vmatpush1.bf16.msra.mxu0 0
        %763 = vmatprep.subr.bf16.mxu0 0
        %764 = vmatpush1.bf16.msra.mxu0 0
        %765 = vmatprep.subr.bf16.mxu0 0
        %766 = vmatpush1.bf16.msra.mxu0 0
        %767 = vmatprep.subr.bf16.mxu0 0
        %768 = vmatpush1.bf16.msra.mxu0 0
        %769 = vmatprep.subr.bf16.mxu0 0
        %770 = vmatpush1.bf16.msra.mxu0 0
        %771 = vmatprep.subr.bf16.mxu0 0
        %772 = vmatpush1.bf16.msra.mxu0 0
        %773 = vmatprep.subr.bf16.mxu0 0
        %774 = vmatpush1.bf16.msra.mxu0 0
        %775 = vmatprep.subr.bf16.mxu0 0
        %776 = vmatpush1.bf16.msra.mxu0 0
        %777 = vmatprep.subr.bf16.mxu0 0
        %778 = vmatpush1.bf16.msra.mxu0 0
        %779 = vmatprep.subr.bf16.mxu0 0
        %780 = vmatpush1.bf16.msra.mxu0 0
        %781 = vmatprep.subr.bf16.mxu0 0
        %782 = vmatpush1.bf16.msra.mxu0 0
        %783 = vmatprep.subr.bf16.mxu0 0
        %784 = vmatpush1.bf16.msra.mxu0 0
        %785 = vmatprep.mubr.bf16.mxu0 0
        %786 = vmatmul.mubr.bf16.gmra.mrb[0].mxu0 %v323
        %v787 = vpop.f32.mrb[0].mxu0
        %v788 = vadd.f32 0.0, %v787
        %v789 = vpop.f32.mrb[0].mxu0
        %v790 = vpop.f32.mrb[0].mxu0
        %v791 = vadd.f32 0.0, %v790
        %v792 = vpop.f32.mrb[0].mxu0
        %793 = vdwg.mxu0
        %v797 = vunpack.c.l.b16 %v278
        %v798 = vunpack.c.l.b16 %v279
        %v799 = vunpack.c.l.b16 %v280
        %v800 = vpack.c.b16 %v798, %v797
        %v801 = vpack.c.b16 %v799, %v799
        %v804 = vsel %vm325, %v801, 0
        %806 = vmatprep.subr.bf16.mxu0 0
        %807 = vmatpush1.bf16.msra.mxu0 %v800
        %808 = vmatprep.subr.bf16.mxu0 0
        %809 = vmatpush1.bf16.msra.mxu0 %v804
        %810 = vmatprep.subr.bf16.mxu0 0
        %811 = vmatpush1.bf16.msra.mxu0 0
        %812 = vmatprep.subr.bf16.mxu0 0
        %813 = vmatpush1.bf16.msra.mxu0 0
        %814 = vmatprep.subr.bf16.mxu0 0
        %815 = vmatpush1.bf16.msra.mxu0 0
        %816 = vmatprep.subr.bf16.mxu0 0
        %817 = vmatpush1.bf16.msra.mxu0 0
        %818 = vmatprep.subr.bf16.mxu0 0
        %819 = vmatpush1.bf16.msra.mxu0 0
        %820 = vmatprep.subr.bf16.mxu0 0
        %821 = vmatpush1.bf16.msra.mxu0 0
        %822 = vmatprep.subr.bf16.mxu0 0
        %823 = vmatpush1.bf16.msra.mxu0 0
        %824 = vmatprep.subr.bf16.mxu0 0
        %825 = vmatpush1.bf16.msra.mxu0 0
        %826 = vmatprep.subr.bf16.mxu0 0
        %827 = vmatpush1.bf16.msra.mxu0 0
        %828 = vmatprep.subr.bf16.mxu0 0
        %829 = vmatpush1.bf16.msra.mxu0 0
        %830 = vmatprep.subr.bf16.mxu0 0
        %831 = vmatpush1.bf16.msra.mxu0 0
        %832 = vmatprep.subr.bf16.mxu0 0
        %833 = vmatpush1.bf16.msra.mxu0 0
        %834 = vmatprep.subr.bf16.mxu0 0
        %835 = vmatpush1.bf16.msra.mxu0 0
        %836 = vmatprep.subr.bf16.mxu0 0
        %837 = vmatpush1.bf16.msra.mxu0 0
        %838 = vmatprep.mubr.bf16.mxu0 0
        %839 = vmatmul.mubr.bf16.gmra.mrb[0].mxu0 %v323
        %v840 = vpop.f32.mrb[0].mxu0
        %v841 = vadd.f32 0.0, %v840
        %v842 = vpop.f32.mrb[0].mxu0
        %v843 = vpop.f32.mrb[0].mxu0
        %v844 = vadd.f32 0.0, %v843
        %v845 = vpop.f32.mrb[0].mxu0
        %846 = vdwg.mxu0
        %v850 = vunpack.c.l.b16 %v281
        %v851 = vunpack.c.l.b16 %v282
        %v852 = vunpack.c.l.b16 %v283
        %v853 = vpack.c.b16 %v851, %v850
        %v854 = vpack.c.b16 %v852, %v852
        %v857 = vsel %vm325, %v854, 0
        %859 = vmatprep.subr.bf16.mxu0 0
        %860 = vmatpush1.bf16.msra.mxu0 %v853
        %861 = vmatprep.subr.bf16.mxu0 0
        %862 = vmatpush1.bf16.msra.mxu0 %v857
        %863 = vmatprep.subr.bf16.mxu0 0
        %864 = vmatpush1.bf16.msra.mxu0 0
        %865 = vmatprep.subr.bf16.mxu0 0
        %866 = vmatpush1.bf16.msra.mxu0 0
        %867 = vmatprep.subr.bf16.mxu0 0
        %868 = vmatpush1.bf16.msra.mxu0 0
        %869 = vmatprep.subr.bf16.mxu0 0
        %870 = vmatpush1.bf16.msra.mxu0 0
        %871 = vmatprep.subr.bf16.mxu0 0
        %872 = vmatpush1.bf16.msra.mxu0 0
        %873 = vmatprep.subr.bf16.mxu0 0
        %874 = vmatpush1.bf16.msra.mxu0 0
        %875 = vmatprep.subr.bf16.mxu0 0
        %876 = vmatpush1.bf16.msra.mxu0 0
        %877 = vmatprep.subr.bf16.mxu0 0
        %878 = vmatpush1.bf16.msra.mxu0 0
        %879 = vmatprep.subr.bf16.mxu0 0
        %880 = vmatpush1.bf16.msra.mxu0 0
        %881 = vmatprep.subr.bf16.mxu0 0
        %882 = vmatpush1.bf16.msra.mxu0 0
        %883 = vmatprep.subr.bf16.mxu0 0
        %884 = vmatpush1.bf16.msra.mxu0 0
        %885 = vmatprep.subr.bf16.mxu0 0
        %886 = vmatpush1.bf16.msra.mxu0 0
        %887 = vmatprep.subr.bf16.mxu0 0
        %888 = vmatpush1.bf16.msra.mxu0 0
        %889 = vmatprep.subr.bf16.mxu0 0
        %890 = vmatpush1.bf16.msra.mxu0 0
        %891 = vmatprep.mubr.bf16.mxu0 0
        %892 = vmatmul.mubr.bf16.gmra.mrb[0].mxu0 %v323
        %v893 = vpop.f32.mrb[0].mxu0
        %v894 = vadd.f32 0.0, %v893
        %v895 = vpop.f32.mrb[0].mxu0
        %v896 = vpop.f32.mrb[0].mxu0
        %v897 = vadd.f32 0.0, %v896
        %v898 = vpop.f32.mrb[0].mxu0
        %899 = vdwg.mxu0
        %v903 = vunpack.c.l.b16 %v284
        %v904 = vunpack.c.l.b16 %v285
        %v905 = vunpack.c.l.b16 %v286
        %v906 = vpack.c.b16 %v904, %v903
        %v907 = vpack.c.b16 %v905, %v905
        %v910 = vsel %vm325, %v907, 0
        %912 = vmatprep.subr.bf16.mxu0 0
        %913 = vmatpush1.bf16.msra.mxu0 %v906
        %914 = vmatprep.subr.bf16.mxu0 0
        %915 = vmatpush1.bf16.msra.mxu0 %v910
        %916 = vmatprep.subr.bf16.mxu0 0
        %917 = vmatpush1.bf16.msra.mxu0 0
        %918 = vmatprep.subr.bf16.mxu0 0
        %919 = vmatpush1.bf16.msra.mxu0 0
        %920 = vmatprep.subr.bf16.mxu0 0
        %921 = vmatpush1.bf16.msra.mxu0 0
        %922 = vmatprep.subr.bf16.mxu0 0
        %923 = vmatpush1.bf16.msra.mxu0 0
        %924 = vmatprep.subr.bf16.mxu0 0
        %925 = vmatpush1.bf16.msra.mxu0 0
        %926 = vmatprep.subr.bf16.mxu0 0
        %927 = vmatpush1.bf16.msra.mxu0 0
        %928 = vmatprep.subr.bf16.mxu0 0
        %929 = vmatpush1.bf16.msra.mxu0 0
        %930 = vmatprep.subr.bf16.mxu0 0
        %931 = vmatpush1.bf16.msra.mxu0 0
        %932 = vmatprep.subr.bf16.mxu0 0
        %933 = vmatpush1.bf16.msra.mxu0 0
        %934 = vmatprep.subr.bf16.mxu0 0
        %935 = vmatpush1.bf16.msra.mxu0 0
        %936 = vmatprep.subr.bf16.mxu0 0
        %937 = vmatpush1.bf16.msra.mxu0 0
        %938 = vmatprep.subr.bf16.mxu0 0
        %939 = vmatpush1.bf16.msra.mxu0 0
        %940 = vmatprep.subr.bf16.mxu0 0
        %941 = vmatpush1.bf16.msra.mxu0 0
        %942 = vmatprep.subr.bf16.mxu0 0
        %943 = vmatpush1.bf16.msra.mxu0 0
        %944 = vmatprep.mubr.bf16.mxu0 0
        %945 = vmatmul.mubr.bf16.gmra.mrb[0].mxu0 %v323
        %v946 = vpop.f32.mrb[0].mxu0
        %v947 = vadd.f32 0.0, %v946
        %v948 = vpop.f32.mrb[0].mxu0
        %v949 = vpop.f32.mrb[0].mxu0
        %v950 = vadd.f32 0.0, %v949
        %v951 = vpop.f32.mrb[0].mxu0
        %952 = vdwg.mxu0
        %v956 = vunpack.c.l.b16 %v287
        %v957 = vunpack.c.l.b16 %v288
        %v958 = vunpack.c.l.b16 %v289
        %v959 = vpack.c.b16 %v957, %v956
        %v960 = vpack.c.b16 %v958, %v958
        %v963 = vsel %vm325, %v960, 0
        %965 = vmatprep.subr.bf16.mxu0 0
        %966 = vmatpush1.bf16.msra.mxu0 %v959
        %967 = vmatprep.subr.bf16.mxu0 0
        %968 = vmatpush1.bf16.msra.mxu0 %v963
        %969 = vmatprep.subr.bf16.mxu0 0
        %970 = vmatpush1.bf16.msra.mxu0 0
        %971 = vmatprep.subr.bf16.mxu0 0
        %972 = vmatpush1.bf16.msra.mxu0 0
        %973 = vmatprep.subr.bf16.mxu0 0
        %974 = vmatpush1.bf16.msra.mxu0 0
        %975 = vmatprep.subr.bf16.mxu0 0
        %976 = vmatpush1.bf16.msra.mxu0 0
        %977 = vmatprep.subr.bf16.mxu0 0
        %978 = vmatpush1.bf16.msra.mxu0 0
        %979 = vmatprep.subr.bf16.mxu0 0
        %980 = vmatpush1.bf16.msra.mxu0 0
        %981 = vmatprep.subr.bf16.mxu0 0
        %982 = vmatpush1.bf16.msra.mxu0 0
        %983 = vmatprep.subr.bf16.mxu0 0
        %984 = vmatpush1.bf16.msra.mxu0 0
        %985 = vmatprep.subr.bf16.mxu0 0
        %986 = vmatpush1.bf16.msra.mxu0 0
        %987 = vmatprep.subr.bf16.mxu0 0
        %988 = vmatpush1.bf16.msra.mxu0 0
        %989 = vmatprep.subr.bf16.mxu0 0
        %990 = vmatpush1.bf16.msra.mxu0 0
        %991 = vmatprep.subr.bf16.mxu0 0
        %992 = vmatpush1.bf16.msra.mxu0 0
        %993 = vmatprep.subr.bf16.mxu0 0
        %994 = vmatpush1.bf16.msra.mxu0 0
        %995 = vmatprep.subr.bf16.mxu0 0
        %996 = vmatpush1.bf16.msra.mxu0 0
        %997 = vmatprep.mubr.bf16.mxu0 0
        %998 = vmatmul.mubr.bf16.gmra.mrb[0].mxu0 %v323
        %v999 = vpop.f32.mrb[0].mxu0
        %v1000 = vadd.f32 0.0, %v999
        %v1001 = vpop.f32.mrb[0].mxu0
        %v1002 = vpop.f32.mrb[0].mxu0
        %v1003 = vadd.f32 0.0, %v1002
        %v1004 = vpop.f32.mrb[0].mxu0
        %1005 = vdwg.mxu0
        %v1009 = vunpack.c.l.b16 %v290
        %v1010 = vunpack.c.l.b16 %v291
        %v1011 = vunpack.c.l.b16 %v292
        %v1012 = vpack.c.b16 %v1010, %v1009
        %v1013 = vpack.c.b16 %v1011, %v1011
        %v1016 = vsel %vm325, %v1013, 0
        %1018 = vmatprep.subr.bf16.mxu0 0
        %1019 = vmatpush1.bf16.msra.mxu0 %v1012
        %1020 = vmatprep.subr.bf16.mxu0 0
        %1021 = vmatpush1.bf16.msra.mxu0 %v1016
        %1022 = vmatprep.subr.bf16.mxu0 0
        %1023 = vmatpush1.bf16.msra.mxu0 0
        %1024 = vmatprep.subr.bf16.mxu0 0
        %1025 = vmatpush1.bf16.msra.mxu0 0
        %1026 = vmatprep.subr.bf16.mxu0 0
        %1027 = vmatpush1.bf16.msra.mxu0 0
        %1028 = vmatprep.subr.bf16.mxu0 0
        %1029 = vmatpush1.bf16.msra.mxu0 0
        %1030 = vmatprep.subr.bf16.mxu0 0
        %1031 = vmatpush1.bf16.msra.mxu0 0
        %1032 = vmatprep.subr.bf16.mxu0 0
        %1033 = vmatpush1.bf16.msra.mxu0 0
        %1034 = vmatprep.subr.bf16.mxu0 0
        %1035 = vmatpush1.bf16.msra.mxu0 0
        %1036 = vmatprep.subr.bf16.mxu0 0
        %1037 = vmatpush1.bf16.msra.mxu0 0
        %1038 = vmatprep.subr.bf16.mxu0 0
        %1039 = vmatpush1.bf16.msra.mxu0 0
        %1040 = vmatprep.subr.bf16.mxu0 0
        %1041 = vmatpush1.bf16.msra.mxu0 0
        %1042 = vmatprep.subr.bf16.mxu0 0
        %1043 = vmatpush1.bf16.msra.mxu0 0
        %1044 = vmatprep.subr.bf16.mxu0 0
        %1045 = vmatpush1.bf16.msra.mxu0 0
        %1046 = vmatprep.subr.bf16.mxu0 0
        %1047 = vmatpush1.bf16.msra.mxu0 0
        %1048 = vmatprep.subr.bf16.mxu0 0
        %1049 = vmatpush1.bf16.msra.mxu0 0
        %1050 = vmatprep.mubr.bf16.mxu0 0
        %1051 = vmatmul.mubr.bf16.gmra.mrb[0].mxu0 %v323
        %v1052 = vpop.f32.mrb[0].mxu0
        %v1053 = vadd.f32 0.0, %v1052
        %v1054 = vpop.f32.mrb[0].mxu0
        %v1055 = vpop.f32.mrb[0].mxu0
        %v1056 = vadd.f32 0.0, %v1055
        %v1057 = vpop.f32.mrb[0].mxu0
        %1058 = vdwg.mxu0
        %v1062 = vunpack.c.l.b16 %v293
        %v1063 = vunpack.c.l.b16 %v294
        %v1064 = vunpack.c.l.b16 %v295
        %v1065 = vpack.c.b16 %v1063, %v1062
        %v1066 = vpack.c.b16 %v1064, %v1064
        %v1069 = vsel %vm325, %v1066, 0
        %1071 = vmatprep.subr.bf16.mxu0 0
        %1072 = vmatpush1.bf16.msra.mxu0 %v1065
        %1073 = vmatprep.subr.bf16.mxu0 0
        %1074 = vmatpush1.bf16.msra.mxu0 %v1069
        %1075 = vmatprep.subr.bf16.mxu0 0
        %1076 = vmatpush1.bf16.msra.mxu0 0
        %1077 = vmatprep.subr.bf16.mxu0 0
        %1078 = vmatpush1.bf16.msra.mxu0 0
        %1079 = vmatprep.subr.bf16.mxu0 0
        %1080 = vmatpush1.bf16.msra.mxu0 0
        %1081 = vmatprep.subr.bf16.mxu0 0
        %1082 = vmatpush1.bf16.msra.mxu0 0
        %1083 = vmatprep.subr.bf16.mxu0 0
        %1084 = vmatpush1.bf16.msra.mxu0 0
        %1085 = vmatprep.subr.bf16.mxu0 0
        %1086 = vmatpush1.bf16.msra.mxu0 0
        %1087 = vmatprep.subr.bf16.mxu0 0
        %1088 = vmatpush1.bf16.msra.mxu0 0
        %1089 = vmatprep.subr.bf16.mxu0 0
        %1090 = vmatpush1.bf16.msra.mxu0 0
        %1091 = vmatprep.subr.bf16.mxu0 0
        %1092 = vmatpush1.bf16.msra.mxu0 0
        %1093 = vmatprep.subr.bf16.mxu0 0
        %1094 = vmatpush1.bf16.msra.mxu0 0
        %1095 = vmatprep.subr.bf16.mxu0 0
        %1096 = vmatpush1.bf16.msra.mxu0 0
        %1097 = vmatprep.subr.bf16.mxu0 0
        %1098 = vmatpush1.bf16.msra.mxu0 0
        %1099 = vmatprep.subr.bf16.mxu0 0
        %1100 = vmatpush1.bf16.msra.mxu0 0
        %1101 = vmatprep.subr.bf16.mxu0 0
        %1102 = vmatpush1.bf16.msra.mxu0 0
        %1103 = vmatprep.mubr.bf16.mxu0 0
        %1104 = vmatmul.mubr.bf16.gmra.mrb[0].mxu0 %v323
        %v1105 = vpop.f32.mrb[0].mxu0
        %v1106 = vadd.f32 0.0, %v1105
        %v1107 = vpop.f32.mrb[0].mxu0
        %v1108 = vpop.f32.mrb[0].mxu0
        %v1109 = vadd.f32 0.0, %v1108
        %v1110 = vpop.f32.mrb[0].mxu0
        %1111 = vdwg.mxu0
        %v1115 = vunpack.c.l.b16 %v296
        %v1116 = vunpack.c.l.b16 %v297
        %v1117 = vunpack.c.l.b16 %v298
        %v1118 = vpack.c.b16 %v1116, %v1115
        %v1119 = vpack.c.b16 %v1117, %v1117
        %v1122 = vsel %vm325, %v1119, 0
        %1124 = vmatprep.subr.bf16.mxu0 0
        %1125 = vmatpush1.bf16.msra.mxu0 %v1118
        %1126 = vmatprep.subr.bf16.mxu0 0
        %1127 = vmatpush1.bf16.msra.mxu0 %v1122
        %1128 = vmatprep.subr.bf16.mxu0 0
        %1129 = vmatpush1.bf16.msra.mxu0 0
        %1130 = vmatprep.subr.bf16.mxu0 0
        %1131 = vmatpush1.bf16.msra.mxu0 0
        %1132 = vmatprep.subr.bf16.mxu0 0
        %1133 = vmatpush1.bf16.msra.mxu0 0
        %1134 = vmatprep.subr.bf16.mxu0 0
        %1135 = vmatpush1.bf16.msra.mxu0 0
        %1136 = vmatprep.subr.bf16.mxu0 0
        %1137 = vmatpush1.bf16.msra.mxu0 0
        %1138 = vmatprep.subr.bf16.mxu0 0
        %1139 = vmatpush1.bf16.msra.mxu0 0
        %1140 = vmatprep.subr.bf16.mxu0 0
        %1141 = vmatpush1.bf16.msra.mxu0 0
        %1142 = vmatprep.subr.bf16.mxu0 0
        %1143 = vmatpush1.bf16.msra.mxu0 0
        %1144 = vmatprep.subr.bf16.mxu0 0
        %1145 = vmatpush1.bf16.msra.mxu0 0
        %1146 = vmatprep.subr.bf16.mxu0 0
        %1147 = vmatpush1.bf16.msra.mxu0 0
        %1148 = vmatprep.subr.bf16.mxu0 0
        %1149 = vmatpush1.bf16.msra.mxu0 0
        %1150 = vmatprep.subr.bf16.mxu0 0
        %1151 = vmatpush1.bf16.msra.mxu0 0
        %1152 = vmatprep.subr.bf16.mxu0 0
        %1153 = vmatpush1.bf16.msra.mxu0 0
        %1154 = vmatprep.subr.bf16.mxu0 0
        %1155 = vmatpush1.bf16.msra.mxu0 0
        %1156 = vmatprep.mubr.bf16.mxu0 0
        %1157 = vmatmul.mubr.bf16.gmra.mrb[0].mxu0 %v323
        %v1158 = vpop.f32.mrb[0].mxu0
        %v1159 = vadd.f32 0.0, %v1158
        %v1160 = vpop.f32.mrb[0].mxu0
        %v1161 = vpop.f32.mrb[0].mxu0
        %v1162 = vadd.f32 0.0, %v1161
        %v1163 = vpop.f32.mrb[0].mxu0
        %1164 = vdwg.mxu0
        %v1168 = vunpack.c.l.b16 %v299
        %v1169 = vunpack.c.l.b16 %v300
        %v1170 = vunpack.c.l.b16 %v301
        %v1171 = vpack.c.b16 %v1169, %v1168
        %v1172 = vpack.c.b16 %v1170, %v1170
        %v1175 = vsel %vm325, %v1172, 0
        %1177 = vmatprep.subr.bf16.mxu0 0
        %1178 = vmatpush1.bf16.msra.mxu0 %v1171
        %1179 = vmatprep.subr.bf16.mxu0 0
        %1180 = vmatpush1.bf16.msra.mxu0 %v1175
        %1181 = vmatprep.subr.bf16.mxu0 0
        %1182 = vmatpush1.bf16.msra.mxu0 0
        %1183 = vmatprep.subr.bf16.mxu0 0
        %1184 = vmatpush1.bf16.msra.mxu0 0
        %1185 = vmatprep.subr.bf16.mxu0 0
        %1186 = vmatpush1.bf16.msra.mxu0 0
        %1187 = vmatprep.subr.bf16.mxu0 0
        %1188 = vmatpush1.bf16.msra.mxu0 0
        %1189 = vmatprep.subr.bf16.mxu0 0
        %1190 = vmatpush1.bf16.msra.mxu0 0
        %1191 = vmatprep.subr.bf16.mxu0 0
        %1192 = vmatpush1.bf16.msra.mxu0 0
        %1193 = vmatprep.subr.bf16.mxu0 0
        %1194 = vmatpush1.bf16.msra.mxu0 0
        %1195 = vmatprep.subr.bf16.mxu0 0
        %1196 = vmatpush1.bf16.msra.mxu0 0
        %1197 = vmatprep.subr.bf16.mxu0 0
        %1198 = vmatpush1.bf16.msra.mxu0 0
        %1199 = vmatprep.subr.bf16.mxu0 0
        %1200 = vmatpush1.bf16.msra.mxu0 0
        %1201 = vmatprep.subr.bf16.mxu0 0
        %1202 = vmatpush1.bf16.msra.mxu0 0
        %1203 = vmatprep.subr.bf16.mxu0 0
        %1204 = vmatpush1.bf16.msra.mxu0 0
        %1205 = vmatprep.subr.bf16.mxu0 0
        %1206 = vmatpush1.bf16.msra.mxu0 0
        %1207 = vmatprep.subr.bf16.mxu0 0
        %1208 = vmatpush1.bf16.msra.mxu0 0
        %1209 = vmatprep.mubr.bf16.mxu0 0
        %1210 = vmatmul.mubr.bf16.gmra.mrb[0].mxu0 %v323
        %v1211 = vpop.f32.mrb[0].mxu0
        %v1212 = vadd.f32 0.0, %v1211
        %v1213 = vpop.f32.mrb[0].mxu0
        %v1214 = vpop.f32.mrb[0].mxu0
        %v1215 = vadd.f32 0.0, %v1214
        %v1216 = vpop.f32.mrb[0].mxu0
        %1217 = vdwg.mxu0
        %v1221 = vunpack.c.l.b16 %v302
        %v1222 = vunpack.c.l.b16 %v303
        %v1223 = vunpack.c.l.b16 %v304
        %v1224 = vpack.c.b16 %v1222, %v1221
        %v1225 = vpack.c.b16 %v1223, %v1223
        %v1228 = vsel %vm325, %v1225, 0
        %1230 = vmatprep.subr.bf16.mxu0 0
        %1231 = vmatpush1.bf16.msra.mxu0 %v1224
        %1232 = vmatprep.subr.bf16.mxu0 0
        %1233 = vmatpush1.bf16.msra.mxu0 %v1228
        %1234 = vmatprep.subr.bf16.mxu0 0
        %1235 = vmatpush1.bf16.msra.mxu0 0
        %1236 = vmatprep.subr.bf16.mxu0 0
        %1237 = vmatpush1.bf16.msra.mxu0 0
        %1238 = vmatprep.subr.bf16.mxu0 0
        %1239 = vmatpush1.bf16.msra.mxu0 0
        %1240 = vmatprep.subr.bf16.mxu0 0
        %1241 = vmatpush1.bf16.msra.mxu0 0
        %1242 = vmatprep.subr.bf16.mxu0 0
        %1243 = vmatpush1.bf16.msra.mxu0 0
        %1244 = vmatprep.subr.bf16.mxu0 0
        %1245 = vmatpush1.bf16.msra.mxu0 0
        %1246 = vmatprep.subr.bf16.mxu0 0
        %1247 = vmatpush1.bf16.msra.mxu0 0
        %1248 = vmatprep.subr.bf16.mxu0 0
        %1249 = vmatpush1.bf16.msra.mxu0 0
        %1250 = vmatprep.subr.bf16.mxu0 0
        %1251 = vmatpush1.bf16.msra.mxu0 0
        %1252 = vmatprep.subr.bf16.mxu0 0
        %1253 = vmatpush1.bf16.msra.mxu0 0
        %1254 = vmatprep.subr.bf16.mxu0 0
        %1255 = vmatpush1.bf16.msra.mxu0 0
        %1256 = vmatprep.subr.bf16.mxu0 0
        %1257 = vmatpush1.bf16.msra.mxu0 0
        %1258 = vmatprep.subr.bf16.mxu0 0
        %1259 = vmatpush1.bf16.msra.mxu0 0
        %1260 = vmatprep.subr.bf16.mxu0 0
        %1261 = vmatpush1.bf16.msra.mxu0 0
        %1262 = vmatprep.mubr.bf16.mxu0 0
        %1263 = vmatmul.mubr.bf16.gmra.mrb[0].mxu0 %v323
        %v1264 = vpop.f32.mrb[0].mxu0
        %v1265 = vadd.f32 0.0, %v1264
        %v1266 = vpop.f32.mrb[0].mxu0
        %v1267 = vpop.f32.mrb[0].mxu0
        %v1268 = vadd.f32 0.0, %v1267
        %v1269 = vpop.f32.mrb[0].mxu0
        %1270 = vdwg.mxu0
        %v1271 = vld [vmem:[%s2] sm:$0xf]
        %v1272 = vld [vmem:[%s2 + $0x4] sm:$0xf]
        %v1273 = vld [vmem:[%s2 + $0x8] sm:$0xf]
        %v1274 = vpack.c.bf16 %v367, %v364
        %v1275 = vpack.c.bf16 %v420, %v417
        %v1276 = vpack.c.bf16 %v473, %v470
        %v1277 = vpack.c.bf16 %v526, %v523
        %v1278 = vpack.c.bf16 %v579, %v576
        %v1279 = vpack.c.bf16 %v632, %v629
        %v1280 = vpack.c.bf16 %v685, %v682
        %v1281 = vpack.c.bf16 %v738, %v735
        %v1282 = vpack.c.bf16 %v791, %v788
        %v1283 = vpack.c.bf16 %v844, %v841
        %v1284 = vpack.c.bf16 %v897, %v894
        %v1285 = vpack.c.bf16 %v950, %v947
        %v1286 = vpack.c.bf16 %v1003, %v1000
        %v1287 = vpack.c.bf16 %v1056, %v1053
        %v1288 = vpack.c.bf16 %v1109, %v1106
        %v1289 = vpack.c.bf16 %v1162, %v1159
        %v1290 = vpack.c.bf16 %v1215, %v1212
        %v1291 = vpack.c.bf16 %v1268, %v1265
        %v1295 = vunpack.c.l.b16 %v1271
        %v1296 = vunpack.c.l.b16 %v1272
        %v1297 = vunpack.c.l.b16 %v1273
        %v1298 = vpack.c.b16 %v1296, %v1295
        %v1299 = vpack.c.b16 %v1297, %v1297
        %vm1301 = vcmask 195584
        %v1303 = vsel %vm1301, %v1274, 0
        %vm1305 = vcmask 1043456
        %v1307 = vsel %vm1305, %v1299, 0
        %1309 = vmatprep.subr.bf16.mxu0 0
        %1310 = vmatpush1.bf16.msra.mxu0 %v1298
        %1311 = vmatprep.subr.bf16.mxu0 0
        %1312 = vmatpush1.bf16.msra.mxu0 %v1307
        %1313 = vmatprep.subr.bf16.mxu0 0
        %1314 = vmatpush1.bf16.msra.mxu0 0
        %1315 = vmatprep.subr.bf16.mxu0 0
        %1316 = vmatpush1.bf16.msra.mxu0 0
        %1317 = vmatprep.subr.bf16.mxu0 0
        %1318 = vmatpush1.bf16.msra.mxu0 0
        %1319 = vmatprep.subr.bf16.mxu0 0
        %1320 = vmatpush1.bf16.msra.mxu0 0
        %1321 = vmatprep.subr.bf16.mxu0 0
        %1322 = vmatpush1.bf16.msra.mxu0 0
        %1323 = vmatprep.subr.bf16.mxu0 0
        %1324 = vmatpush1.bf16.msra.mxu0 0
        %1325 = vmatprep.subr.bf16.mxu0 0
        %1326 = vmatpush1.bf16.msra.mxu0 0
        %1327 = vmatprep.subr.bf16.mxu0 0
        %1328 = vmatpush1.bf16.msra.mxu0 0
        %1329 = vmatprep.subr.bf16.mxu0 0
        %1330 = vmatpush1.bf16.msra.mxu0 0
        %1331 = vmatprep.subr.bf16.mxu0 0
        %1332 = vmatpush1.bf16.msra.mxu0 0
        %1333 = vmatprep.subr.bf16.mxu0 0
        %1334 = vmatpush1.bf16.msra.mxu0 0
        %1335 = vmatprep.subr.bf16.mxu0 0
        %1336 = vmatpush1.bf16.msra.mxu0 0
        %1337 = vmatprep.subr.bf16.mxu0 0
        %1338 = vmatpush1.bf16.msra.mxu0 0
        %1339 = vmatprep.subr.bf16.mxu0 0
        %1340 = vmatpush1.bf16.msra.mxu0 0
        %1341 = vmatprep.mubr.bf16.mxu0 0
        %1342 = vmatmul.mubr.bf16.gmra.mrb[0].mxu0 %v1303
        %v1343 = vpop.f32.mrb[0].mxu0
        %v1344 = vadd.f32 0.0, %v1343
        %v1345 = vpop.f32.mrb[0].mxu0
        %v1346 = vpop.f32.mrb[0].mxu0
        %v1347 = vadd.f32 0.0, %v1346
        %v1348 = vpop.f32.mrb[0].mxu0
        %1349 = vdwg.mxu0
        %v1351 = vsel %vm1301, %v1275, 0
        %1353 = vmatprep.subr.bf16.mxu0 0
        %1354 = vmatpush1.bf16.msra.mxu0 %v1298
        %1355 = vmatprep.subr.bf16.mxu0 0
        %1356 = vmatpush1.bf16.msra.mxu0 %v1307
        %1357 = vmatprep.subr.bf16.mxu0 0
        %1358 = vmatpush1.bf16.msra.mxu0 0
        %1359 = vmatprep.subr.bf16.mxu0 0
        %1360 = vmatpush1.bf16.msra.mxu0 0
        %1361 = vmatprep.subr.bf16.mxu0 0
        %1362 = vmatpush1.bf16.msra.mxu0 0
        %1363 = vmatprep.subr.bf16.mxu0 0
        %1364 = vmatpush1.bf16.msra.mxu0 0
        %1365 = vmatprep.subr.bf16.mxu0 0
        %1366 = vmatpush1.bf16.msra.mxu0 0
        %1367 = vmatprep.subr.bf16.mxu0 0
        %1368 = vmatpush1.bf16.msra.mxu0 0
        %1369 = vmatprep.subr.bf16.mxu0 0
        %1370 = vmatpush1.bf16.msra.mxu0 0
        %1371 = vmatprep.subr.bf16.mxu0 0
        %1372 = vmatpush1.bf16.msra.mxu0 0
        %1373 = vmatprep.subr.bf16.mxu0 0
        %1374 = vmatpush1.bf16.msra.mxu0 0
        %1375 = vmatprep.subr.bf16.mxu0 0
        %1376 = vmatpush1.bf16.msra.mxu0 0
        %1377 = vmatprep.subr.bf16.mxu0 0
        %1378 = vmatpush1.bf16.msra.mxu0 0
        %1379 = vmatprep.subr.bf16.mxu0 0
        %1380 = vmatpush1.bf16.msra.mxu0 0
        %1381 = vmatprep.subr.bf16.mxu0 0
        %1382 = vmatpush1.bf16.msra.mxu0 0
        %1383 = vmatprep.subr.bf16.mxu0 0
        %1384 = vmatpush1.bf16.msra.mxu0 0
        %1385 = vmatprep.mubr.bf16.mxu0 0
        %1386 = vmatmul.mubr.bf16.gmra.mrb[0].mxu0 %v1351
        %v1387 = vpop.f32.mrb[0].mxu0
        %v1388 = vadd.f32 0.0, %v1387
        %v1389 = vpop.f32.mrb[0].mxu0
        %v1390 = vpop.f32.mrb[0].mxu0
        %v1391 = vadd.f32 0.0, %v1390
        %v1392 = vpop.f32.mrb[0].mxu0
        %1393 = vdwg.mxu0
        %v1395 = vsel %vm1301, %v1276, 0
        %1397 = vmatprep.subr.bf16.mxu0 0
        %1398 = vmatpush1.bf16.msra.mxu0 %v1298
        %1399 = vmatprep.subr.bf16.mxu0 0
        %1400 = vmatpush1.bf16.msra.mxu0 %v1307
        %1401 = vmatprep.subr.bf16.mxu0 0
        %1402 = vmatpush1.bf16.msra.mxu0 0
        %1403 = vmatprep.subr.bf16.mxu0 0
        %1404 = vmatpush1.bf16.msra.mxu0 0
        %1405 = vmatprep.subr.bf16.mxu0 0
        %1406 = vmatpush1.bf16.msra.mxu0 0
        %1407 = vmatprep.subr.bf16.mxu0 0
        %1408 = vmatpush1.bf16.msra.mxu0 0
        %1409 = vmatprep.subr.bf16.mxu0 0
        %1410 = vmatpush1.bf16.msra.mxu0 0
        %1411 = vmatprep.subr.bf16.mxu0 0
        %1412 = vmatpush1.bf16.msra.mxu0 0
        %1413 = vmatprep.subr.bf16.mxu0 0
        %1414 = vmatpush1.bf16.msra.mxu0 0
        %1415 = vmatprep.subr.bf16.mxu0 0
        %1416 = vmatpush1.bf16.msra.mxu0 0
        %1417 = vmatprep.subr.bf16.mxu0 0
        %1418 = vmatpush1.bf16.msra.mxu0 0
        %1419 = vmatprep.subr.bf16.mxu0 0
        %1420 = vmatpush1.bf16.msra.mxu0 0
        %1421 = vmatprep.subr.bf16.mxu0 0
        %1422 = vmatpush1.bf16.msra.mxu0 0
        %1423 = vmatprep.subr.bf16.mxu0 0
        %1424 = vmatpush1.bf16.msra.mxu0 0
        %1425 = vmatprep.subr.bf16.mxu0 0
        %1426 = vmatpush1.bf16.msra.mxu0 0
        %1427 = vmatprep.subr.bf16.mxu0 0
        %1428 = vmatpush1.bf16.msra.mxu0 0
        %1429 = vmatprep.mubr.bf16.mxu0 0
        %1430 = vmatmul.mubr.bf16.gmra.mrb[0].mxu0 %v1395
        %v1431 = vpop.f32.mrb[0].mxu0
        %v1432 = vadd.f32 0.0, %v1431
        %v1433 = vpop.f32.mrb[0].mxu0
        %v1434 = vpop.f32.mrb[0].mxu0
        %v1435 = vadd.f32 0.0, %v1434
        %v1436 = vpop.f32.mrb[0].mxu0
        %1437 = vdwg.mxu0
        %v1439 = vsel %vm1301, %v1277, 0
        %1441 = vmatprep.subr.bf16.mxu0 0
        %1442 = vmatpush1.bf16.msra.mxu0 %v1298
        %1443 = vmatprep.subr.bf16.mxu0 0
        %1444 = vmatpush1.bf16.msra.mxu0 %v1307
        %1445 = vmatprep.subr.bf16.mxu0 0
        %1446 = vmatpush1.bf16.msra.mxu0 0
        %1447 = vmatprep.subr.bf16.mxu0 0
        %1448 = vmatpush1.bf16.msra.mxu0 0
        %1449 = vmatprep.subr.bf16.mxu0 0
        %1450 = vmatpush1.bf16.msra.mxu0 0
        %1451 = vmatprep.subr.bf16.mxu0 0
        %1452 = vmatpush1.bf16.msra.mxu0 0
        %1453 = vmatprep.subr.bf16.mxu0 0
        %1454 = vmatpush1.bf16.msra.mxu0 0
        %1455 = vmatprep.subr.bf16.mxu0 0
        %1456 = vmatpush1.bf16.msra.mxu0 0
        %1457 = vmatprep.subr.bf16.mxu0 0
        %1458 = vmatpush1.bf16.msra.mxu0 0
        %1459 = vmatprep.subr.bf16.mxu0 0
        %1460 = vmatpush1.bf16.msra.mxu0 0
        %1461 = vmatprep.subr.bf16.mxu0 0
        %1462 = vmatpush1.bf16.msra.mxu0 0
        %1463 = vmatprep.subr.bf16.mxu0 0
        %1464 = vmatpush1.bf16.msra.mxu0 0
        %1465 = vmatprep.subr.bf16.mxu0 0
        %1466 = vmatpush1.bf16.msra.mxu0 0
        %1467 = vmatprep.subr.bf16.mxu0 0
        %1468 = vmatpush1.bf16.msra.mxu0 0
        %1469 = vmatprep.subr.bf16.mxu0 0
        %1470 = vmatpush1.bf16.msra.mxu0 0
        %1471 = vmatprep.subr.bf16.mxu0 0
        %1472 = vmatpush1.bf16.msra.mxu0 0
        %1473 = vmatprep.mubr.bf16.mxu0 0
        %1474 = vmatmul.mubr.bf16.gmra.mrb[0].mxu0 %v1439
        %v1475 = vpop.f32.mrb[0].mxu0
        %v1476 = vadd.f32 0.0, %v1475
        %v1477 = vpop.f32.mrb[0].mxu0
        %v1478 = vpop.f32.mrb[0].mxu0
        %v1479 = vadd.f32 0.0, %v1478
        %v1480 = vpop.f32.mrb[0].mxu0
        %1481 = vdwg.mxu0
        %v1483 = vsel %vm1301, %v1278, 0
        %1485 = vmatprep.subr.bf16.mxu0 0
        %1486 = vmatpush1.bf16.msra.mxu0 %v1298
        %1487 = vmatprep.subr.bf16.mxu0 0
        %1488 = vmatpush1.bf16.msra.mxu0 %v1307
        %1489 = vmatprep.subr.bf16.mxu0 0
        %1490 = vmatpush1.bf16.msra.mxu0 0
        %1491 = vmatprep.subr.bf16.mxu0 0
        %1492 = vmatpush1.bf16.msra.mxu0 0
        %1493 = vmatprep.subr.bf16.mxu0 0
        %1494 = vmatpush1.bf16.msra.mxu0 0
        %1495 = vmatprep.subr.bf16.mxu0 0
        %1496 = vmatpush1.bf16.msra.mxu0 0
        %1497 = vmatprep.subr.bf16.mxu0 0
        %1498 = vmatpush1.bf16.msra.mxu0 0
        %1499 = vmatprep.subr.bf16.mxu0 0
        %1500 = vmatpush1.bf16.msra.mxu0 0
        %1501 = vmatprep.subr.bf16.mxu0 0
        %1502 = vmatpush1.bf16.msra.mxu0 0
        %1503 = vmatprep.subr.bf16.mxu0 0
        %1504 = vmatpush1.bf16.msra.mxu0 0
        %1505 = vmatprep.subr.bf16.mxu0 0
        %1506 = vmatpush1.bf16.msra.mxu0 0
        %1507 = vmatprep.subr.bf16.mxu0 0
        %1508 = vmatpush1.bf16.msra.mxu0 0
        %1509 = vmatprep.subr.bf16.mxu0 0
        %1510 = vmatpush1.bf16.msra.mxu0 0
        %1511 = vmatprep.subr.bf16.mxu0 0
        %1512 = vmatpush1.bf16.msra.mxu0 0
        %1513 = vmatprep.subr.bf16.mxu0 0
        %1514 = vmatpush1.bf16.msra.mxu0 0
        %1515 = vmatprep.subr.bf16.mxu0 0
        %1516 = vmatpush1.bf16.msra.mxu0 0
        %1517 = vmatprep.mubr.bf16.mxu0 0
        %1518 = vmatmul.mubr.bf16.gmra.mrb[0].mxu0 %v1483
        %v1519 = vpop.f32.mrb[0].mxu0
        %v1520 = vadd.f32 0.0, %v1519
        %v1521 = vpop.f32.mrb[0].mxu0
        %v1522 = vpop.f32.mrb[0].mxu0
        %v1523 = vadd.f32 0.0, %v1522
        %v1524 = vpop.f32.mrb[0].mxu0
        %1525 = vdwg.mxu0
        %v1527 = vsel %vm1301, %v1279, 0
        %1529 = vmatprep.subr.bf16.mxu0 0
        %1530 = vmatpush1.bf16.msra.mxu0 %v1298
        %1531 = vmatprep.subr.bf16.mxu0 0
        %1532 = vmatpush1.bf16.msra.mxu0 %v1307
        %1533 = vmatprep.subr.bf16.mxu0 0
        %1534 = vmatpush1.bf16.msra.mxu0 0
        %1535 = vmatprep.subr.bf16.mxu0 0
        %1536 = vmatpush1.bf16.msra.mxu0 0
        %1537 = vmatprep.subr.bf16.mxu0 0
        %1538 = vmatpush1.bf16.msra.mxu0 0
        %1539 = vmatprep.subr.bf16.mxu0 0
        %1540 = vmatpush1.bf16.msra.mxu0 0
        %1541 = vmatprep.subr.bf16.mxu0 0
        %1542 = vmatpush1.bf16.msra.mxu0 0
        %1543 = vmatprep.subr.bf16.mxu0 0
        %1544 = vmatpush1.bf16.msra.mxu0 0
        %1545 = vmatprep.subr.bf16.mxu0 0
        %1546 = vmatpush1.bf16.msra.mxu0 0
        %1547 = vmatprep.subr.bf16.mxu0 0
        %1548 = vmatpush1.bf16.msra.mxu0 0
        %1549 = vmatprep.subr.bf16.mxu0 0
        %1550 = vmatpush1.bf16.msra.mxu0 0
        %1551 = vmatprep.subr.bf16.mxu0 0
        %1552 = vmatpush1.bf16.msra.mxu0 0
        %1553 = vmatprep.subr.bf16.mxu0 0
        %1554 = vmatpush1.bf16.msra.mxu0 0
        %1555 = vmatprep.subr.bf16.mxu0 0
        %1556 = vmatpush1.bf16.msra.mxu0 0
        %1557 = vmatprep.subr.bf16.mxu0 0
        %1558 = vmatpush1.bf16.msra.mxu0 0
        %1559 = vmatprep.subr.bf16.mxu0 0
        %1560 = vmatpush1.bf16.msra.mxu0 0
        %1561 = vmatprep.mubr.bf16.mxu0 0
        %1562 = vmatmul.mubr.bf16.gmra.mrb[0].mxu0 %v1527
        %v1563 = vpop.f32.mrb[0].mxu0
        %v1564 = vadd.f32 0.0, %v1563
        %v1565 = vpop.f32.mrb[0].mxu0
        %v1566 = vpop.f32.mrb[0].mxu0
        %v1567 = vadd.f32 0.0, %v1566
        %v1568 = vpop.f32.mrb[0].mxu0
        %1569 = vdwg.mxu0
        %v1571 = vsel %vm1301, %v1280, 0
        %1573 = vmatprep.subr.bf16.mxu0 0
        %1574 = vmatpush1.bf16.msra.mxu0 %v1298
        %1575 = vmatprep.subr.bf16.mxu0 0
        %1576 = vmatpush1.bf16.msra.mxu0 %v1307
        %1577 = vmatprep.subr.bf16.mxu0 0
        %1578 = vmatpush1.bf16.msra.mxu0 0
        %1579 = vmatprep.subr.bf16.mxu0 0
        %1580 = vmatpush1.bf16.msra.mxu0 0
        %1581 = vmatprep.subr.bf16.mxu0 0
        %1582 = vmatpush1.bf16.msra.mxu0 0
        %1583 = vmatprep.subr.bf16.mxu0 0
        %1584 = vmatpush1.bf16.msra.mxu0 0
        %1585 = vmatprep.subr.bf16.mxu0 0
        %1586 = vmatpush1.bf16.msra.mxu0 0
        %1587 = vmatprep.subr.bf16.mxu0 0
        %1588 = vmatpush1.bf16.msra.mxu0 0
        %1589 = vmatprep.subr.bf16.mxu0 0
        %1590 = vmatpush1.bf16.msra.mxu0 0
        %1591 = vmatprep.subr.bf16.mxu0 0
        %1592 = vmatpush1.bf16.msra.mxu0 0
        %1593 = vmatprep.subr.bf16.mxu0 0
        %1594 = vmatpush1.bf16.msra.mxu0 0
        %1595 = vmatprep.subr.bf16.mxu0 0
        %1596 = vmatpush1.bf16.msra.mxu0 0
        %1597 = vmatprep.subr.bf16.mxu0 0
        %1598 = vmatpush1.bf16.msra.mxu0 0
        %1599 = vmatprep.subr.bf16.mxu0 0
        %1600 = vmatpush1.bf16.msra.mxu0 0
        %1601 = vmatprep.subr.bf16.mxu0 0
        %1602 = vmatpush1.bf16.msra.mxu0 0
        %1603 = vmatprep.subr.bf16.mxu0 0
        %1604 = vmatpush1.bf16.msra.mxu0 0
        %1605 = vmatprep.mubr.bf16.mxu0 0
        %1606 = vmatmul.mubr.bf16.gmra.mrb[0].mxu0 %v1571
        %v1607 = vpop.f32.mrb[0].mxu0
        %v1608 = vadd.f32 0.0, %v1607
        %v1609 = vpop.f32.mrb[0].mxu0
        %v1610 = vpop.f32.mrb[0].mxu0
        %v1611 = vadd.f32 0.0, %v1610
        %v1612 = vpop.f32.mrb[0].mxu0
        %1613 = vdwg.mxu0
        %v1615 = vsel %vm1301, %v1281, 0
        %1617 = vmatprep.subr.bf16.mxu0 0
        %1618 = vmatpush1.bf16.msra.mxu0 %v1298
        %1619 = vmatprep.subr.bf16.mxu0 0
        %1620 = vmatpush1.bf16.msra.mxu0 %v1307
        %1621 = vmatprep.subr.bf16.mxu0 0
        %1622 = vmatpush1.bf16.msra.mxu0 0
        %1623 = vmatprep.subr.bf16.mxu0 0
        %1624 = vmatpush1.bf16.msra.mxu0 0
        %1625 = vmatprep.subr.bf16.mxu0 0
        %1626 = vmatpush1.bf16.msra.mxu0 0
        %1627 = vmatprep.subr.bf16.mxu0 0
        %1628 = vmatpush1.bf16.msra.mxu0 0
        %1629 = vmatprep.subr.bf16.mxu0 0
        %1630 = vmatpush1.bf16.msra.mxu0 0
        %1631 = vmatprep.subr.bf16.mxu0 0
        %1632 = vmatpush1.bf16.msra.mxu0 0
        %1633 = vmatprep.subr.bf16.mxu0 0
        %1634 = vmatpush1.bf16.msra.mxu0 0
        %1635 = vmatprep.subr.bf16.mxu0 0
        %1636 = vmatpush1.bf16.msra.mxu0 0
        %1637 = vmatprep.subr.bf16.mxu0 0
        %1638 = vmatpush1.bf16.msra.mxu0 0
        %1639 = vmatprep.subr.bf16.mxu0 0
        %1640 = vmatpush1.bf16.msra.mxu0 0
        %1641 = vmatprep.subr.bf16.mxu0 0
        %1642 = vmatpush1.bf16.msra.mxu0 0
        %1643 = vmatprep.subr.bf16.mxu0 0
        %1644 = vmatpush1.bf16.msra.mxu0 0
        %1645 = vmatprep.subr.bf16.mxu0 0
        %1646 = vmatpush1.bf16.msra.mxu0 0
        %1647 = vmatprep.subr.bf16.mxu0 0
        %1648 = vmatpush1.bf16.msra.mxu0 0
        %1649 = vmatprep.mubr.bf16.mxu0 0
        %1650 = vmatmul.mubr.bf16.gmra.mrb[0].mxu0 %v1615
        %v1651 = vpop.f32.mrb[0].mxu0
        %v1652 = vadd.f32 0.0, %v1651
        %v1653 = vpop.f32.mrb[0].mxu0
        %v1654 = vpop.f32.mrb[0].mxu0
        %v1655 = vadd.f32 0.0, %v1654
        %v1656 = vpop.f32.mrb[0].mxu0
        %1657 = vdwg.mxu0
        %v1659 = vsel %vm1301, %v1282, 0
        %1661 = vmatprep.subr.bf16.mxu0 0
        %1662 = vmatpush1.bf16.msra.mxu0 %v1298
        %1663 = vmatprep.subr.bf16.mxu0 0
        %1664 = vmatpush1.bf16.msra.mxu0 %v1307
        %1665 = vmatprep.subr.bf16.mxu0 0
        %1666 = vmatpush1.bf16.msra.mxu0 0
        %1667 = vmatprep.subr.bf16.mxu0 0
        %1668 = vmatpush1.bf16.msra.mxu0 0
        %1669 = vmatprep.subr.bf16.mxu0 0
        %1670 = vmatpush1.bf16.msra.mxu0 0
        %1671 = vmatprep.subr.bf16.mxu0 0
        %1672 = vmatpush1.bf16.msra.mxu0 0
        %1673 = vmatprep.subr.bf16.mxu0 0
        %1674 = vmatpush1.bf16.msra.mxu0 0
        %1675 = vmatprep.subr.bf16.mxu0 0
        %1676 = vmatpush1.bf16.msra.mxu0 0
        %1677 = vmatprep.subr.bf16.mxu0 0
        %1678 = vmatpush1.bf16.msra.mxu0 0
        %1679 = vmatprep.subr.bf16.mxu0 0
        %1680 = vmatpush1.bf16.msra.mxu0 0
        %1681 = vmatprep.subr.bf16.mxu0 0
        %1682 = vmatpush1.bf16.msra.mxu0 0
        %1683 = vmatprep.subr.bf16.mxu0 0
        %1684 = vmatpush1.bf16.msra.mxu0 0
        %1685 = vmatprep.subr.bf16.mxu0 0
        %1686 = vmatpush1.bf16.msra.mxu0 0
        %1687 = vmatprep.subr.bf16.mxu0 0
        %1688 = vmatpush1.bf16.msra.mxu0 0
        %1689 = vmatprep.subr.bf16.mxu0 0
        %1690 = vmatpush1.bf16.msra.mxu0 0
        %1691 = vmatprep.subr.bf16.mxu0 0
        %1692 = vmatpush1.bf16.msra.mxu0 0
        %1693 = vmatprep.mubr.bf16.mxu0 0
        %1694 = vmatmul.mubr.bf16.gmra.mrb[0].mxu0 %v1659
        %v1695 = vpop.f32.mrb[0].mxu0
        %v1696 = vadd.f32 0.0, %v1695
        %v1697 = vpop.f32.mrb[0].mxu0
        %v1698 = vpop.f32.mrb[0].mxu0
        %v1699 = vadd.f32 0.0, %v1698
        %v1700 = vpop.f32.mrb[0].mxu0
        %1701 = vdwg.mxu0
        %v1703 = vsel %vm1301, %v1283, 0
        %1705 = vmatprep.subr.bf16.mxu0 0
        %1706 = vmatpush1.bf16.msra.mxu0 %v1298
        %1707 = vmatprep.subr.bf16.mxu0 0
        %1708 = vmatpush1.bf16.msra.mxu0 %v1307
        %1709 = vmatprep.subr.bf16.mxu0 0
        %1710 = vmatpush1.bf16.msra.mxu0 0
        %1711 = vmatprep.subr.bf16.mxu0 0
        %1712 = vmatpush1.bf16.msra.mxu0 0
        %1713 = vmatprep.subr.bf16.mxu0 0
        %1714 = vmatpush1.bf16.msra.mxu0 0
        %1715 = vmatprep.subr.bf16.mxu0 0
        %1716 = vmatpush1.bf16.msra.mxu0 0
        %1717 = vmatprep.subr.bf16.mxu0 0
        %1718 = vmatpush1.bf16.msra.mxu0 0
        %1719 = vmatprep.subr.bf16.mxu0 0
        %1720 = vmatpush1.bf16.msra.mxu0 0
        %1721 = vmatprep.subr.bf16.mxu0 0
        %1722 = vmatpush1.bf16.msra.mxu0 0
        %1723 = vmatprep.subr.bf16.mxu0 0
        %1724 = vmatpush1.bf16.msra.mxu0 0
        %1725 = vmatprep.subr.bf16.mxu0 0
        %1726 = vmatpush1.bf16.msra.mxu0 0
        %1727 = vmatprep.subr.bf16.mxu0 0
        %1728 = vmatpush1.bf16.msra.mxu0 0
        %1729 = vmatprep.subr.bf16.mxu0 0
        %1730 = vmatpush1.bf16.msra.mxu0 0
        %1731 = vmatprep.subr.bf16.mxu0 0
        %1732 = vmatpush1.bf16.msra.mxu0 0
        %1733 = vmatprep.subr.bf16.mxu0 0
        %1734 = vmatpush1.bf16.msra.mxu0 0
        %1735 = vmatprep.subr.bf16.mxu0 0
        %1736 = vmatpush1.bf16.msra.mxu0 0
        %1737 = vmatprep.mubr.bf16.mxu0 0
        %1738 = vmatmul.mubr.bf16.gmra.mrb[0].mxu0 %v1703
        %v1739 = vpop.f32.mrb[0].mxu0
        %v1740 = vadd.f32 0.0, %v1739
        %v1741 = vpop.f32.mrb[0].mxu0
        %v1742 = vpop.f32.mrb[0].mxu0
        %v1743 = vadd.f32 0.0, %v1742
        %v1744 = vpop.f32.mrb[0].mxu0
        %1745 = vdwg.mxu0
        %v1747 = vsel %vm1301, %v1284, 0
        %1749 = vmatprep.subr.bf16.mxu0 0
        %1750 = vmatpush1.bf16.msra.mxu0 %v1298
        %1751 = vmatprep.subr.bf16.mxu0 0
        %1752 = vmatpush1.bf16.msra.mxu0 %v1307
        %1753 = vmatprep.subr.bf16.mxu0 0
        %1754 = vmatpush1.bf16.msra.mxu0 0
        %1755 = vmatprep.subr.bf16.mxu0 0
        %1756 = vmatpush1.bf16.msra.mxu0 0
        %1757 = vmatprep.subr.bf16.mxu0 0
        %1758 = vmatpush1.bf16.msra.mxu0 0
        %1759 = vmatprep.subr.bf16.mxu0 0
        %1760 = vmatpush1.bf16.msra.mxu0 0
        %1761 = vmatprep.subr.bf16.mxu0 0
        %1762 = vmatpush1.bf16.msra.mxu0 0
        %1763 = vmatprep.subr.bf16.mxu0 0
        %1764 = vmatpush1.bf16.msra.mxu0 0
        %1765 = vmatprep.subr.bf16.mxu0 0
        %1766 = vmatpush1.bf16.msra.mxu0 0
        %1767 = vmatprep.subr.bf16.mxu0 0
        %1768 = vmatpush1.bf16.msra.mxu0 0
        %1769 = vmatprep.subr.bf16.mxu0 0
        %1770 = vmatpush1.bf16.msra.mxu0 0
        %1771 = vmatprep.subr.bf16.mxu0 0
        %1772 = vmatpush1.bf16.msra.mxu0 0
        %1773 = vmatprep.subr.bf16.mxu0 0
        %1774 = vmatpush1.bf16.msra.mxu0 0
        %1775 = vmatprep.subr.bf16.mxu0 0
        %1776 = vmatpush1.bf16.msra.mxu0 0
        %1777 = vmatprep.subr.bf16.mxu0 0
        %1778 = vmatpush1.bf16.msra.mxu0 0
        %1779 = vmatprep.subr.bf16.mxu0 0
        %1780 = vmatpush1.bf16.msra.mxu0 0
        %1781 = vmatprep.mubr.bf16.mxu0 0
        %1782 = vmatmul.mubr.bf16.gmra.mrb[0].mxu0 %v1747
        %v1783 = vpop.f32.mrb[0].mxu0
        %v1784 = vadd.f32 0.0, %v1783
        %v1785 = vpop.f32.mrb[0].mxu0
        %v1786 = vpop.f32.mrb[0].mxu0
        %v1787 = vadd.f32 0.0, %v1786
        %v1788 = vpop.f32.mrb[0].mxu0
        %1789 = vdwg.mxu0
        %v1791 = vsel %vm1301, %v1285, 0
        %1793 = vmatprep.subr.bf16.mxu0 0
        %1794 = vmatpush1.bf16.msra.mxu0 %v1298
        %1795 = vmatprep.subr.bf16.mxu0 0
        %1796 = vmatpush1.bf16.msra.mxu0 %v1307
        %1797 = vmatprep.subr.bf16.mxu0 0
        %1798 = vmatpush1.bf16.msra.mxu0 0
        %1799 = vmatprep.subr.bf16.mxu0 0
        %1800 = vmatpush1.bf16.msra.mxu0 0
        %1801 = vmatprep.subr.bf16.mxu0 0
        %1802 = vmatpush1.bf16.msra.mxu0 0
        %1803 = vmatprep.subr.bf16.mxu0 0
        %1804 = vmatpush1.bf16.msra.mxu0 0
        %1805 = vmatprep.subr.bf16.mxu0 0
        %1806 = vmatpush1.bf16.msra.mxu0 0
        %1807 = vmatprep.subr.bf16.mxu0 0
        %1808 = vmatpush1.bf16.msra.mxu0 0
        %1809 = vmatprep.subr.bf16.mxu0 0
        %1810 = vmatpush1.bf16.msra.mxu0 0
        %1811 = vmatprep.subr.bf16.mxu0 0
        %1812 = vmatpush1.bf16.msra.mxu0 0
        %1813 = vmatprep.subr.bf16.mxu0 0
        %1814 = vmatpush1.bf16.msra.mxu0 0
        %1815 = vmatprep.subr.bf16.mxu0 0
        %1816 = vmatpush1.bf16.msra.mxu0 0
        %1817 = vmatprep.subr.bf16.mxu0 0
        %1818 = vmatpush1.bf16.msra.mxu0 0
        %1819 = vmatprep.subr.bf16.mxu0 0
        %1820 = vmatpush1.bf16.msra.mxu0 0
        %1821 = vmatprep.subr.bf16.mxu0 0
        %1822 = vmatpush1.bf16.msra.mxu0 0
        %1823 = vmatprep.subr.bf16.mxu0 0
        %1824 = vmatpush1.bf16.msra.mxu0 0
        %1825 = vmatprep.mubr.bf16.mxu0 0
        %1826 = vmatmul.mubr.bf16.gmra.mrb[0].mxu0 %v1791
        %v1827 = vpop.f32.mrb[0].mxu0
        %v1828 = vadd.f32 0.0, %v1827
        %v1829 = vpop.f32.mrb[0].mxu0
        %v1830 = vpop.f32.mrb[0].mxu0
        %v1831 = vadd.f32 0.0, %v1830
        %v1832 = vpop.f32.mrb[0].mxu0
        %1833 = vdwg.mxu0
        %v1835 = vsel %vm1301, %v1286, 0
        %1837 = vmatprep.subr.bf16.mxu0 0
        %1838 = vmatpush1.bf16.msra.mxu0 %v1298
        %1839 = vmatprep.subr.bf16.mxu0 0
        %1840 = vmatpush1.bf16.msra.mxu0 %v1307
        %1841 = vmatprep.subr.bf16.mxu0 0
        %1842 = vmatpush1.bf16.msra.mxu0 0
        %1843 = vmatprep.subr.bf16.mxu0 0
        %1844 = vmatpush1.bf16.msra.mxu0 0
        %1845 = vmatprep.subr.bf16.mxu0 0
        %1846 = vmatpush1.bf16.msra.mxu0 0
        %1847 = vmatprep.subr.bf16.mxu0 0
        %1848 = vmatpush1.bf16.msra.mxu0 0
        %1849 = vmatprep.subr.bf16.mxu0 0
        %1850 = vmatpush1.bf16.msra.mxu0 0
        %1851 = vmatprep.subr.bf16.mxu0 0
        %1852 = vmatpush1.bf16.msra.mxu0 0
        %1853 = vmatprep.subr.bf16.mxu0 0
        %1854 = vmatpush1.bf16.msra.mxu0 0
        %1855 = vmatprep.subr.bf16.mxu0 0
        %1856 = vmatpush1.bf16.msra.mxu0 0
        %1857 = vmatprep.subr.bf16.mxu0 0
        %1858 = vmatpush1.bf16.msra.mxu0 0
        %1859 = vmatprep.subr.bf16.mxu0 0
        %1860 = vmatpush1.bf16.msra.mxu0 0
        %1861 = vmatprep.subr.bf16.mxu0 0
        %1862 = vmatpush1.bf16.msra.mxu0 0
        %1863 = vmatprep.subr.bf16.mxu0 0
        %1864 = vmatpush1.bf16.msra.mxu0 0
        %1865 = vmatprep.subr.bf16.mxu0 0
        %1866 = vmatpush1.bf16.msra.mxu0 0
        %1867 = vmatprep.subr.bf16.mxu0 0
        %1868 = vmatpush1.bf16.msra.mxu0 0
        %1869 = vmatprep.mubr.bf16.mxu0 0
        %1870 = vmatmul.mubr.bf16.gmra.mrb[0].mxu0 %v1835
        %v1871 = vpop.f32.mrb[0].mxu0
        %v1872 = vadd.f32 0.0, %v1871
        %v1873 = vpop.f32.mrb[0].mxu0
        %v1874 = vpop.f32.mrb[0].mxu0
        %v1875 = vadd.f32 0.0, %v1874
        %v1876 = vpop.f32.mrb[0].mxu0
        %1877 = vdwg.mxu0
        %v1879 = vsel %vm1301, %v1287, 0
        %1881 = vmatprep.subr.bf16.mxu0 0
        %1882 = vmatpush1.bf16.msra.mxu0 %v1298
        %1883 = vmatprep.subr.bf16.mxu0 0
        %1884 = vmatpush1.bf16.msra.mxu0 %v1307
        %1885 = vmatprep.subr.bf16.mxu0 0
        %1886 = vmatpush1.bf16.msra.mxu0 0
        %1887 = vmatprep.subr.bf16.mxu0 0
        %1888 = vmatpush1.bf16.msra.mxu0 0
        %1889 = vmatprep.subr.bf16.mxu0 0
        %1890 = vmatpush1.bf16.msra.mxu0 0
        %1891 = vmatprep.subr.bf16.mxu0 0
        %1892 = vmatpush1.bf16.msra.mxu0 0
        %1893 = vmatprep.subr.bf16.mxu0 0
        %1894 = vmatpush1.bf16.msra.mxu0 0
        %1895 = vmatprep.subr.bf16.mxu0 0
        %1896 = vmatpush1.bf16.msra.mxu0 0
        %1897 = vmatprep.subr.bf16.mxu0 0
        %1898 = vmatpush1.bf16.msra.mxu0 0
        %1899 = vmatprep.subr.bf16.mxu0 0
        %1900 = vmatpush1.bf16.msra.mxu0 0
        %1901 = vmatprep.subr.bf16.mxu0 0
        %1902 = vmatpush1.bf16.msra.mxu0 0
        %1903 = vmatprep.subr.bf16.mxu0 0
        %1904 = vmatpush1.bf16.msra.mxu0 0
        %1905 = vmatprep.subr.bf16.mxu0 0
        %1906 = vmatpush1.bf16.msra.mxu0 0
        %1907 = vmatprep.subr.bf16.mxu0 0
        %1908 = vmatpush1.bf16.msra.mxu0 0
        %1909 = vmatprep.subr.bf16.mxu0 0
        %1910 = vmatpush1.bf16.msra.mxu0 0
        %1911 = vmatprep.subr.bf16.mxu0 0
        %1912 = vmatpush1.bf16.msra.mxu0 0
        %1913 = vmatprep.mubr.bf16.mxu0 0
        %1914 = vmatmul.mubr.bf16.gmra.mrb[0].mxu0 %v1879
        %v1915 = vpop.f32.mrb[0].mxu0
        %v1916 = vadd.f32 0.0, %v1915
        %v1917 = vpop.f32.mrb[0].mxu0
        %v1918 = vpop.f32.mrb[0].mxu0
        %v1919 = vadd.f32 0.0, %v1918
        %v1920 = vpop.f32.mrb[0].mxu0
        %1921 = vdwg.mxu0
        %v1923 = vsel %vm1301, %v1288, 0
        %1925 = vmatprep.subr.bf16.mxu0 0
        %1926 = vmatpush1.bf16.msra.mxu0 %v1298
        %1927 = vmatprep.subr.bf16.mxu0 0
        %1928 = vmatpush1.bf16.msra.mxu0 %v1307
        %1929 = vmatprep.subr.bf16.mxu0 0
        %1930 = vmatpush1.bf16.msra.mxu0 0
        %1931 = vmatprep.subr.bf16.mxu0 0
        %1932 = vmatpush1.bf16.msra.mxu0 0
        %1933 = vmatprep.subr.bf16.mxu0 0
        %1934 = vmatpush1.bf16.msra.mxu0 0
        %1935 = vmatprep.subr.bf16.mxu0 0
        %1936 = vmatpush1.bf16.msra.mxu0 0
        %1937 = vmatprep.subr.bf16.mxu0 0
        %1938 = vmatpush1.bf16.msra.mxu0 0
        %1939 = vmatprep.subr.bf16.mxu0 0
        %1940 = vmatpush1.bf16.msra.mxu0 0
        %1941 = vmatprep.subr.bf16.mxu0 0
        %1942 = vmatpush1.bf16.msra.mxu0 0
        %1943 = vmatprep.subr.bf16.mxu0 0
        %1944 = vmatpush1.bf16.msra.mxu0 0
        %1945 = vmatprep.subr.bf16.mxu0 0
        %1946 = vmatpush1.bf16.msra.mxu0 0
        %1947 = vmatprep.subr.bf16.mxu0 0
        %1948 = vmatpush1.bf16.msra.mxu0 0
        %1949 = vmatprep.subr.bf16.mxu0 0
        %1950 = vmatpush1.bf16.msra.mxu0 0
        %1951 = vmatprep.subr.bf16.mxu0 0
        %1952 = vmatpush1.bf16.msra.mxu0 0
        %1953 = vmatprep.subr.bf16.mxu0 0
        %1954 = vmatpush1.bf16.msra.mxu0 0
        %1955 = vmatprep.subr.bf16.mxu0 0
        %1956 = vmatpush1.bf16.msra.mxu0 0
        %1957 = vmatprep.mubr.bf16.mxu0 0
        %1958 = vmatmul.mubr.bf16.gmra.mrb[0].mxu0 %v1923
        %v1959 = vpop.f32.mrb[0].mxu0
        %v1960 = vadd.f32 0.0, %v1959
        %v1961 = vpop.f32.mrb[0].mxu0
        %v1962 = vpop.f32.mrb[0].mxu0
        %v1963 = vadd.f32 0.0, %v1962
        %v1964 = vpop.f32.mrb[0].mxu0
        %1965 = vdwg.mxu0
        %v1967 = vsel %vm1301, %v1289, 0
        %1969 = vmatprep.subr.bf16.mxu0 0
        %1970 = vmatpush1.bf16.msra.mxu0 %v1298
        %1971 = vmatprep.subr.bf16.mxu0 0
        %1972 = vmatpush1.bf16.msra.mxu0 %v1307
        %1973 = vmatprep.subr.bf16.mxu0 0
        %1974 = vmatpush1.bf16.msra.mxu0 0
        %1975 = vmatprep.subr.bf16.mxu0 0
        %1976 = vmatpush1.bf16.msra.mxu0 0
        %1977 = vmatprep.subr.bf16.mxu0 0
        %1978 = vmatpush1.bf16.msra.mxu0 0
        %1979 = vmatprep.subr.bf16.mxu0 0
        %1980 = vmatpush1.bf16.msra.mxu0 0
        %1981 = vmatprep.subr.bf16.mxu0 0
        %1982 = vmatpush1.bf16.msra.mxu0 0
        %1983 = vmatprep.subr.bf16.mxu0 0
        %1984 = vmatpush1.bf16.msra.mxu0 0
        %1985 = vmatprep.subr.bf16.mxu0 0
        %1986 = vmatpush1.bf16.msra.mxu0 0
        %1987 = vmatprep.subr.bf16.mxu0 0
        %1988 = vmatpush1.bf16.msra.mxu0 0
        %1989 = vmatprep.subr.bf16.mxu0 0
        %1990 = vmatpush1.bf16.msra.mxu0 0
        %1991 = vmatprep.subr.bf16.mxu0 0
        %1992 = vmatpush1.bf16.msra.mxu0 0
        %1993 = vmatprep.subr.bf16.mxu0 0
        %1994 = vmatpush1.bf16.msra.mxu0 0
        %1995 = vmatprep.subr.bf16.mxu0 0
        %1996 = vmatpush1.bf16.msra.mxu0 0
        %1997 = vmatprep.subr.bf16.mxu0 0
        %1998 = vmatpush1.bf16.msra.mxu0 0
        %1999 = vmatprep.subr.bf16.mxu0 0
        %2000 = vmatpush1.bf16.msra.mxu0 0
        %2001 = vmatprep.mubr.bf16.mxu0 0
        %2002 = vmatmul.mubr.bf16.gmra.mrb[0].mxu0 %v1967
        %v2003 = vpop.f32.mrb[0].mxu0
        %v2004 = vadd.f32 0.0, %v2003
        %v2005 = vpop.f32.mrb[0].mxu0
        %v2006 = vpop.f32.mrb[0].mxu0
        %v2007 = vadd.f32 0.0, %v2006
        %v2008 = vpop.f32.mrb[0].mxu0
        %2009 = vdwg.mxu0
        %v2011 = vsel %vm1301, %v1290, 0
        %2013 = vmatprep.subr.bf16.mxu0 0
        %2014 = vmatpush1.bf16.msra.mxu0 %v1298
        %2015 = vmatprep.subr.bf16.mxu0 0
        %2016 = vmatpush1.bf16.msra.mxu0 %v1307
        %2017 = vmatprep.subr.bf16.mxu0 0
        %2018 = vmatpush1.bf16.msra.mxu0 0
        %2019 = vmatprep.subr.bf16.mxu0 0
        %2020 = vmatpush1.bf16.msra.mxu0 0
        %2021 = vmatprep.subr.bf16.mxu0 0
        %2022 = vmatpush1.bf16.msra.mxu0 0
        %2023 = vmatprep.subr.bf16.mxu0 0
        %2024 = vmatpush1.bf16.msra.mxu0 0
        %2025 = vmatprep.subr.bf16.mxu0 0
        %2026 = vmatpush1.bf16.msra.mxu0 0
        %2027 = vmatprep.subr.bf16.mxu0 0
        %2028 = vmatpush1.bf16.msra.mxu0 0
        %2029 = vmatprep.subr.bf16.mxu0 0
        %2030 = vmatpush1.bf16.msra.mxu0 0
        %2031 = vmatprep.subr.bf16.mxu0 0
        %2032 = vmatpush1.bf16.msra.mxu0 0
        %2033 = vmatprep.subr.bf16.mxu0 0
        %2034 = vmatpush1.bf16.msra.mxu0 0
        %2035 = vmatprep.subr.bf16.mxu0 0
        %2036 = vmatpush1.bf16.msra.mxu0 0
        %2037 = vmatprep.subr.bf16.mxu0 0
        %2038 = vmatpush1.bf16.msra.mxu0 0
        %2039 = vmatprep.subr.bf16.mxu0 0
        %2040 = vmatpush1.bf16.msra.mxu0 0
        %2041 = vmatprep.subr.bf16.mxu0 0
        %2042 = vmatpush1.bf16.msra.mxu0 0
        %2043 = vmatprep.subr.bf16.mxu0 0
        %2044 = vmatpush1.bf16.msra.mxu0 0
        %2045 = vmatprep.mubr.bf16.mxu0 0
        %2046 = vmatmul.mubr.bf16.gmra.mrb[0].mxu0 %v2011
        %v2047 = vpop.f32.mrb[0].mxu0
        %v2048 = vadd.f32 0.0, %v2047
        %v2049 = vpop.f32.mrb[0].mxu0
        %v2050 = vpop.f32.mrb[0].mxu0
        %v2051 = vadd.f32 0.0, %v2050
        %v2052 = vpop.f32.mrb[0].mxu0
        %2053 = vdwg.mxu0
        %v2055 = vsel %vm1301, %v1291, 0
        %2057 = vmatprep.subr.bf16.mxu0 0
        %2058 = vmatpush1.bf16.msra.mxu0 %v1298
        %2059 = vmatprep.subr.bf16.mxu0 0
        %2060 = vmatpush1.bf16.msra.mxu0 %v1307
        %2061 = vmatprep.subr.bf16.mxu0 0
        %2062 = vmatpush1.bf16.msra.mxu0 0
        %2063 = vmatprep.subr.bf16.mxu0 0
        %2064 = vmatpush1.bf16.msra.mxu0 0
        %2065 = vmatprep.subr.bf16.mxu0 0
        %2066 = vmatpush1.bf16.msra.mxu0 0
        %2067 = vmatprep.subr.bf16.mxu0 0
        %2068 = vmatpush1.bf16.msra.mxu0 0
        %2069 = vmatprep.subr.bf16.mxu0 0
        %2070 = vmatpush1.bf16.msra.mxu0 0
        %2071 = vmatprep.subr.bf16.mxu0 0
        %2072 = vmatpush1.bf16.msra.mxu0 0
        %2073 = vmatprep.subr.bf16.mxu0 0
        %2074 = vmatpush1.bf16.msra.mxu0 0
        %2075 = vmatprep.subr.bf16.mxu0 0
        %2076 = vmatpush1.bf16.msra.mxu0 0
        %2077 = vmatprep.subr.bf16.mxu0 0
        %2078 = vmatpush1.bf16.msra.mxu0 0
        %2079 = vmatprep.subr.bf16.mxu0 0
        %2080 = vmatpush1.bf16.msra.mxu0 0
        %2081 = vmatprep.subr.bf16.mxu0 0
        %2082 = vmatpush1.bf16.msra.mxu0 0
        %2083 = vmatprep.subr.bf16.mxu0 0
        %2084 = vmatpush1.bf16.msra.mxu0 0
        %2085 = vmatprep.subr.bf16.mxu0 0
        %2086 = vmatpush1.bf16.msra.mxu0 0
        %2087 = vmatprep.subr.bf16.mxu0 0
        %2088 = vmatpush1.bf16.msra.mxu0 0
        %2089 = vmatprep.mubr.bf16.mxu0 0
        %2090 = vmatmul.mubr.bf16.gmra.mrb[0].mxu0 %v2055
        %v2091 = vpop.f32.mrb[0].mxu0
        %v2092 = vadd.f32 0.0, %v2091
        %v2093 = vpop.f32.mrb[0].mxu0
        %v2094 = vpop.f32.mrb[0].mxu0
        %v2095 = vadd.f32 0.0, %v2094
        %v2096 = vpop.f32.mrb[0].mxu0
        %2097 = vdwg.mxu0
        %v2098 = vpack.c.bf16 %v1347, %v1344
        %v2099 = vpack.c.bf16 %v1391, %v1388
        %v2100 = vpack.c.bf16 %v1435, %v1432
        %v2101 = vpack.c.bf16 %v1479, %v1476
        %v2102 = vpack.c.bf16 %v1523, %v1520
        %v2103 = vpack.c.bf16 %v1567, %v1564
        %v2104 = vpack.c.bf16 %v1611, %v1608
        %v2105 = vpack.c.bf16 %v1655, %v1652
        %v2106 = vpack.c.bf16 %v1699, %v1696
        %v2107 = vpack.c.bf16 %v1743, %v1740
        %v2108 = vpack.c.bf16 %v1787, %v1784
        %v2109 = vpack.c.bf16 %v1831, %v1828
        %v2110 = vpack.c.bf16 %v1875, %v1872
        %v2111 = vpack.c.bf16 %v1919, %v1916
        %v2112 = vpack.c.bf16 %v1963, %v1960
        %v2113 = vpack.c.bf16 %v2007, %v2004
        %v2114 = vpack.c.bf16 %v2051, %v2048
        %v2115 = vpack.c.bf16 %v2095, %v2092
        %v2134 = vunpack.c.l.b16 %v2098
        %v2135 = vunpack.c.l.b16 %v2099
        %v2136 = vunpack.c.l.b16 %v2100
        %v2137 = vunpack.c.l.b16 %v2101
        %v2138 = vunpack.c.l.b16 %v2102
        %v2139 = vunpack.c.l.b16 %v2103
        %v2140 = vunpack.c.l.b16 %v2104
        %v2141 = vunpack.c.l.b16 %v2105
        %v2142 = vunpack.c.l.b16 %v2106
        %v2143 = vunpack.c.l.b16 %v2107
        %v2144 = vunpack.c.l.b16 %v2108
        %v2145 = vunpack.c.l.b16 %v2109
        %v2146 = vunpack.c.l.b16 %v2110
        %v2147 = vunpack.c.l.b16 %v2111
        %v2148 = vunpack.c.l.b16 %v2112
        %v2149 = vunpack.c.l.b16 %v2113
        %v2150 = vunpack.c.l.b16 %v2114
        %v2151 = vunpack.c.l.b16 %v2115
        %v2152 = vpack.c.b16 %v2134, %v2134
        %v2153 = vpack.c.b16 %v2135, %v2135
        %v2154 = vpack.c.b16 %v2136, %v2136
        %v2155 = vpack.c.b16 %v2137, %v2137
        %v2156 = vpack.c.b16 %v2138, %v2138
        %v2157 = vpack.c.b16 %v2139, %v2139
        %v2158 = vpack.c.b16 %v2140, %v2140
        %v2159 = vpack.c.b16 %v2141, %v2141
        %v2160 = vpack.c.b16 %v2142, %v2142
        %v2161 = vpack.c.b16 %v2143, %v2143
        %v2162 = vpack.c.b16 %v2144, %v2144
        %v2163 = vpack.c.b16 %v2145, %v2145
        %v2164 = vpack.c.b16 %v2146, %v2146
        %v2165 = vpack.c.b16 %v2147, %v2147
        %v2166 = vpack.c.b16 %v2148, %v2148
        %v2167 = vpack.c.b16 %v2149, %v2149
        %v2168 = vpack.c.b16 %v2150, %v2150
        %v2169 = vpack.c.b16 %v2151, %v2151
        %v2170 = vunpack.c.l.b16 %v2152
        %v2171 = vunpack.c.l.b16 %v2153
        %v2172 = vunpack.c.l.b16 %v2154
        %v2173 = vunpack.c.l.b16 %v2155
        %v2174 = vunpack.c.l.b16 %v2156
        %v2175 = vunpack.c.l.b16 %v2157
        %v2176 = vunpack.c.l.b16 %v2158
        %v2177 = vunpack.c.l.b16 %v2159
        %v2178 = vunpack.c.l.b16 %v2160
        %v2179 = vunpack.c.l.b16 %v2161
        %v2180 = vunpack.c.l.b16 %v2162
        %v2181 = vunpack.c.l.b16 %v2163
        %v2182 = vunpack.c.l.b16 %v2164
        %v2183 = vunpack.c.l.b16 %v2165
        %v2184 = vunpack.c.l.b16 %v2166
        %v2185 = vunpack.c.l.b16 %v2167
        %v2186 = vunpack.c.l.b16 %v2168
        %v2187 = vunpack.c.l.b16 %v2169
        %v2188 = vrot.slane %v2171, 7
        %vm2189 = vcmask 1041409
        %v2190 = vsel %vm2189, %v2188, %v2170
        %v2191 = vrot.slane %v2172, 6
        %vm2192 = vcmask 1042434
        %v2193 = vsel %vm2192, %v2191, %v2190
        %v2194 = vrot.slane %v2173, 5
        %vm2195 = vcmask 1043459
        %v2196 = vsel %vm2195, %v2194, %v2193
        %v2197 = vrot.slane %v2174, 4
        %vm2198 = vcmask 1044484
        %v2199 = vsel %vm2198, %v2197, %v2196
        %v2200 = vrot.slane %v2175, 3
        %vm2201 = vcmask 1045509
        %v2202 = vsel %vm2201, %v2200, %v2199
        %v2203 = vrot.slane %v2176, 2
        %vm2204 = vcmask 1046534
        %v2205 = vsel %vm2204, %v2203, %v2202
        %v2206 = vrot.slane %v2177, 1
        %vm2207 = vcmask 1047559
        %v2208 = vsel %vm2207, %v2206, %v2205
        %v2209 = vrot.slane %v2179, 7
        %v2210 = vsel %vm2189, %v2209, %v2178
        %v2211 = vrot.slane %v2180, 6
        %v2212 = vsel %vm2192, %v2211, %v2210
        %v2213 = vrot.slane %v2181, 5
        %v2214 = vsel %vm2195, %v2213, %v2212
        %v2215 = vrot.slane %v2182, 4
        %v2216 = vsel %vm2198, %v2215, %v2214
        %v2217 = vrot.slane %v2183, 3
        %v2218 = vsel %vm2201, %v2217, %v2216
        %v2219 = vrot.slane %v2184, 2
        %v2220 = vsel %vm2204, %v2219, %v2218
        %v2221 = vrot.slane %v2185, 1
        %v2222 = vsel %vm2207, %v2221, %v2220
        %v2223 = vrot.slane %v2187, 7
        %v2224 = vsel %vm2189, %v2223, %v2186
        %v2225 = vpack.c.b16 %v2208, %v2208
        %v2226 = vpack.c.b16 %v2222, %v2222
        %v2227 = vpack.c.b16 %v2224, %v2224
        %vm2231 = vcmask 125952
        %2232 = vst.msk [vmem:[#allocation2] sm:$0xf] %vm2231, %v2225
        %2233 = vst.msk [vmem:[#allocation2 + $0x8] sm:$0xf] %vm2231, %v2226
        %vm2234 = vcmask 122880
        %2235 = vst.msk [vmem:[#allocation2 + $0x10] sm:$0x1] %vm2234, %v2227
        %v2236 = vrot.slane %v2170, 1
        %v2237 = vsel %vm2189, %v2171, %v2236
        %v2238 = vrot.slane %v2172, 7
        %v2239 = vsel %vm2192, %v2238, %v2237
        %v2240 = vrot.slane %v2173, 6
        %v2241 = vsel %vm2195, %v2240, %v2239
        %v2242 = vrot.slane %v2174, 5
        %v2243 = vsel %vm2198, %v2242, %v2241
        %v2244 = vrot.slane %v2175, 4
        %v2245 = vsel %vm2201, %v2244, %v2243
        %v2246 = vrot.slane %v2176, 3
        %v2247 = vsel %vm2204, %v2246, %v2245
        %v2248 = vrot.slane %v2177, 2
        %v2249 = vsel %vm2207, %v2248, %v2247
        %v2250 = vrot.slane %v2178, 1
        %v2251 = vsel %vm2189, %v2179, %v2250
        %v2252 = vrot.slane %v2180, 7
        %v2253 = vsel %vm2192, %v2252, %v2251
        %v2254 = vrot.slane %v2181, 6
        %v2255 = vsel %vm2195, %v2254, %v2253
        %v2256 = vrot.slane %v2182, 5
        %v2257 = vsel %vm2198, %v2256, %v2255
        %v2258 = vrot.slane %v2183, 4
        %v2259 = vsel %vm2201, %v2258, %v2257
        %v2260 = vrot.slane %v2184, 3
        %v2261 = vsel %vm2204, %v2260, %v2259
        %v2262 = vrot.slane %v2185, 2
        %v2263 = vsel %vm2207, %v2262, %v2261
        %v2264 = vrot.slane %v2186, 1
        %v2265 = vsel %vm2189, %v2187, %v2264
        %v2266 = vpack.c.b16 %v2249, %v2249
        %v2267 = vpack.c.b16 %v2263, %v2263
        %v2268 = vpack.c.b16 %v2265, %v2265
        %2269 = vrot.lane.b32.xlu0 %v2266, 16
        %v2270 = vpop.permute.xlu0 %2269
        %2271 = vrot.lane.b32.xlu0 %v2267, 16
        %v2272 = vpop.permute.xlu0 %2271
        %2273 = vrot.lane.b32.xlu0 %v2268, 16
        %v2274 = vpop.permute.xlu0 %2273
        %vm2278 = vcmask 257152
        %2279 = vst.msk [vmem:[#allocation2] sm:$0xf] %vm2278, %v2270
        %2280 = vst.msk [vmem:[#allocation2 + $0x8] sm:$0xf] %vm2278, %v2272
        %vm2281 = vcmask 254080
        %2282 = vst.msk [vmem:[#allocation2 + $0x10] sm:$0x1] %vm2281, %v2274
        %v2283 = vrot.slane %v2170, 2
        %v2284 = vrot.slane %v2171, 1
        %v2285 = vsel %vm2189, %v2284, %v2283
        %v2286 = vsel %vm2192, %v2172, %v2285
        %v2287 = vrot.slane %v2173, 7
        %v2288 = vsel %vm2195, %v2287, %v2286
        %v2289 = vrot.slane %v2174, 6
        %v2290 = vsel %vm2198, %v2289, %v2288
        %v2291 = vrot.slane %v2175, 5
        %v2292 = vsel %vm2201, %v2291, %v2290
        %v2293 = vrot.slane %v2176, 4
        %v2294 = vsel %vm2204, %v2293, %v2292
        %v2295 = vrot.slane %v2177, 3
        %v2296 = vsel %vm2207, %v2295, %v2294
        %v2297 = vrot.slane %v2178, 2
        %v2298 = vrot.slane %v2179, 1
        %v2299 = vsel %vm2189, %v2298, %v2297
        %v2300 = vsel %vm2192, %v2180, %v2299
        %v2301 = vrot.slane %v2181, 7
        %v2302 = vsel %vm2195, %v2301, %v2300
        %v2303 = vrot.slane %v2182, 6
        %v2304 = vsel %vm2198, %v2303, %v2302
        %v2305 = vrot.slane %v2183, 5
        %v2306 = vsel %vm2201, %v2305, %v2304
        %v2307 = vrot.slane %v2184, 4
        %v2308 = vsel %vm2204, %v2307, %v2306
        %v2309 = vrot.slane %v2185, 3
        %v2310 = vsel %vm2207, %v2309, %v2308
        %v2311 = vrot.slane %v2186, 2
        %v2312 = vrot.slane %v2187, 1
        %v2313 = vsel %vm2189, %v2312, %v2311
        %v2314 = vpack.c.b16 %v2296, %v2296
        %v2315 = vpack.c.b16 %v2310, %v2310
        %v2316 = vpack.c.b16 %v2313, %v2313
        %2317 = vrot.lane.b32.xlu0 %v2314, 32
        %v2318 = vpop.permute.xlu0 %2317
        %2319 = vrot.lane.b32.xlu0 %v2315, 32
        %v2320 = vpop.permute.xlu0 %2319
        %2321 = vrot.lane.b32.xlu0 %v2316, 32
        %v2322 = vpop.permute.xlu0 %2321
        %vm2326 = vcmask 388352
        %2327 = vst.msk [vmem:[#allocation2] sm:$0xf] %vm2326, %v2318
        %2328 = vst.msk [vmem:[#allocation2 + $0x8] sm:$0xf] %vm2326, %v2320
        %vm2329 = vcmask 385280
        %2330 = vst.msk [vmem:[#allocation2 + $0x10] sm:$0x1] %vm2329, %v2322
        %v2331 = vrot.slane %v2170, 3
        %v2332 = vrot.slane %v2171, 2
        %v2333 = vsel %vm2189, %v2332, %v2331
        %v2334 = vrot.slane %v2172, 1
        %v2335 = vsel %vm2192, %v2334, %v2333
        %v2336 = vsel %vm2195, %v2173, %v2335
        %v2337 = vrot.slane %v2174, 7
        %v2338 = vsel %vm2198, %v2337, %v2336
        %v2339 = vrot.slane %v2175, 6
        %v2340 = vsel %vm2201, %v2339, %v2338
        %v2341 = vrot.slane %v2176, 5
        %v2342 = vsel %vm2204, %v2341, %v2340
        %v2343 = vrot.slane %v2177, 4
        %v2344 = vsel %vm2207, %v2343, %v2342
        %v2345 = vrot.slane %v2178, 3
        %v2346 = vrot.slane %v2179, 2
        %v2347 = vsel %vm2189, %v2346, %v2345
        %v2348 = vrot.slane %v2180, 1
        %v2349 = vsel %vm2192, %v2348, %v2347
        %v2350 = vsel %vm2195, %v2181, %v2349
        %v2351 = vrot.slane %v2182, 7
        %v2352 = vsel %vm2198, %v2351, %v2350
        %v2353 = vrot.slane %v2183, 6
        %v2354 = vsel %vm2201, %v2353, %v2352
        %v2355 = vrot.slane %v2184, 5
        %v2356 = vsel %vm2204, %v2355, %v2354
        %v2357 = vrot.slane %v2185, 4
        %v2358 = vsel %vm2207, %v2357, %v2356
        %v2359 = vrot.slane %v2186, 3
        %v2360 = vrot.slane %v2187, 2
        %v2361 = vsel %vm2189, %v2360, %v2359
        %v2362 = vpack.c.b16 %v2344, %v2344
        %v2363 = vpack.c.b16 %v2358, %v2358
        %v2364 = vpack.c.b16 %v2361, %v2361
        %2365 = vrot.lane.b32.xlu0 %v2362, 48
        %v2366 = vpop.permute.xlu0 %2365
        %2367 = vrot.lane.b32.xlu0 %v2363, 48
        %v2368 = vpop.permute.xlu0 %2367
        %2369 = vrot.lane.b32.xlu0 %v2364, 48
        %v2370 = vpop.permute.xlu0 %2369
        %vm2374 = vcmask 519552
        %2375 = vst.msk [vmem:[#allocation2] sm:$0xf] %vm2374, %v2366
        %2376 = vst.msk [vmem:[#allocation2 + $0x8] sm:$0xf] %vm2374, %v2368
        %vm2377 = vcmask 516480
        %2378 = vst.msk [vmem:[#allocation2 + $0x10] sm:$0x1] %vm2377, %v2370
        %v2379 = vrot.slane %v2170, 4
        %v2380 = vrot.slane %v2171, 3
        %v2381 = vsel %vm2189, %v2380, %v2379
        %v2382 = vrot.slane %v2172, 2
        %v2383 = vsel %vm2192, %v2382, %v2381
        %v2384 = vrot.slane %v2173, 1
        %v2385 = vsel %vm2195, %v2384, %v2383
        %v2386 = vsel %vm2198, %v2174, %v2385
        %v2387 = vrot.slane %v2175, 7
        %v2388 = vsel %vm2201, %v2387, %v2386
        %v2389 = vrot.slane %v2176, 6
        %v2390 = vsel %vm2204, %v2389, %v2388
        %v2391 = vrot.slane %v2177, 5
        %v2392 = vsel %vm2207, %v2391, %v2390
        %v2393 = vrot.slane %v2178, 4
        %v2394 = vrot.slane %v2179, 3
        %v2395 = vsel %vm2189, %v2394, %v2393
        %v2396 = vrot.slane %v2180, 2
        %v2397 = vsel %vm2192, %v2396, %v2395
        %v2398 = vrot.slane %v2181, 1
        %v2399 = vsel %vm2195, %v2398, %v2397
        %v2400 = vsel %vm2198, %v2182, %v2399
        %v2401 = vrot.slane %v2183, 7
        %v2402 = vsel %vm2201, %v2401, %v2400
        %v2403 = vrot.slane %v2184, 6
        %v2404 = vsel %vm2204, %v2403, %v2402
        %v2405 = vrot.slane %v2185, 5
        %v2406 = vsel %vm2207, %v2405, %v2404
        %v2407 = vrot.slane %v2186, 4
        %v2408 = vrot.slane %v2187, 3
        %v2409 = vsel %vm2189, %v2408, %v2407
        %v2410 = vpack.c.b16 %v2392, %v2392
        %v2411 = vpack.c.b16 %v2406, %v2406
        %v2412 = vpack.c.b16 %v2409, %v2409
        %2413 = vrot.lane.b32.xlu0 %v2410, 64
        %v2414 = vpop.permute.xlu0 %2413
        %2415 = vrot.lane.b32.xlu0 %v2411, 64
        %v2416 = vpop.permute.xlu0 %2415
        %2417 = vrot.lane.b32.xlu0 %v2412, 64
        %v2418 = vpop.permute.xlu0 %2417
        %vm2422 = vcmask 650752
        %2423 = vst.msk [vmem:[#allocation2] sm:$0xf] %vm2422, %v2414
        %2424 = vst.msk [vmem:[#allocation2 + $0x8] sm:$0xf] %vm2422, %v2416
        %vm2425 = vcmask 647680
        %2426 = vst.msk [vmem:[#allocation2 + $0x10] sm:$0x1] %vm2425, %v2418
        %v2427 = vrot.slane %v2170, 5
        %v2428 = vrot.slane %v2171, 4
        %v2429 = vsel %vm2189, %v2428, %v2427
        %v2430 = vrot.slane %v2172, 3
        %v2431 = vsel %vm2192, %v2430, %v2429
        %v2432 = vrot.slane %v2173, 2
        %v2433 = vsel %vm2195, %v2432, %v2431
        %v2434 = vrot.slane %v2174, 1
        %v2435 = vsel %vm2198, %v2434, %v2433
        %v2436 = vsel %vm2201, %v2175, %v2435
        %v2437 = vrot.slane %v2176, 7
        %v2438 = vsel %vm2204, %v2437, %v2436
        %v2439 = vrot.slane %v2177, 6
        %v2440 = vsel %vm2207, %v2439, %v2438
        %v2441 = vrot.slane %v2178, 5
        %v2442 = vrot.slane %v2179, 4
        %v2443 = vsel %vm2189, %v2442, %v2441
        %v2444 = vrot.slane %v2180, 3
        %v2445 = vsel %vm2192, %v2444, %v2443
        %v2446 = vrot.slane %v2181, 2
        %v2447 = vsel %vm2195, %v2446, %v2445
        %v2448 = vrot.slane %v2182, 1
        %v2449 = vsel %vm2198, %v2448, %v2447
        %v2450 = vsel %vm2201, %v2183, %v2449
        %v2451 = vrot.slane %v2184, 7
        %v2452 = vsel %vm2204, %v2451, %v2450
        %v2453 = vrot.slane %v2185, 6
        %v2454 = vsel %vm2207, %v2453, %v2452
        %v2455 = vrot.slane %v2186, 5
        %v2456 = vrot.slane %v2187, 4
        %v2457 = vsel %vm2189, %v2456, %v2455
        %v2458 = vpack.c.b16 %v2440, %v2440
        %v2459 = vpack.c.b16 %v2454, %v2454
        %v2460 = vpack.c.b16 %v2457, %v2457
        %2461 = vrot.lane.b32.xlu0 %v2458, 80
        %v2462 = vpop.permute.xlu0 %2461
        %2463 = vrot.lane.b32.xlu0 %v2459, 80
        %v2464 = vpop.permute.xlu0 %2463
        %2465 = vrot.lane.b32.xlu0 %v2460, 80
        %v2466 = vpop.permute.xlu0 %2465
        %vm2470 = vcmask 781952
        %2471 = vst.msk [vmem:[#allocation2] sm:$0xf] %vm2470, %v2462
        %2472 = vst.msk [vmem:[#allocation2 + $0x8] sm:$0xf] %vm2470, %v2464
        %vm2473 = vcmask 778880
        %2474 = vst.msk [vmem:[#allocation2 + $0x10] sm:$0x1] %vm2473, %v2466
        %v2475 = vrot.slane %v2170, 6
        %v2476 = vrot.slane %v2171, 5
        %v2477 = vsel %vm2189, %v2476, %v2475
        %v2478 = vrot.slane %v2172, 4
        %v2479 = vsel %vm2192, %v2478, %v2477
        %v2480 = vrot.slane %v2173, 3
        %v2481 = vsel %vm2195, %v2480, %v2479
        %v2482 = vrot.slane %v2174, 2
        %v2483 = vsel %vm2198, %v2482, %v2481
        %v2484 = vrot.slane %v2175, 1
        %v2485 = vsel %vm2201, %v2484, %v2483
        %v2486 = vsel %vm2204, %v2176, %v2485
        %v2487 = vrot.slane %v2177, 7
        %v2488 = vsel %vm2207, %v2487, %v2486
        %v2489 = vrot.slane %v2178, 6
        %v2490 = vrot.slane %v2179, 5
        %v2491 = vsel %vm2189, %v2490, %v2489
        %v2492 = vrot.slane %v2180, 4
        %v2493 = vsel %vm2192, %v2492, %v2491
        %v2494 = vrot.slane %v2181, 3
        %v2495 = vsel %vm2195, %v2494, %v2493
        %v2496 = vrot.slane %v2182, 2
        %v2497 = vsel %vm2198, %v2496, %v2495
        %v2498 = vrot.slane %v2183, 1
        %v2499 = vsel %vm2201, %v2498, %v2497
        %v2500 = vsel %vm2204, %v2184, %v2499
        %v2501 = vrot.slane %v2185, 7
        %v2502 = vsel %vm2207, %v2501, %v2500
        %v2503 = vrot.slane %v2186, 6
        %v2504 = vrot.slane %v2187, 5
        %v2505 = vsel %vm2189, %v2504, %v2503
        %v2506 = vpack.c.b16 %v2488, %v2488
        %v2507 = vpack.c.b16 %v2502, %v2502
        %v2508 = vpack.c.b16 %v2505, %v2505
        %2509 = vrot.lane.b32.xlu0 %v2506, 96
        %v2510 = vpop.permute.xlu0 %2509
        %2511 = vrot.lane.b32.xlu0 %v2507, 96
        %v2512 = vpop.permute.xlu0 %2511
        %2513 = vrot.lane.b32.xlu0 %v2508, 96
        %v2514 = vpop.permute.xlu0 %2513
        %vm2518 = vcmask 913152
        %2519 = vst.msk [vmem:[#allocation2] sm:$0xf] %vm2518, %v2510
        %2520 = vst.msk [vmem:[#allocation2 + $0x8] sm:$0xf] %vm2518, %v2512
        %vm2521 = vcmask 910080
        %2522 = vst.msk [vmem:[#allocation2 + $0x10] sm:$0x1] %vm2521, %v2514
        %v2523 = vrot.slane %v2170, 7
        %v2524 = vrot.slane %v2171, 6
        %v2525 = vsel %vm2189, %v2524, %v2523
        %v2526 = vrot.slane %v2172, 5
        %v2527 = vsel %vm2192, %v2526, %v2525
        %v2528 = vrot.slane %v2173, 4
        %v2529 = vsel %vm2195, %v2528, %v2527
        %v2530 = vrot.slane %v2174, 3
        %v2531 = vsel %vm2198, %v2530, %v2529
        %v2532 = vrot.slane %v2175, 2
        %v2533 = vsel %vm2201, %v2532, %v2531
        %v2534 = vrot.slane %v2176, 1
        %v2535 = vsel %vm2204, %v2534, %v2533
        %v2536 = vsel %vm2207, %v2177, %v2535
        %v2537 = vrot.slane %v2178, 7
        %v2538 = vrot.slane %v2179, 6
        %v2539 = vsel %vm2189, %v2538, %v2537
        %v2540 = vrot.slane %v2180, 5
        %v2541 = vsel %vm2192, %v2540, %v2539
        %v2542 = vrot.slane %v2181, 4
        %v2543 = vsel %vm2195, %v2542, %v2541
        %v2544 = vrot.slane %v2182, 3
        %v2545 = vsel %vm2198, %v2544, %v2543
        %v2546 = vrot.slane %v2183, 2
        %v2547 = vsel %vm2201, %v2546, %v2545
        %v2548 = vrot.slane %v2184, 1
        %v2549 = vsel %vm2204, %v2548, %v2547
        %v2550 = vsel %vm2207, %v2185, %v2549
        %v2551 = vrot.slane %v2186, 7
        %v2552 = vrot.slane %v2187, 6
        %v2553 = vsel %vm2189, %v2552, %v2551
        %v2554 = vpack.c.b16 %v2536, %v2536
        %v2555 = vpack.c.b16 %v2550, %v2550
        %v2556 = vpack.c.b16 %v2553, %v2553
        %2557 = vrot.lane.b32.xlu0 %v2554, 112
        %v2558 = vpop.permute.xlu0 %2557
        %2559 = vrot.lane.b32.xlu0 %v2555, 112
        %v2560 = vpop.permute.xlu0 %2559
        %2561 = vrot.lane.b32.xlu0 %v2556, 112
        %v2562 = vpop.permute.xlu0 %2561
        %vm2566 = vcmask 1044352
        %2567 = vst.msk [vmem:[#allocation2] sm:$0xf] %vm2566, %v2558
        %2568 = vst.msk [vmem:[#allocation2 + $0x8] sm:$0xf] %vm2566, %v2560
        %vm2569 = vcmask 1041280
        %2570 = vst.msk [vmem:[#allocation2 + $0x10] sm:$0x1] %vm2569, %v2562
        %v2571 = vunpack.c.h.b16 %v2098
        %v2572 = vunpack.c.h.b16 %v2099
        %v2573 = vunpack.c.h.b16 %v2100
        %v2574 = vunpack.c.h.b16 %v2101
        %v2575 = vunpack.c.h.b16 %v2102
        %v2576 = vunpack.c.h.b16 %v2103
        %v2577 = vunpack.c.h.b16 %v2104
        %v2578 = vunpack.c.h.b16 %v2105
        %v2579 = vunpack.c.h.b16 %v2106
        %v2580 = vunpack.c.h.b16 %v2107
        %v2581 = vunpack.c.h.b16 %v2108
        %v2582 = vunpack.c.h.b16 %v2109
        %v2583 = vunpack.c.h.b16 %v2110
        %v2584 = vunpack.c.h.b16 %v2111
        %v2585 = vunpack.c.h.b16 %v2112
        %v2586 = vunpack.c.h.b16 %v2113
        %v2587 = vunpack.c.h.b16 %v2114
        %v2588 = vunpack.c.h.b16 %v2115
        %v2589 = vpack.c.b16 %v2571, %v2571
        %v2590 = vpack.c.b16 %v2572, %v2572
        %v2591 = vpack.c.b16 %v2573, %v2573
        %v2592 = vpack.c.b16 %v2574, %v2574
        %v2593 = vpack.c.b16 %v2575, %v2575
        %v2594 = vpack.c.b16 %v2576, %v2576
        %v2595 = vpack.c.b16 %v2577, %v2577
        %v2596 = vpack.c.b16 %v2578, %v2578
        %v2597 = vpack.c.b16 %v2579, %v2579
        %v2598 = vpack.c.b16 %v2580, %v2580
        %v2599 = vpack.c.b16 %v2581, %v2581
        %v2600 = vpack.c.b16 %v2582, %v2582
        %v2601 = vpack.c.b16 %v2583, %v2583
        %v2602 = vpack.c.b16 %v2584, %v2584
        %v2603 = vpack.c.b16 %v2585, %v2585
        %v2604 = vpack.c.b16 %v2586, %v2586
        %v2605 = vpack.c.b16 %v2587, %v2587
        %v2606 = vpack.c.b16 %v2588, %v2588
        %v2607 = vunpack.c.l.b16 %v2589
        %v2608 = vunpack.c.l.b16 %v2590
        %v2609 = vunpack.c.l.b16 %v2591
        %v2610 = vunpack.c.l.b16 %v2592
        %v2611 = vunpack.c.l.b16 %v2593
        %v2612 = vunpack.c.l.b16 %v2594
        %v2613 = vunpack.c.l.b16 %v2595
        %v2614 = vunpack.c.l.b16 %v2596
        %v2615 = vunpack.c.l.b16 %v2597
        %v2616 = vunpack.c.l.b16 %v2598
        %v2617 = vunpack.c.l.b16 %v2599
        %v2618 = vunpack.c.l.b16 %v2600
        %v2619 = vunpack.c.l.b16 %v2601
        %v2620 = vunpack.c.l.b16 %v2602
        %v2621 = vunpack.c.l.b16 %v2603
        %v2622 = vunpack.c.l.b16 %v2604
        %v2623 = vunpack.c.l.b16 %v2605
        %v2624 = vunpack.c.l.b16 %v2606
        %v2625 = vrot.slane %v2608, 7
        %v2626 = vsel %vm2189, %v2625, %v2607
        %v2627 = vrot.slane %v2609, 6
        %v2628 = vsel %vm2192, %v2627, %v2626
        %v2629 = vrot.slane %v2610, 5
        %v2630 = vsel %vm2195, %v2629, %v2628
        %v2631 = vrot.slane %v2611, 4
        %v2632 = vsel %vm2198, %v2631, %v2630
        %v2633 = vrot.slane %v2612, 3
        %v2634 = vsel %vm2201, %v2633, %v2632
        %v2635 = vrot.slane %v2613, 2
        %v2636 = vsel %vm2204, %v2635, %v2634
        %v2637 = vrot.slane %v2614, 1
        %v2638 = vsel %vm2207, %v2637, %v2636
        %v2639 = vrot.slane %v2616, 7
        %v2640 = vsel %vm2189, %v2639, %v2615
        %v2641 = vrot.slane %v2617, 6
        %v2642 = vsel %vm2192, %v2641, %v2640
        %v2643 = vrot.slane %v2618, 5
        %v2644 = vsel %vm2195, %v2643, %v2642
        %v2645 = vrot.slane %v2619, 4
        %v2646 = vsel %vm2198, %v2645, %v2644
        %v2647 = vrot.slane %v2620, 3
        %v2648 = vsel %vm2201, %v2647, %v2646
        %v2649 = vrot.slane %v2621, 2
        %v2650 = vsel %vm2204, %v2649, %v2648
        %v2651 = vrot.slane %v2622, 1
        %v2652 = vsel %vm2207, %v2651, %v2650
        %v2653 = vrot.slane %v2624, 7
        %v2654 = vsel %vm2189, %v2653, %v2623
        %v2655 = vpack.c.b16 %v2638, %v2638
        %v2656 = vpack.c.b16 %v2652, %v2652
        %v2657 = vpack.c.b16 %v2654, %v2654
        %2661 = vst.msk [vmem:[#allocation2 + $0x4] sm:$0xf] %vm2231, %v2655
        %2662 = vst.msk [vmem:[#allocation2 + $0xc] sm:$0xf] %vm2231, %v2656
        %2663 = vst.msk [vmem:[#allocation2 + $0x14] sm:$0x1] %vm2234, %v2657
        %v2664 = vrot.slane %v2607, 1
        %v2665 = vsel %vm2189, %v2608, %v2664
        %v2666 = vrot.slane %v2609, 7
        %v2667 = vsel %vm2192, %v2666, %v2665
        %v2668 = vrot.slane %v2610, 6
        %v2669 = vsel %vm2195, %v2668, %v2667
        %v2670 = vrot.slane %v2611, 5
        %v2671 = vsel %vm2198, %v2670, %v2669
        %v2672 = vrot.slane %v2612, 4
        %v2673 = vsel %vm2201, %v2672, %v2671
        %v2674 = vrot.slane %v2613, 3
        %v2675 = vsel %vm2204, %v2674, %v2673
        %v2676 = vrot.slane %v2614, 2
        %v2677 = vsel %vm2207, %v2676, %v2675
        %v2678 = vrot.slane %v2615, 1
        %v2679 = vsel %vm2189, %v2616, %v2678
        %v2680 = vrot.slane %v2617, 7
        %v2681 = vsel %vm2192, %v2680, %v2679
        %v2682 = vrot.slane %v2618, 6
        %v2683 = vsel %vm2195, %v2682, %v2681
        %v2684 = vrot.slane %v2619, 5
        %v2685 = vsel %vm2198, %v2684, %v2683
        %v2686 = vrot.slane %v2620, 4
        %v2687 = vsel %vm2201, %v2686, %v2685
        %v2688 = vrot.slane %v2621, 3
        %v2689 = vsel %vm2204, %v2688, %v2687
        %v2690 = vrot.slane %v2622, 2
        %v2691 = vsel %vm2207, %v2690, %v2689
        %v2692 = vrot.slane %v2623, 1
        %v2693 = vsel %vm2189, %v2624, %v2692
        %v2694 = vpack.c.b16 %v2677, %v2677
        %v2695 = vpack.c.b16 %v2691, %v2691
        %v2696 = vpack.c.b16 %v2693, %v2693
        %2697 = vrot.lane.b32.xlu0 %v2694, 16
        %v2698 = vpop.permute.xlu0 %2697
        %2699 = vrot.lane.b32.xlu0 %v2695, 16
        %v2700 = vpop.permute.xlu0 %2699
        %2701 = vrot.lane.b32.xlu0 %v2696, 16
        %v2702 = vpop.permute.xlu0 %2701
        %2706 = vst.msk [vmem:[#allocation2 + $0x4] sm:$0xf] %vm2278, %v2698
        %2707 = vst.msk [vmem:[#allocation2 + $0xc] sm:$0xf] %vm2278, %v2700
        %2708 = vst.msk [vmem:[#allocation2 + $0x14] sm:$0x1] %vm2281, %v2702
        %v2709 = vrot.slane %v2607, 2
        %v2710 = vrot.slane %v2608, 1
        %v2711 = vsel %vm2189, %v2710, %v2709
        %v2712 = vsel %vm2192, %v2609, %v2711
        %v2713 = vrot.slane %v2610, 7
        %v2714 = vsel %vm2195, %v2713, %v2712
        %v2715 = vrot.slane %v2611, 6
        %v2716 = vsel %vm2198, %v2715, %v2714
        %v2717 = vrot.slane %v2612, 5
        %v2718 = vsel %vm2201, %v2717, %v2716
        %v2719 = vrot.slane %v2613, 4
        %v2720 = vsel %vm2204, %v2719, %v2718
        %v2721 = vrot.slane %v2614, 3
        %v2722 = vsel %vm2207, %v2721, %v2720
        %v2723 = vrot.slane %v2615, 2
        %v2724 = vrot.slane %v2616, 1
        %v2725 = vsel %vm2189, %v2724, %v2723
        %v2726 = vsel %vm2192, %v2617, %v2725
        %v2727 = vrot.slane %v2618, 7
        %v2728 = vsel %vm2195, %v2727, %v2726
        %v2729 = vrot.slane %v2619, 6
        %v2730 = vsel %vm2198, %v2729, %v2728
        %v2731 = vrot.slane %v2620, 5
        %v2732 = vsel %vm2201, %v2731, %v2730
        %v2733 = vrot.slane %v2621, 4
        %v2734 = vsel %vm2204, %v2733, %v2732
        %v2735 = vrot.slane %v2622, 3
        %v2736 = vsel %vm2207, %v2735, %v2734
        %v2737 = vrot.slane %v2623, 2
        %v2738 = vrot.slane %v2624, 1
        %v2739 = vsel %vm2189, %v2738, %v2737
        %v2740 = vpack.c.b16 %v2722, %v2722
        %v2741 = vpack.c.b16 %v2736, %v2736
        %v2742 = vpack.c.b16 %v2739, %v2739
        %2743 = vrot.lane.b32.xlu0 %v2740, 32
        %v2744 = vpop.permute.xlu0 %2743
        %2745 = vrot.lane.b32.xlu0 %v2741, 32
        %v2746 = vpop.permute.xlu0 %2745
        %2747 = vrot.lane.b32.xlu0 %v2742, 32
        %v2748 = vpop.permute.xlu0 %2747
        %2752 = vst.msk [vmem:[#allocation2 + $0x4] sm:$0xf] %vm2326, %v2744
        %2753 = vst.msk [vmem:[#allocation2 + $0xc] sm:$0xf] %vm2326, %v2746
        %2754 = vst.msk [vmem:[#allocation2 + $0x14] sm:$0x1] %vm2329, %v2748
        %v2755 = vrot.slane %v2607, 3
        %v2756 = vrot.slane %v2608, 2
        %v2757 = vsel %vm2189, %v2756, %v2755
        %v2758 = vrot.slane %v2609, 1
        %v2759 = vsel %vm2192, %v2758, %v2757
        %v2760 = vsel %vm2195, %v2610, %v2759
        %v2761 = vrot.slane %v2611, 7
        %v2762 = vsel %vm2198, %v2761, %v2760
        %v2763 = vrot.slane %v2612, 6
        %v2764 = vsel %vm2201, %v2763, %v2762
        %v2765 = vrot.slane %v2613, 5
        %v2766 = vsel %vm2204, %v2765, %v2764
        %v2767 = vrot.slane %v2614, 4
        %v2768 = vsel %vm2207, %v2767, %v2766
        %v2769 = vrot.slane %v2615, 3
        %v2770 = vrot.slane %v2616, 2
        %v2771 = vsel %vm2189, %v2770, %v2769
        %v2772 = vrot.slane %v2617, 1
        %v2773 = vsel %vm2192, %v2772, %v2771
        %v2774 = vsel %vm2195, %v2618, %v2773
        %v2775 = vrot.slane %v2619, 7
        %v2776 = vsel %vm2198, %v2775, %v2774
        %v2777 = vrot.slane %v2620, 6
        %v2778 = vsel %vm2201, %v2777, %v2776
        %v2779 = vrot.slane %v2621, 5
        %v2780 = vsel %vm2204, %v2779, %v2778
        %v2781 = vrot.slane %v2622, 4
        %v2782 = vsel %vm2207, %v2781, %v2780
        %v2783 = vrot.slane %v2623, 3
        %v2784 = vrot.slane %v2624, 2
        %v2785 = vsel %vm2189, %v2784, %v2783
        %v2786 = vpack.c.b16 %v2768, %v2768
        %v2787 = vpack.c.b16 %v2782, %v2782
        %v2788 = vpack.c.b16 %v2785, %v2785
        %2789 = vrot.lane.b32.xlu0 %v2786, 48
        %v2790 = vpop.permute.xlu0 %2789
        %2791 = vrot.lane.b32.xlu0 %v2787, 48
        %v2792 = vpop.permute.xlu0 %2791
        %2793 = vrot.lane.b32.xlu0 %v2788, 48
        %v2794 = vpop.permute.xlu0 %2793
        %2798 = vst.msk [vmem:[#allocation2 + $0x4] sm:$0xf] %vm2374, %v2790
        %2799 = vst.msk [vmem:[#allocation2 + $0xc] sm:$0xf] %vm2374, %v2792
        %2800 = vst.msk [vmem:[#allocation2 + $0x14] sm:$0x1] %vm2377, %v2794
        %v2801 = vrot.slane %v2607, 4
        %v2802 = vrot.slane %v2608, 3
        %v2803 = vsel %vm2189, %v2802, %v2801
        %v2804 = vrot.slane %v2609, 2
        %v2805 = vsel %vm2192, %v2804, %v2803
        %v2806 = vrot.slane %v2610, 1
        %v2807 = vsel %vm2195, %v2806, %v2805
        %v2808 = vsel %vm2198, %v2611, %v2807
        %v2809 = vrot.slane %v2612, 7
        %v2810 = vsel %vm2201, %v2809, %v2808
        %v2811 = vrot.slane %v2613, 6
        %v2812 = vsel %vm2204, %v2811, %v2810
        %v2813 = vrot.slane %v2614, 5
        %v2814 = vsel %vm2207, %v2813, %v2812
        %v2815 = vrot.slane %v2615, 4
        %v2816 = vrot.slane %v2616, 3
        %v2817 = vsel %vm2189, %v2816, %v2815
        %v2818 = vrot.slane %v2617, 2
        %v2819 = vsel %vm2192, %v2818, %v2817
        %v2820 = vrot.slane %v2618, 1
        %v2821 = vsel %vm2195, %v2820, %v2819
        %v2822 = vsel %vm2198, %v2619, %v2821
        %v2823 = vrot.slane %v2620, 7
        %v2824 = vsel %vm2201, %v2823, %v2822
        %v2825 = vrot.slane %v2621, 6
        %v2826 = vsel %vm2204, %v2825, %v2824
        %v2827 = vrot.slane %v2622, 5
        %v2828 = vsel %vm2207, %v2827, %v2826
        %v2829 = vrot.slane %v2623, 4
        %v2830 = vrot.slane %v2624, 3
        %v2831 = vsel %vm2189, %v2830, %v2829
        %v2832 = vpack.c.b16 %v2814, %v2814
        %v2833 = vpack.c.b16 %v2828, %v2828
        %v2834 = vpack.c.b16 %v2831, %v2831
        %2835 = vrot.lane.b32.xlu0 %v2832, 64
        %v2836 = vpop.permute.xlu0 %2835
        %2837 = vrot.lane.b32.xlu0 %v2833, 64
        %v2838 = vpop.permute.xlu0 %2837
        %2839 = vrot.lane.b32.xlu0 %v2834, 64
        %v2840 = vpop.permute.xlu0 %2839
        %2844 = vst.msk [vmem:[#allocation2 + $0x4] sm:$0xf] %vm2422, %v2836
        %2845 = vst.msk [vmem:[#allocation2 + $0xc] sm:$0xf] %vm2422, %v2838
        %2846 = vst.msk [vmem:[#allocation2 + $0x14] sm:$0x1] %vm2425, %v2840
        %v2847 = vrot.slane %v2607, 5
        %v2848 = vrot.slane %v2608, 4
        %v2849 = vsel %vm2189, %v2848, %v2847
        %v2850 = vrot.slane %v2609, 3
        %v2851 = vsel %vm2192, %v2850, %v2849
        %v2852 = vrot.slane %v2610, 2
        %v2853 = vsel %vm2195, %v2852, %v2851
        %v2854 = vrot.slane %v2611, 1
        %v2855 = vsel %vm2198, %v2854, %v2853
        %v2856 = vsel %vm2201, %v2612, %v2855
        %v2857 = vrot.slane %v2613, 7
        %v2858 = vsel %vm2204, %v2857, %v2856
        %v2859 = vrot.slane %v2614, 6
        %v2860 = vsel %vm2207, %v2859, %v2858
        %v2861 = vrot.slane %v2615, 5
        %v2862 = vrot.slane %v2616, 4
        %v2863 = vsel %vm2189, %v2862, %v2861
        %v2864 = vrot.slane %v2617, 3
        %v2865 = vsel %vm2192, %v2864, %v2863
        %v2866 = vrot.slane %v2618, 2
        %v2867 = vsel %vm2195, %v2866, %v2865
        %v2868 = vrot.slane %v2619, 1
        %v2869 = vsel %vm2198, %v2868, %v2867
        %v2870 = vsel %vm2201, %v2620, %v2869
        %v2871 = vrot.slane %v2621, 7
        %v2872 = vsel %vm2204, %v2871, %v2870
        %v2873 = vrot.slane %v2622, 6
        %v2874 = vsel %vm2207, %v2873, %v2872
        %v2875 = vrot.slane %v2623, 5
        %v2876 = vrot.slane %v2624, 4
        %v2877 = vsel %vm2189, %v2876, %v2875
        %v2878 = vpack.c.b16 %v2860, %v2860
        %v2879 = vpack.c.b16 %v2874, %v2874
        %v2880 = vpack.c.b16 %v2877, %v2877
        %2881 = vrot.lane.b32.xlu0 %v2878, 80
        %v2882 = vpop.permute.xlu0 %2881
        %2883 = vrot.lane.b32.xlu0 %v2879, 80
        %v2884 = vpop.permute.xlu0 %2883
        %2885 = vrot.lane.b32.xlu0 %v2880, 80
        %v2886 = vpop.permute.xlu0 %2885
        %2890 = vst.msk [vmem:[#allocation2 + $0x4] sm:$0xf] %vm2470, %v2882
        %2891 = vst.msk [vmem:[#allocation2 + $0xc] sm:$0xf] %vm2470, %v2884
        %2892 = vst.msk [vmem:[#allocation2 + $0x14] sm:$0x1] %vm2473, %v2886
        %v2893 = vrot.slane %v2607, 6
        %v2894 = vrot.slane %v2608, 5
        %v2895 = vsel %vm2189, %v2894, %v2893
        %v2896 = vrot.slane %v2609, 4
        %v2897 = vsel %vm2192, %v2896, %v2895
        %v2898 = vrot.slane %v2610, 3
        %v2899 = vsel %vm2195, %v2898, %v2897
        %v2900 = vrot.slane %v2611, 2
        %v2901 = vsel %vm2198, %v2900, %v2899
        %v2902 = vrot.slane %v2612, 1
        %v2903 = vsel %vm2201, %v2902, %v2901
        %v2904 = vsel %vm2204, %v2613, %v2903
        %v2905 = vrot.slane %v2614, 7
        %v2906 = vsel %vm2207, %v2905, %v2904
        %v2907 = vrot.slane %v2615, 6
        %v2908 = vrot.slane %v2616, 5
        %v2909 = vsel %vm2189, %v2908, %v2907
        %v2910 = vrot.slane %v2617, 4
        %v2911 = vsel %vm2192, %v2910, %v2909
        %v2912 = vrot.slane %v2618, 3
        %v2913 = vsel %vm2195, %v2912, %v2911
        %v2914 = vrot.slane %v2619, 2
        %v2915 = vsel %vm2198, %v2914, %v2913
        %v2916 = vrot.slane %v2620, 1
        %v2917 = vsel %vm2201, %v2916, %v2915
        %v2918 = vsel %vm2204, %v2621, %v2917
        %v2919 = vrot.slane %v2622, 7
        %v2920 = vsel %vm2207, %v2919, %v2918
        %v2921 = vrot.slane %v2623, 6
        %v2922 = vrot.slane %v2624, 5
        %v2923 = vsel %vm2189, %v2922, %v2921
        %v2924 = vpack.c.b16 %v2906, %v2906
        %v2925 = vpack.c.b16 %v2920, %v2920
        %v2926 = vpack.c.b16 %v2923, %v2923
        %2927 = vrot.lane.b32.xlu0 %v2924, 96
        %v2928 = vpop.permute.xlu0 %2927
        %2929 = vrot.lane.b32.xlu0 %v2925, 96
        %v2930 = vpop.permute.xlu0 %2929
        %2931 = vrot.lane.b32.xlu0 %v2926, 96
        %v2932 = vpop.permute.xlu0 %2931
        %2936 = vst.msk [vmem:[#allocation2 + $0x4] sm:$0xf] %vm2518, %v2928
        %2937 = vst.msk [vmem:[#allocation2 + $0xc] sm:$0xf] %vm2518, %v2930
        %2938 = vst.msk [vmem:[#allocation2 + $0x14] sm:$0x1] %vm2521, %v2932
        %v2939 = vrot.slane %v2607, 7
        %v2940 = vrot.slane %v2608, 6
        %v2941 = vsel %vm2189, %v2940, %v2939
        %v2942 = vrot.slane %v2609, 5
        %v2943 = vsel %vm2192, %v2942, %v2941
        %v2944 = vrot.slane %v2610, 4
        %v2945 = vsel %vm2195, %v2944, %v2943
        %v2946 = vrot.slane %v2611, 3
        %v2947 = vsel %vm2198, %v2946, %v2945
        %v2948 = vrot.slane %v2612, 2
        %v2949 = vsel %vm2201, %v2948, %v2947
        %v2950 = vrot.slane %v2613, 1
        %v2951 = vsel %vm2204, %v2950, %v2949
        %v2952 = vsel %vm2207, %v2614, %v2951
        %v2953 = vrot.slane %v2615, 7
        %v2954 = vrot.slane %v2616, 6
        %v2955 = vsel %vm2189, %v2954, %v2953
        %v2956 = vrot.slane %v2617, 5
        %v2957 = vsel %vm2192, %v2956, %v2955
        %v2958 = vrot.slane %v2618, 4
        %v2959 = vsel %vm2195, %v2958, %v2957
        %v2960 = vrot.slane %v2619, 3
        %v2961 = vsel %vm2198, %v2960, %v2959
        %v2962 = vrot.slane %v2620, 2
        %v2963 = vsel %vm2201, %v2962, %v2961
        %v2964 = vrot.slane %v2621, 1
        %v2965 = vsel %vm2204, %v2964, %v2963
        %v2966 = vsel %vm2207, %v2622, %v2965
        %v2967 = vrot.slane %v2623, 7
        %v2968 = vrot.slane %v2624, 6
        %v2969 = vsel %vm2189, %v2968, %v2967
        %v2970 = vpack.c.b16 %v2952, %v2952
        %v2971 = vpack.c.b16 %v2966, %v2966
        %v2972 = vpack.c.b16 %v2969, %v2969
        %2973 = vrot.lane.b32.xlu0 %v2970, 112
        %v2974 = vpop.permute.xlu0 %2973
        %2975 = vrot.lane.b32.xlu0 %v2971, 112
        %v2976 = vpop.permute.xlu0 %2975
        %2977 = vrot.lane.b32.xlu0 %v2972, 112
        %v2978 = vpop.permute.xlu0 %2977
        %2982 = vst.msk [vmem:[#allocation2 + $0x4] sm:$0xf] %vm2566, %v2974
        %2983 = vst.msk [vmem:[#allocation2 + $0xc] sm:$0xf] %vm2566, %v2976
        %2984 = vst.msk [vmem:[#allocation2 + $0x14] sm:$0x1] %vm2569, %v2978
        %v2985 = vld [vmem:[%s3] sm:$0xf]
        %v2986 = vld [vmem:[%s3 + $0x4] sm:$0xf]
        %v2987 = vld [vmem:[%s3 + $0x8] sm:$0xf]
        %v2988 = vld [vmem:[#allocation2] sm:$0xff]
        %v2989 = vld [vmem:[#allocation2 + $0x8] sm:$0xff]
        %v2990 = vld [vmem:[#allocation2 + $0x10] sm:$0x11]
        %v2994 = vunpack.c.l.b16 %v2985
        %v2995 = vunpack.c.l.b16 %v2986
        %v2996 = vunpack.c.l.b16 %v2987
        %v2997 = vpack.c.b16 %v2995, %v2994
        %v2998 = vpack.c.b16 %v2996, %v2996
        %v3002 = vunpack.c.l.b16 %v2988
        %v3003 = vunpack.c.h.b16 %v2988
        %v3004 = vunpack.c.l.b16 %v2989
        %v3005 = vunpack.c.h.b16 %v2989
        %v3006 = vunpack.c.l.b16 %v2990
        %v3007 = vunpack.c.h.b16 %v2990
        %v3008 = vpack.c.b16 %v3004, %v3002
        %v3009 = vpack.c.b16 %v3005, %v3003
        %v3010 = vpack.c.b16 %v3006, %v3006
        %v3011 = vpack.c.b16 %v3007, %v3007
        %vm3014 = vcmask 146432
        %v3016 = vsel %vm3014, %v2997, 0
        %v3019 = vsel %vm3014, %v2998, 0
        %vm3021 = vcmask 1040384
        %v3023 = vsel %vm3021, %v3010, 0
        %v3026 = vsel %vm3021, %v3011, 0
        %3028 = vmatprep.subr.bf16.mxu0 %v3009
        %3029 = vmatpush1.bf16.msra.mxu0 %v3008
        %3030 = vmatprep.subr.bf16.mxu0 %v3026
        %3031 = vmatpush1.bf16.msra.mxu0 %v3023
        %3032 = vmatprep.subr.bf16.mxu0 0
        %3033 = vmatpush1.bf16.msra.mxu0 0
        %3034 = vmatprep.subr.bf16.mxu0 0
        %3035 = vmatpush1.bf16.msra.mxu0 0
        %3036 = vmatprep.subr.bf16.mxu0 0
        %3037 = vmatpush1.bf16.msra.mxu0 0
        %3038 = vmatprep.subr.bf16.mxu0 0
        %3039 = vmatpush1.bf16.msra.mxu0 0
        %3040 = vmatprep.subr.bf16.mxu0 0
        %3041 = vmatpush1.bf16.msra.mxu0 0
        %3042 = vmatprep.subr.bf16.mxu0 0
        %3043 = vmatpush1.bf16.msra.mxu0 0
        %3044 = vmatprep.subr.bf16.mxu0 0
        %3045 = vmatpush1.bf16.msra.mxu0 0
        %3046 = vmatprep.subr.bf16.mxu0 0
        %3047 = vmatpush1.bf16.msra.mxu0 0
        %3048 = vmatprep.subr.bf16.mxu0 0
        %3049 = vmatpush1.bf16.msra.mxu0 0
        %3050 = vmatprep.subr.bf16.mxu0 0
        %3051 = vmatpush1.bf16.msra.mxu0 0
        %3052 = vmatprep.subr.bf16.mxu0 0
        %3053 = vmatpush1.bf16.msra.mxu0 0
        %3054 = vmatprep.subr.bf16.mxu0 0
        %3055 = vmatpush1.bf16.msra.mxu0 0
        %3056 = vmatprep.subr.bf16.mxu0 0
        %3057 = vmatpush1.bf16.msra.mxu0 0
        %3058 = vmatprep.subr.bf16.mxu0 0
        %3059 = vmatpush1.bf16.msra.mxu0 0
        %3060 = vmatprep.mubr.bf16.mxu0 0
        %3061 = vmatmul.mubr.bf16.gmra.mrb[0].mxu0 %v3016
        %v3062 = vpop.f32.mrb[0].mxu0
        %v3063 = vadd.f32 0.0, %v3062
        %v3064 = vpop.f32.mrb[0].mxu0
        %v3065 = vadd.f32 0.0, %v3064
        %v3066 = vpop.f32.mrb[0].mxu0
        %v3067 = vadd.f32 0.0, %v3066
        %v3068 = vpop.f32.mrb[0].mxu0
        %v3069 = vadd.f32 0.0, %v3068
        %3070 = vmatprep.mubr.bf16.mxu0 0
        %3071 = vmatmul.mubr.bf16.gmra.mrb[0].mxu0 %v3019
        %v3072 = vpop.f32.mrb[0].mxu0
        %v3073 = vadd.f32 0.0, %v3072
        %v3074 = vpop.f32.mrb[0].mxu0
        %v3075 = vadd.f32 0.0, %v3074
        %v3076 = vpop.f32.mrb[0].mxu0
        %v3077 = vpop.f32.mrb[0].mxu0
        %3078 = vdwg.mxu0
        %v3079 = vld [vmem:[%s4] sm:$0xff]
        %v3080 = vld [vmem:[%s4 + $0x8] sm:$0xff]
        %v3081 = vld [vmem:[%s4 + $0x10] sm:$0xff]
        %3083 = vset.pattern.permute.xlu0 0
        %3084 = vperm.xlu0 %3083, %v3079
        %v3085 = vpop.permute.xlu0 %3084
        %3088 = vset.pattern.permute.xlu0 0
        %3089 = vperm.xlu0 %3088, %v3080
        %v3090 = vpop.permute.xlu0 %3089
        %3093 = vset.pattern.permute.xlu0 0
        %3094 = vperm.xlu0 %3093, %v3081
        %v3095 = vpop.permute.xlu0 %3094
        %v3097 = vmul.f32 %v3063, %v3085
        %v3098 = vmul.f32 %v3065, %v3085
        %v3099 = vmul.f32 %v3067, %v3090
        %v3100 = vmul.f32 %v3069, %v3090
        %v3101 = vmul.f32 %v3073, %v3095
        %v3102 = vmul.f32 %v3075, %v3095
        %v3103 = vld [vmem:[%s5] sm:$0xff]
        %v3104 = vld [vmem:[%s5 + $0x8] sm:$0xff]
        %v3105 = vld [vmem:[%s5 + $0x10] sm:$0xff]
        %3107 = vset.pattern.permute.xlu0 0
        %3108 = vperm.xlu0 %3107, %v3103
        %v3109 = vpop.permute.xlu0 %3108
        %3112 = vset.pattern.permute.xlu0 0
        %3113 = vperm.xlu0 %3112, %v3104
        %v3114 = vpop.permute.xlu0 %3113
        %3117 = vset.pattern.permute.xlu0 0
        %3118 = vperm.xlu0 %3117, %v3105
        %v3119 = vpop.permute.xlu0 %3118
        %v3121 = vsub.f32 %v3097, %v3109
        %v3122 = vsub.f32 %v3098, %v3109
        %v3123 = vsub.f32 %v3099, %v3114
        %v3124 = vsub.f32 %v3100, %v3114
        %v3125 = vsub.f32 %v3101, %v3119
        %v3126 = vsub.f32 %v3102, %v3119
        %3127 = vst [vmem:[%s244] sm:$0xff] %v3121
        %3128 = vst [vmem:[%s244 + $0x8] sm:$0xff] %v3122
        %3129 = vst [vmem:[%s244 + $0x10] sm:$0xff] %v3123
        %3130 = vst [vmem:[%s244 + $0x18] sm:$0xff] %v3124
        %3131 = vst [vmem:[%s244 + $0x20] sm:$0xff] %v3125
        %3132 = vst [vmem:[%s244 + $0x28] sm:$0xff] %v3126
        %s3133 = sand.u32 %s159, 1
        %s3134 = scalar_lea.sflag [#allocation4], %s3133
        %s3135 = sand.u32 %s159, 1
        %s3136 = smul.addr %s3135, 48
        %s3137 = scalar_lea.vmem [#allocation3], %s3136
        // Predicated region
        $region45: #{tpu_custom_call.1} parent=43 // pred_check
          %p3138 = pneg %p169
        $region46: #{tpu_custom_call.1} parent=43 // pred_check_branch
          %3140 = sbr.rel (%p3138) target = $region48
        $region47: #{tpu_custom_call.1} parent=43 // pred_region
          %s3142 = ssub.s32 768, 768
          %3143 = vsyncadd %s3134, %s3142
          %s3144 = smul.addr %s20, 6
          %s3145 = smul.addr %s3144, 128
          %s3146 = scalar_lea.hbm %s6, %s3145
          %s3147 = sshll.u32 %s3137, 4
          %s3148 = int_to_ptr.vmem [resolvable:$true] %s3147
          %3153 = dma.vmem_to_hbm [thread:$0]  %s3148, 768, %s3146, %s3134, 256, 256, 16
        $region48: #{tpu_custom_call.1} parent=43 // pred_fallthru
          _
      $region44: #{tpu_custom_call.1} parent=5 // pred_fallthru
        _
      %p3154 = scmp.le.s32.totalorder 2, %s15
      // Predicated region
      $region49: #{tpu_custom_call.1} parent=5 // pred_check
        %p3155 = pneg %p3154
      $region50: #{tpu_custom_call.1} parent=5 // pred_check_branch
        %3157 = sbr.rel (%p3155) target = $region52
      $region51: #{tpu_custom_call.1} parent=5 // pred_region
        %s3158 = ssub.s32 %s15, 2
        // Predicated region
        $region53: #{tpu_custom_call.1} parent=51 // pred_check
          %p3159 = pneg %p175
        $region54: #{tpu_custom_call.1} parent=51 // pred_check_branch
          %3161 = sbr.rel (%p3159) target = $region56
        $region55: #{tpu_custom_call.1} parent=51 // pred_region
          %s3162 = sand.u32 %s160, 1
          %s3163 = scalar_lea.sflag [#allocation4], %s3162
          %s3164 = sand.u32 %s160, 1
          %s3165 = smul.addr %s3164, 48
          %s3166 = scalar_lea.vmem [#allocation3], %s3165
          %3167 = dma.done %s3163, 768
        $region56: #{tpu_custom_call.1} parent=51 // pred_fallthru
          _
      $region52: #{tpu_custom_call.1} parent=5 // pred_fallthru
        _
    $region6: #{tpu_custom_call.1} parent=1 // loop_footer
      %s19 = sadd.s32 1, %s15
    $region7: #{tpu_custom_call.1} parent=1 // loop_footer_branch
      %14 = sbr.rel target = $region3
    $region8: #{tpu_custom_call.1} parent=1 // loop_exit
      _
    %3168 = vsyncpa [#allocation4], 1
    %s3169 = scalar_lea.sflag [#allocation4], 1
    %3170 = vsyncpa %s3169, 1

</llo_original>
